<compile_context>
chip_gen: v7x
topology: tpu7x:2x2x1
jax: 0.10.0
libtpu: 0.0.40
codegen_flags: <defaults>
</compile_context>

<pallas_src>
import jax
import jax.numpy as jnp
from jax import lax
from jax.experimental import pallas as pl
from jax.experimental.pallas import tpu as pltpu


def _make_stn3d_kernel(blk_b, tile_n, n_valid, cin_pad, needs_mask):
    def kernel(x_ref,
               w1_ref, b1_ref, w2_ref, b2_ref, w3_ref, b3_ref,
               f1_ref, c1_ref, f2_ref, c2_ref, f3_ref, c3_ref,
               o_ref, pool_ref):
        n_idx = pl.program_id(1)
        n_last = pl.num_programs(1) - 1

        @pl.when(n_idx == 0)
        def _init():
            # Safe zero init: all pooled values are post-ReLU (>= 0).
            pool_ref[...] = jnp.zeros_like(pool_ref)

        m = blk_b * tile_n
        x = x_ref[...].reshape(m, cin_pad)                       # (M, 8)

        # conv1 + bn1 + relu   -> (M, 64)
        h = jnp.maximum(
            jnp.dot(x, w1_ref[...], preferred_element_type=jnp.float32)
            + b1_ref[...], 0.0)
        # conv2 + bn2 + relu   -> (M, 128)
        h = jnp.maximum(
            jnp.dot(h, w2_ref[...], preferred_element_type=jnp.float32)
            + b2_ref[...], 0.0)
        # conv3 + bn3 + relu   -> (M, 1024)
        h = jnp.maximum(
            jnp.dot(h, w3_ref[...], preferred_element_type=jnp.float32)
            + b3_ref[...], 0.0)

        h = h.reshape(blk_b, tile_n, 1024)

        if needs_mask:
            # Zero out padded point rows (post-ReLU activations >= 0, so this
            # leaves the per-sample max over valid points unchanged).
            row = (lax.broadcasted_iota(jnp.int32, (tile_n, 1), 0)
                   + n_idx * tile_n)
            valid = (row < n_valid)[None, :, :]                  # (1, tile_n, 1)
            h = jnp.where(valid, h, 0.0)

        # running global max-pool over the point axis  -> (BLK_B, 1024)
        pool_ref[...] = jnp.maximum(pool_ref[...], jnp.max(h, axis=1))

        @pl.when(n_idx == n_last)
        def _fc():
            g = pool_ref[...]                                    # (BLK_B, 1024)
            # fc1 + bn4 + relu   -> (BLK_B, 512)
            g = jnp.maximum(
                jnp.dot(g, f1_ref[...], preferred_element_type=jnp.float32)
                + c1_ref[...], 0.0)
            # fc2 + bn5 + relu   -> (BLK_B, 256)
            g = jnp.maximum(
                jnp.dot(g, f2_ref[...], preferred_element_type=jnp.float32)
                + c2_ref[...], 0.0)
            # fc3 (+ identity folded into bias), lane-dense 128-wide output.
            o_ref[...] = (
                jnp.dot(g, f3_ref[...], preferred_element_type=jnp.float32)
                + c3_ref[...])

    return kernel


def _fold_bn(w, b, bn, eps=1e-5):
    """Fold eval-mode BatchNorm1d into a (Cin, Cout) weight and (Cout,) bias."""
    gamma, beta, mean, var = bn
    scale = gamma / jnp.sqrt(var + eps)
    return w * scale[None, :], (b - mean) * scale + beta


def _round_up(v, m):
    return (v + m - 1) // m * m


def stn3d_forward(x, params, *, blk_b=8, max_tile_n=256):
    """x: (B, 3, N) float32 (PyTorch Conv1d layout). Returns (B, 3, 3)."""
    B, C, N = x.shape
    assert C == 3
    xt = jnp.transpose(x, (0, 2, 1)).astype(jnp.float32)         # (B, N, 3)

    cin_pad = 8
    out_cols = 128                                               # lane-dense output
    tile_n = min(max_tile_n, _round_up(N, 8))
    n_pad = _round_up(N, tile_n)
    b_pad = _round_up(B, blk_b)
    needs_mask = (n_pad != N)

    # Zero-pad: batch to BLK_B multiple, points to tile_n multiple, chans 3->8.
    xt = jnp.pad(xt, ((0, b_pad - B), (0, n_pad - N), (0, cin_pad - 3)))

    w1, b1 = _fold_bn(params["conv1_w"], params["conv1_b"], params["bn1"])
    w1 = jnp.pad(w1, ((0, cin_pad - 3), (0, 0)))  # zero rows: result unchanged
    w2, b2 = _fold_bn(params["conv2_w"], params["conv2_b"], params["bn2"])
    w3, b3 = _fold_bn(params["conv3_w"], params["conv3_b"], params["bn3"])
    f1, c1 = _fold_bn(params["fc1_w"], params["fc1_b"], params["bn4"])
    f2, c2 = _fold_bn(params["fc2_w"], params["fc2_b"], params["bn5"])

    iden = jnp.array([1, 0, 0, 0, 1, 0, 0, 0, 1], jnp.float32)
    c3 = params["fc3_b"] + iden                  # fold "+ identity" into bias
    # Widen fc3 to 128 output columns with zeros -> unmasked, lane-dense store.
    f3p = jnp.pad(params["fc3_w"], ((0, 0), (0, out_cols - 9)))
    c3p = jnp.pad(c3, (0, out_cols - 9))

    row = lambda v: v.reshape(1, -1)
    mats = [w1, row(b1), w2, row(b2), w3, row(b3),
            f1, row(c1), f2, row(c2), f3p, row(c3p)]

    def full_spec(a):
        nd = a.ndim
        return pl.BlockSpec(a.shape, lambda b, n, _nd=nd: (0,) * _nd)

    # Explicit VMEM budget: double-buffered weights + x tile, conv/fc
    # intermediates, pooled scratch, output tile; 1.5x slack, >= 32 MiB,
    # capped under v7x's 64 MiB physical.
    weight_bytes = sum(int(m.size) * 4 for m in mats)
    est = (2 * weight_bytes
           + 2 * blk_b * tile_n * cin_pad * 4
           + blk_b * tile_n * (64 + 128 + 1024) * 4
           + blk_b * (1024 + 512 + 256 + out_cols) * 4
           + blk_b * 1024 * 4
           + 2 * blk_b * out_cols * 4)
    vmem_limit = max(32 * 1024 * 1024, min(int(est * 1.5), 60 * 1024 * 1024))

    kernel = _make_stn3d_kernel(blk_b, tile_n, N, cin_pad, needs_mask)

    out = pl.pallas_call(
        kernel,
        out_shape=jax.ShapeDtypeStruct((b_pad, out_cols), jnp.float32),
        grid_spec=pltpu.PrefetchScalarGridSpec(
            num_scalar_prefetch=0,
            grid=(b_pad // blk_b, n_pad // tile_n),
            in_specs=[pl.BlockSpec((blk_b, tile_n, cin_pad),
                                   lambda b, n: (b, n, 0))]
                     + [full_spec(m) for m in mats],
            out_specs=pl.BlockSpec((blk_b, out_cols), lambda b, n: (b, 0)),
            scratch_shapes=[pltpu.VMEM((blk_b, 1024), jnp.float32)],
        ),
        compiler_params=pltpu.CompilerParams(
            dimension_semantics=("parallel", "arbitrary"),
            vmem_limit_bytes=vmem_limit),
    )(xt, *mats)

    return out[:B, :9].reshape(B, 3, 3)


def init_params(key):
    ks = jax.random.split(key, 17)

    def w(k, shape, scale=0.1):
        return scale * jax.random.normal(k, shape, jnp.float32)

    def bn(k, c):
        k1, k2, k3, k4 = jax.random.split(k, 4)
        gamma = 1.0 + 0.05 * jax.random.normal(k1, (c,), jnp.float32)
        beta = 0.05 * jax.random.normal(k2, (c,), jnp.float32)
        mean = 0.05 * jax.random.normal(k3, (c,), jnp.float32)
        var = 1.0 + 0.1 * jnp.abs(jax.random.normal(k4, (c,), jnp.float32))
        return gamma, beta, mean, var

    # Conv1d(kernel_size=1)/Linear weights stored pre-transposed as (Cin, Cout).
    return {
        "conv1_w": w(ks[0], (3, 64)),     "conv1_b": w(ks[1], (64,)),
        "conv2_w": w(ks[2], (64, 128)),   "conv2_b": w(ks[3], (128,)),
        "conv3_w": w(ks[4], (128, 1024)), "conv3_b": w(ks[5], (1024,)),
        "fc1_w":   w(ks[6], (1024, 512)), "fc1_b":   w(ks[7], (512,)),
        "fc2_w":   w(ks[8], (512, 256)),  "fc2_b":   w(ks[9], (256,)),
        "fc3_w":   w(ks[10], (256, 9)),   "fc3_b":   w(ks[11], (9,)),
        "bn1": bn(ks[12], 64),
        "bn2": bn(ks[13], 128),
        "bn3": bn(ks[14], 1024),
        "bn4": bn(ks[15], 512),
        "bn5": bn(ks[16], 256),
    }


if __name__ == "__main__":
    key = jax.random.PRNGKey(0)
    kp, kx = jax.random.split(key)
    params = init_params(kp)

    B, N = 2, 32                      # small: 2 point clouds of 32 points each
    x = jax.random.normal(kx, (B, 3, N), jnp.float32)   # PyTorch Conv1d layout

    out = stn3d_forward(x, params)
    jax.block_until_ready(out)
    assert out.shape == (B, 3, 3) and out.dtype == jnp.float32
    assert bool(jnp.isfinite(out).all())
    print("KERNEL_OK")
</pallas_src>

<mosaic_0001>
module attributes {stable_mosaic.version = 11 : i64} {
  func.func @kernel(%arg0: i32, %arg1: i32, %arg2: memref<8x32x8xf32, #tpu.memory_space<vmem>>, %arg3: memref<8x64xf32, #tpu.memory_space<vmem>>, %arg4: memref<1x64xf32, #tpu.memory_space<vmem>>, %arg5: memref<64x128xf32, #tpu.memory_space<vmem>>, %arg6: memref<1x128xf32, #tpu.memory_space<vmem>>, %arg7: memref<128x1024xf32, #tpu.memory_space<vmem>>, %arg8: memref<1x1024xf32, #tpu.memory_space<vmem>>, %arg9: memref<1024x512xf32, #tpu.memory_space<vmem>>, %arg10: memref<1x512xf32, #tpu.memory_space<vmem>>, %arg11: memref<512x256xf32, #tpu.memory_space<vmem>>, %arg12: memref<1x256xf32, #tpu.memory_space<vmem>>, %arg13: memref<256x128xf32, #tpu.memory_space<vmem>>, %arg14: memref<1x128xf32, #tpu.memory_space<vmem>>, %arg15: memref<8x128xf32, #tpu.memory_space<vmem>>, %arg16: memref<8x1024xf32, #tpu.memory_space<vmem>>) attributes {dimension_semantics = [#tpu.dimension_semantics<parallel>, #tpu.dimension_semantics<arbitrary>], iteration_bounds = array<i64: 1, 1>, scalar_prefetch = 0 : i64, scratch_operands = 1 : i64, tpu.core_type = #tpu.core_type<tc>, window_params = [{transform_indices = @transform_0, window_bounds = array<i64: 8, 32, 8>}, {pipeline_mode = #tpu.pipeline_mode<synchronous>, transform_indices = @transform_1, window_bounds = array<i64: 8, 64>}, {pipeline_mode = #tpu.pipeline_mode<synchronous>, transform_indices = @transform_2, window_bounds = array<i64: 1, 64>}, {pipeline_mode = #tpu.pipeline_mode<synchronous>, transform_indices = @transform_3, window_bounds = array<i64: 64, 128>}, {pipeline_mode = #tpu.pipeline_mode<synchronous>, transform_indices = @transform_4, window_bounds = array<i64: 1, 128>}, {pipeline_mode = #tpu.pipeline_mode<synchronous>, transform_indices = @transform_5, window_bounds = array<i64: 128, 1024>}, {pipeline_mode = #tpu.pipeline_mode<synchronous>, transform_indices = @transform_6, window_bounds = array<i64: 1, 1024>}, {pipeline_mode = #tpu.pipeline_mode<synchronous>, transform_indices = @transform_7, window_bounds = array<i64: 1024, 512>}, {pipeline_mode = #tpu.pipeline_mode<synchronous>, transform_indices = @transform_8, window_bounds = array<i64: 1, 512>}, {pipeline_mode = #tpu.pipeline_mode<synchronous>, transform_indices = @transform_9, window_bounds = array<i64: 512, 256>}, {pipeline_mode = #tpu.pipeline_mode<synchronous>, transform_indices = @transform_10, window_bounds = array<i64: 1, 256>}, {pipeline_mode = #tpu.pipeline_mode<synchronous>, transform_indices = @transform_11, window_bounds = array<i64: 256, 128>}, {pipeline_mode = #tpu.pipeline_mode<synchronous>, transform_indices = @transform_12, window_bounds = array<i64: 1, 128>}, {transform_indices = @transform_13, window_bounds = array<i64: 8, 128>}]} {
    %c0_i32 = arith.constant 0 : i32
    %0 = arith.cmpi eq, %arg1, %c0_i32 : i32
    %1 = arith.extui %0 : i1 to i32
    %c0_i32_0 = arith.constant 0 : i32
    %2 = arith.cmpi ne, %1, %c0_i32_0 : i32
    scf.if %2 {
      %cst_27 = arith.constant 0.000000e+00 : f32
      %34 = vector.broadcast %cst_27 : f32 to vector<8x1024xf32>
      %c0_28 = arith.constant 0 : index
      %c0_29 = arith.constant 0 : index
      %35 = vector.load %arg16[%c0_28, %c0_29] : memref<8x1024xf32, #tpu.memory_space<vmem>>, vector<8x1024xf32>
      tpu.vector_store %arg16[%c0_28, %c0_29], %34 {strides = array<i32>} : memref<8x1024xf32, #tpu.memory_space<vmem>>, vector<8x1024xf32>,
    } else {
    }
    %c0 = arith.constant 0 : index
    %c0_1 = arith.constant 0 : index
    %c0_2 = arith.constant 0 : index
    %3 = vector.load %arg2[%c0, %c0_1, %c0_2] : memref<8x32x8xf32, #tpu.memory_space<vmem>>, vector<8x32x8xf32>
    %4 = vector.shape_cast %3 : vector<8x32x8xf32> to vector<256x8xf32>
    %c0_3 = arith.constant 0 : index
    %c0_4 = arith.constant 0 : index
    %5 = vector.load %arg3[%c0_3, %c0_4] : memref<8x64xf32, #tpu.memory_space<vmem>>, vector<8x64xf32>
    %cst = arith.constant dense<0.000000e+00> : vector<256x64xf32>
    %6 = tpu.matmul %4, %5, %cst {dimension_numbers = #tpu.dot_dimension_numbers<[1], [0], [0], [1], [0, 0, 1, 1], [], []>} : vector<256x8xf32>, vector<8x64xf32>, vector<256x64xf32> -> vector<256x64xf32>
    %c0_5 = arith.constant 0 : index
    %c0_6 = arith.constant 0 : index
    %7 = vector.load %arg4[%c0_5, %c0_6] : memref<1x64xf32, #tpu.memory_space<vmem>>, vector<1x64xf32>
    %8 = vector.broadcast %7 : vector<1x64xf32> to vector<256x64xf32>
    %9 = arith.addf %6, %8 : vector<256x64xf32>
    %cst_7 = arith.constant 0.000000e+00 : f32
    %10 = vector.broadcast %cst_7 : f32 to vector<256x64xf32>
    %11 = arith.maximumf %9, %10 : vector<256x64xf32>
    %c0_8 = arith.constant 0 : index
    %c0_9 = arith.constant 0 : index
    %12 = vector.load %arg5[%c0_8, %c0_9] : memref<64x128xf32, #tpu.memory_space<vmem>>, vector<64x128xf32>
    %cst_10 = arith.constant dense<0.000000e+00> : vector<256x128xf32>
    %13 = tpu.matmul %11, %12, %cst_10 {dimension_numbers = #tpu.dot_dimension_numbers<[1], [0], [0], [1], [0, 0, 1, 1], [], []>} : vector<256x64xf32>, vector<64x128xf32>, vector<256x128xf32> -> vector<256x128xf32>
    %c0_11 = arith.constant 0 : index
    %c0_12 = arith.constant 0 : index
    %14 = vector.load %arg6[%c0_11, %c0_12] : memref<1x128xf32, #tpu.memory_space<vmem>>, vector<1x128xf32>
    %15 = vector.broadcast %14 : vector<1x128xf32> to vector<256x128xf32>
    %16 = arith.addf %13, %15 : vector<256x128xf32>
    %cst_13 = arith.constant 0.000000e+00 : f32
    %17 = vector.broadcast %cst_13 : f32 to vector<256x128xf32>
    %18 = arith.maximumf %16, %17 : vector<256x128xf32>
    %c0_14 = arith.constant 0 : index
    %c0_15 = arith.constant 0 : index
    %19 = vector.load %arg7[%c0_14, %c0_15] : memref<128x1024xf32, #tpu.memory_space<vmem>>, vector<128x1024xf32>
    %cst_16 = arith.constant dense<0.000000e+00> : vector<256x1024xf32>
    %20 = tpu.matmul %18, %19, %cst_16 {dimension_numbers = #tpu.dot_dimension_numbers<[1], [0], [0], [1], [0, 0, 1, 1], [], []>} : vector<256x128xf32>, vector<128x1024xf32>, vector<256x1024xf32> -> vector<256x1024xf32>
    %c0_17 = arith.constant 0 : index
    %c0_18 = arith.constant 0 : index
    %21 = vector.load %arg8[%c0_17, %c0_18] : memref<1x1024xf32, #tpu.memory_space<vmem>>, vector<1x1024xf32>
    %22 = vector.broadcast %21 : vector<1x1024xf32> to vector<256x1024xf32>
    %23 = arith.addf %20, %22 : vector<256x1024xf32>
    %cst_19 = arith.constant 0.000000e+00 : f32
    %24 = vector.broadcast %cst_19 : f32 to vector<256x1024xf32>
    %25 = arith.maximumf %23, %24 : vector<256x1024xf32>
    %26 = vector.shape_cast %25 : vector<256x1024xf32> to vector<8x32x1024xf32>
    %c0_20 = arith.constant 0 : index
    %c0_21 = arith.constant 0 : index
    %27 = vector.load %arg16[%c0_20, %c0_21] : memref<8x1024xf32, #tpu.memory_space<vmem>>, vector<8x1024xf32>
    %cst_22 = arith.constant dense<0xFF800000> : vector<8x1024xf32>
    %28 = vector.multi_reduction <maximumf>, %26, %cst_22 [1] : vector<8x32x1024xf32> to vector<8x1024xf32>
    %29 = arith.maximumf %27, %28 : vector<8x1024xf32>
    %c0_23 = arith.constant 0 : index
    %c0_24 = arith.constant 0 : index
    %30 = vector.load %arg16[%c0_23, %c0_24] : memref<8x1024xf32, #tpu.memory_space<vmem>>, vector<8x1024xf32>
    tpu.vector_store %arg16[%c0_23, %c0_24], %29 {strides = array<i32>} : memref<8x1024xf32, #tpu.memory_space<vmem>>, vector<8x1024xf32>,
    %c0_i32_25 = arith.constant 0 : i32
    %31 = arith.cmpi eq, %arg1, %c0_i32_25 : i32
    %32 = arith.extui %31 : i1 to i32
    %c0_i32_26 = arith.constant 0 : i32
    %33 = arith.cmpi ne, %32, %c0_i32_26 : i32
    scf.if %33 {
      %c0_27 = arith.constant 0 : index
      %c0_28 = arith.constant 0 : index
      %34 = vector.load %arg16[%c0_27, %c0_28] : memref<8x1024xf32, #tpu.memory_space<vmem>>, vector<8x1024xf32>
      %c0_29 = arith.constant 0 : index
      %c0_30 = arith.constant 0 : index
      %35 = vector.load %arg9[%c0_29, %c0_30] : memref<1024x512xf32, #tpu.memory_space<vmem>>, vector<1024x512xf32>
      %cst_31 = arith.constant dense<0.000000e+00> : vector<8x512xf32>
      %36 = tpu.matmul %34, %35, %cst_31 {dimension_numbers = #tpu.dot_dimension_numbers<[1], [0], [0], [1], [0, 0, 1, 1], [], []>} : vector<8x1024xf32>, vector<1024x512xf32>, vector<8x512xf32> -> vector<8x512xf32>
      %c0_32 = arith.constant 0 : index
      %c0_33 = arith.constant 0 : index
      %37 = vector.load %arg10[%c0_32, %c0_33] : memref<1x512xf32, #tpu.memory_space<vmem>>, vector<1x512xf32>
      %38 = vector.broadcast %37 : vector<1x512xf32> to vector<8x512xf32>
      %39 = arith.addf %36, %38 : vector<8x512xf32>
      %cst_34 = arith.constant 0.000000e+00 : f32
      %40 = vector.broadcast %cst_34 : f32 to vector<8x512xf32>
      %41 = arith.maximumf %39, %40 : vector<8x512xf32>
      %c0_35 = arith.constant 0 : index
      %c0_36 = arith.constant 0 : index
      %42 = vector.load %arg11[%c0_35, %c0_36] : memref<512x256xf32, #tpu.memory_space<vmem>>, vector<512x256xf32>
      %cst_37 = arith.constant dense<0.000000e+00> : vector<8x256xf32>
      %43 = tpu.matmul %41, %42, %cst_37 {dimension_numbers = #tpu.dot_dimension_numbers<[1], [0], [0], [1], [0, 0, 1, 1], [], []>} : vector<8x512xf32>, vector<512x256xf32>, vector<8x256xf32> -> vector<8x256xf32>
      %c0_38 = arith.constant 0 : index
      %c0_39 = arith.constant 0 : index
      %44 = vector.load %arg12[%c0_38, %c0_39] : memref<1x256xf32, #tpu.memory_space<vmem>>, vector<1x256xf32>
      %45 = vector.broadcast %44 : vector<1x256xf32> to vector<8x256xf32>
      %46 = arith.addf %43, %45 : vector<8x256xf32>
      %cst_40 = arith.constant 0.000000e+00 : f32
      %47 = vector.broadcast %cst_40 : f32 to vector<8x256xf32>
      %48 = arith.maximumf %46, %47 : vector<8x256xf32>
      %c0_41 = arith.constant 0 : index
      %c0_42 = arith.constant 0 : index
      %49 = vector.load %arg13[%c0_41, %c0_42] : memref<256x128xf32, #tpu.memory_space<vmem>>, vector<256x128xf32>
      %cst_43 = arith.constant dense<0.000000e+00> : vector<8x128xf32>
      %50 = tpu.matmul %48, %49, %cst_43 {dimension_numbers = #tpu.dot_dimension_numbers<[1], [0], [0], [1], [0, 0, 1, 1], [], []>} : vector<8x256xf32>, vector<256x128xf32>, vector<8x128xf32> -> vector<8x128xf32>
      %c0_44 = arith.constant 0 : index
      %c0_45 = arith.constant 0 : index
      %51 = vector.load %arg14[%c0_44, %c0_45] : memref<1x128xf32, #tpu.memory_space<vmem>>, vector<1x128xf32>
      %52 = vector.broadcast %51 : vector<1x128xf32> to vector<8x128xf32>
      %53 = arith.addf %50, %52 : vector<8x128xf32>
      %c0_46 = arith.constant 0 : index
      %c0_47 = arith.constant 0 : index
      %54 = vector.load %arg15[%c0_46, %c0_47] : memref<8x128xf32, #tpu.memory_space<vmem>>, vector<8x128xf32>
      tpu.vector_store %arg15[%c0_46, %c0_47], %53 {strides = array<i32>} : memref<8x128xf32, #tpu.memory_space<vmem>>, vector<8x128xf32>,
    } else {
    }
    return
  }
  func.func @transform_0(%arg0: i32, %arg1: i32) -> (i32, i32, i32) {
    %c0_i32 = arith.constant 0 : i32
    %c0_i32_0 = arith.constant 0 : i32
    return %arg0, %arg1, %c0_i32 : i32, i32, i32
  }
  func.func @transform_1(%arg0: i32, %arg1: i32) -> (i32, i32) {
    %c0_i32 = arith.constant 0 : i32
    %c0_i32_0 = arith.constant 0 : i32
    %c0_i32_1 = arith.constant 0 : i32
    return %c0_i32, %c0_i32_0 : i32, i32
  }
  func.func @transform_2(%arg0: i32, %arg1: i32) -> (i32, i32) {
    %c0_i32 = arith.constant 0 : i32
    %c0_i32_0 = arith.constant 0 : i32
    %c0_i32_1 = arith.constant 0 : i32
    return %c0_i32, %c0_i32_0 : i32, i32
  }
  func.func @transform_3(%arg0: i32, %arg1: i32) -> (i32, i32) {
    %c0_i32 = arith.constant 0 : i32
    %c0_i32_0 = arith.constant 0 : i32
    %c0_i32_1 = arith.constant 0 : i32
    return %c0_i32, %c0_i32_0 : i32, i32
  }
  func.func @transform_4(%arg0: i32, %arg1: i32) -> (i32, i32) {
    %c0_i32 = arith.constant 0 : i32
    %c0_i32_0 = arith.constant 0 : i32
    %c0_i32_1 = arith.constant 0 : i32
    return %c0_i32, %c0_i32_0 : i32, i32
  }
  func.func @transform_5(%arg0: i32, %arg1: i32) -> (i32, i32) {
    %c0_i32 = arith.constant 0 : i32
    %c0_i32_0 = arith.constant 0 : i32
    %c0_i32_1 = arith.constant 0 : i32
    return %c0_i32, %c0_i32_0 : i32, i32
  }
  func.func @transform_6(%arg0: i32, %arg1: i32) -> (i32, i32) {
    %c0_i32 = arith.constant 0 : i32
    %c0_i32_0 = arith.constant 0 : i32
    %c0_i32_1 = arith.constant 0 : i32
    return %c0_i32, %c0_i32_0 : i32, i32
  }
  func.func @transform_7(%arg0: i32, %arg1: i32) -> (i32, i32) {
    %c0_i32 = arith.constant 0 : i32
    %c0_i32_0 = arith.constant 0 : i32
    %c0_i32_1 = arith.constant 0 : i32
    return %c0_i32, %c0_i32_0 : i32, i32
  }
  func.func @transform_8(%arg0: i32, %arg1: i32) -> (i32, i32) {
    %c0_i32 = arith.constant 0 : i32
    %c0_i32_0 = arith.constant 0 : i32
    %c0_i32_1 = arith.constant 0 : i32
    return %c0_i32, %c0_i32_0 : i32, i32
  }
  func.func @transform_9(%arg0: i32, %arg1: i32) -> (i32, i32) {
    %c0_i32 = arith.constant 0 : i32
    %c0_i32_0 = arith.constant 0 : i32
    %c0_i32_1 = arith.constant 0 : i32
    return %c0_i32, %c0_i32_0 : i32, i32
  }
  func.func @transform_10(%arg0: i32, %arg1: i32) -> (i32, i32) {
    %c0_i32 = arith.constant 0 : i32
    %c0_i32_0 = arith.constant 0 : i32
    %c0_i32_1 = arith.constant 0 : i32
    return %c0_i32, %c0_i32_0 : i32, i32
  }
  func.func @transform_11(%arg0: i32, %arg1: i32) -> (i32, i32) {
    %c0_i32 = arith.constant 0 : i32
    %c0_i32_0 = arith.constant 0 : i32
    %c0_i32_1 = arith.constant 0 : i32
    return %c0_i32, %c0_i32_0 : i32, i32
  }
  func.func @transform_12(%arg0: i32, %arg1: i32) -> (i32, i32) {
    %c0_i32 = arith.constant 0 : i32
    %c0_i32_0 = arith.constant 0 : i32
    %c0_i32_1 = arith.constant 0 : i32
    return %c0_i32, %c0_i32_0 : i32, i32
  }
  func.func @transform_13(%arg0: i32, %arg1: i32) -> (i32, i32) {
    %c0_i32 = arith.constant 0 : i32
    %c0_i32_0 = arith.constant 0 : i32
    return %arg0, %c0_i32 : i32, i32
  }
}

</mosaic_0001>

<llo_original>
// kernel: tpu_custom_call.1
$region0: #{tpu_custom_call.1}
  #allocation0 [shape = 'u32[]', space=smem, size = 0x4, offset = 0x4, fixed_abs, tag = 'smem constant byte address 0x4 - core index']
  #allocation1 [shape = 'u32[144,128]{1,0:T(1,128)}', space=vmem, size = 0x12000, scoped, tag = 'internal scratch']
  #allocation2 [shape = 'f32[8,1024]{1,0:T(8,128)}', space=vmem, size = 0x8000, scoped, tag = 'scratch operand']
  %s0 = inlined_call_operand.vmem [shape: f32[8,32,8], index: 0, kind: input, shape index: {}]
  %s1 = inlined_call_operand.hbm [shape: f32[8,64], index: 1, kind: input, shape index: {}]
  %s2 = inlined_call_operand.hbm [shape: f32[1,64], index: 2, kind: input, shape index: {}]
  %s3 = inlined_call_operand.hbm [shape: f32[64,128], index: 3, kind: input, shape index: {}]
  %s4 = inlined_call_operand.hbm [shape: f32[1,128], index: 4, kind: input, shape index: {}]
  %s5 = inlined_call_operand.hbm [shape: f32[128,1024], index: 5, kind: input, shape index: {}]
  %s6 = inlined_call_operand.hbm [shape: f32[1,1024], index: 6, kind: input, shape index: {}]
  %s7 = inlined_call_operand.hbm [shape: f32[1024,512], index: 7, kind: input, shape index: {}]
  %s8 = inlined_call_operand.hbm [shape: f32[1,512], index: 8, kind: input, shape index: {}]
  %s9 = inlined_call_operand.hbm [shape: f32[512,256], index: 9, kind: input, shape index: {}]
  %s10 = inlined_call_operand.hbm [shape: f32[1,256], index: 10, kind: input, shape index: {}]
  %s11 = inlined_call_operand.hbm [shape: f32[256,128], index: 11, kind: input, shape index: {}]
  %s12 = inlined_call_operand.hbm [shape: f32[1,128], index: 12, kind: input, shape index: {}]
  %s13 = inlined_call_operand.hbm [shape: f32[8,128], index: 13, kind: output, shape index: {}]
  %s14 = sld [smem:[#allocation0]]
  $region118: #{tpu_custom_call.1} parent=0
    _
  %s16 = ssub.s32 1, %s14
  %s17 = scalar_select 0, %s16, %s14
  $region1: #{tpu_custom_call.1} parent=0
    #allocation3 [shape = 'u8[4096]{0}', space=vmem, size = 0x1000, scoped, tag = 'input window, operand 1, single buffered']
    #allocation4 [shape = 's32[1]{0}', space=sflag, size = 0x4, scoped, tag = 'scoped memory for tpu_custom_call.1']
    #allocation5 [shape = 's32[1]{0}', space=sflag, size = 0x4, scoped, tag = 'scoped memory for tpu_custom_call.1']
    #allocation6 [shape = 'u8[512]{0}', space=vmem, size = 0x400, scoped, tag = 'input window, operand 2, single buffered']
    #allocation7 [shape = 's32[1]{0}', space=sflag, size = 0x4, scoped, tag = 'scoped memory for tpu_custom_call.1']
    #allocation8 [shape = 'u8[32768]{0}', space=vmem, size = 0x8000, scoped, tag = 'input window, operand 3, single buffered']
    #allocation9 [shape = 'u8[512]{0}', space=vmem, size = 0x400, scoped, tag = 'input window, operand 4, single buffered']
    #allocation10 [shape = 's32[1]{0}', space=sflag, size = 0x4, scoped, tag = 'scoped memory for tpu_custom_call.1']
    #allocation11 [shape = 'u8[524288]{0}', space=vmem, size = 0x80000, scoped, tag = 'input window, operand 5, single buffered']
    #allocation12 [shape = 'u8[4096]{0}', space=vmem, size = 0x1000, scoped, tag = 'input window, operand 6, single buffered']
    #allocation13 [shape = 's32[1]{0}', space=sflag, size = 0x4, scoped, tag = 'scoped memory for tpu_custom_call.1']
    #allocation14 [shape = 'u8[2097152]{0}', space=vmem, size = 0x200000, scoped, tag = 'input window, operand 7, single buffered']
    #allocation15 [shape = 'u8[2048]{0}', space=vmem, size = 0x800, scoped, tag = 'input window, operand 8, single buffered']
    #allocation16 [shape = 's32[1]{0}', space=sflag, size = 0x4, scoped, tag = 'scoped memory for tpu_custom_call.1']
    #allocation17 [shape = 'u8[524288]{0}', space=vmem, size = 0x80000, scoped, tag = 'input window, operand 9, single buffered']
    #allocation18 [shape = 'u8[1024]{0}', space=vmem, size = 0x400, scoped, tag = 'input window, operand 10, single buffered']
    #allocation19 [shape = 's32[1]{0}', space=sflag, size = 0x4, scoped, tag = 'scoped memory for tpu_custom_call.1']
    #allocation20 [shape = 'u8[131072]{0}', space=vmem, size = 0x20000, scoped, tag = 'input window, operand 11, single buffered']
    #allocation21 [shape = 'u8[512]{0}', space=vmem, size = 0x400, scoped, tag = 'input window, operand 12, single buffered']
    #allocation22 [shape = 's32[1]{0}', space=sflag, size = 0x4, scoped, tag = 'scoped memory for tpu_custom_call.1']
    #allocation23 [shape = 'u8[4096]{0}', space=vmem, size = 0x1000, scoped, tag = 'output window, operand 0, single buffered']
    %18 = vsyncpa [#allocation4], 0
    %19 = vsyncpa [#allocation7], 0
    %20 = vsyncpa [#allocation10], 0
    %21 = vsyncpa [#allocation13], 0
    %22 = vsyncpa [#allocation16], 0
    %23 = vsyncpa [#allocation19], 0
    %24 = vsyncpa [#allocation22], 0
    %25 = vsyncpa [#allocation5], 0
    // Predicated region
    $region2: #{tpu_custom_call.1} parent=1 // pred_check
      _
    $region3: #{tpu_custom_call.1} parent=1 // pred_check_branch
      %27 = sbr.rel (0) target = $region5
    $region4: #{tpu_custom_call.1} parent=1 // pred_region
      _
    $region5: #{tpu_custom_call.1} parent=1 // pred_fallthru
      _
    // Predicated region
    $region6: #{tpu_custom_call.1} parent=1 // pred_check
      _
    $region7: #{tpu_custom_call.1} parent=1 // pred_check_branch
      %29 = sbr.rel (0) target = $region9
    $region8: #{tpu_custom_call.1} parent=1 // pred_region
      %s31 = ssub.s32 128, 128
      %32 = vsyncadd [#allocation4], %s31
      %s34 = sshll.u32 [#allocation3], 4
      %s35 = int_to_ptr.vmem [resolvable:$true] %s34
      %37 = dma.hbm_to_vmem [thread:$0]  %s1, 128, %s35, [#allocation4]
    $region9: #{tpu_custom_call.1} parent=1 // pred_fallthru
      _
    // Predicated region
    $region10: #{tpu_custom_call.1} parent=1 // pred_check
      _
    $region11: #{tpu_custom_call.1} parent=1 // pred_check_branch
      %39 = sbr.rel (0) target = $region13
    $region12: #{tpu_custom_call.1} parent=1 // pred_region
      %s41 = ssub.s32 16, 16
      %42 = vsyncadd [#allocation7], %s41
      %s44 = sshll.u32 [#allocation6], 4
      %s45 = int_to_ptr.vmem [resolvable:$true] %s44
      %47 = dma.hbm_to_vmem [thread:$0]  %s2, 16, %s45, [#allocation7]
    $region13: #{tpu_custom_call.1} parent=1 // pred_fallthru
      _
    // Predicated region
    $region14: #{tpu_custom_call.1} parent=1 // pred_check
      _
    $region15: #{tpu_custom_call.1} parent=1 // pred_check_branch
      %49 = sbr.rel (0) target = $region17
    $region16: #{tpu_custom_call.1} parent=1 // pred_region
      %s51 = ssub.s32 1024, 1024
      %52 = vsyncadd [#allocation7], %s51
      %s53 = sshll.u32 [#allocation8], 4
      %s54 = int_to_ptr.vmem [resolvable:$true] %s53
      %59 = dma.hbm_to_vmem [thread:$0]  %s3, 1024, %s54, [#allocation7], 128, 128, 8
    $region17: #{tpu_custom_call.1} parent=1 // pred_fallthru
      _
    // Predicated region
    $region18: #{tpu_custom_call.1} parent=1 // pred_check
      _
    $region19: #{tpu_custom_call.1} parent=1 // pred_check_branch
      %61 = sbr.rel (0) target = $region21
    $region20: #{tpu_custom_call.1} parent=1 // pred_region
      %s63 = ssub.s32 16, 16
      %64 = vsyncadd [#allocation10], %s63
      %s66 = sshll.u32 [#allocation9], 4
      %s67 = int_to_ptr.vmem [resolvable:$true] %s66
      %69 = dma.hbm_to_vmem [thread:$0]  %s4, 16, %s67, [#allocation10]
    $region21: #{tpu_custom_call.1} parent=1 // pred_fallthru
      _
    // Predicated region
    $region22: #{tpu_custom_call.1} parent=1 // pred_check
      _
    $region23: #{tpu_custom_call.1} parent=1 // pred_check_branch
      %71 = sbr.rel (0) target = $region25
    $region24: #{tpu_custom_call.1} parent=1 // pred_region
      %s73 = ssub.s32 16384, 16384
      %74 = vsyncadd [#allocation10], %s73
      %s75 = sshll.u32 [#allocation11], 4
      %s76 = int_to_ptr.vmem [resolvable:$true] %s75
      %81 = dma.hbm_to_vmem [thread:$0]  %s5, 16384, %s76, [#allocation10], 1024, 1024, 64
    $region25: #{tpu_custom_call.1} parent=1 // pred_fallthru
      _
    // Predicated region
    $region26: #{tpu_custom_call.1} parent=1 // pred_check
      _
    $region27: #{tpu_custom_call.1} parent=1 // pred_check_branch
      %83 = sbr.rel (0) target = $region29
    $region28: #{tpu_custom_call.1} parent=1 // pred_region
      %s85 = ssub.s32 128, 128
      %86 = vsyncadd [#allocation13], %s85
      %s88 = sshll.u32 [#allocation12], 4
      %s89 = int_to_ptr.vmem [resolvable:$true] %s88
      %91 = dma.hbm_to_vmem [thread:$0]  %s6, 128, %s89, [#allocation13]
    $region29: #{tpu_custom_call.1} parent=1 // pred_fallthru
      _
    // Predicated region
    $region30: #{tpu_custom_call.1} parent=1 // pred_check
      _
    $region31: #{tpu_custom_call.1} parent=1 // pred_check_branch
      %93 = sbr.rel (0) target = $region33
    $region32: #{tpu_custom_call.1} parent=1 // pred_region
      %s95 = ssub.s32 65536, 65536
      %96 = vsyncadd [#allocation13], %s95
      %s97 = sshll.u32 [#allocation14], 4
      %s98 = int_to_ptr.vmem [resolvable:$true] %s97
      %103 = dma.hbm_to_vmem [thread:$0]  %s7, 65536, %s98, [#allocation13], 512, 512, 32
    $region33: #{tpu_custom_call.1} parent=1 // pred_fallthru
      _
    // Predicated region
    $region34: #{tpu_custom_call.1} parent=1 // pred_check
      _
    $region35: #{tpu_custom_call.1} parent=1 // pred_check_branch
      %105 = sbr.rel (0) target = $region37
    $region36: #{tpu_custom_call.1} parent=1 // pred_region
      %s107 = ssub.s32 64, 64
      %108 = vsyncadd [#allocation16], %s107
      %s110 = sshll.u32 [#allocation15], 4
      %s111 = int_to_ptr.vmem [resolvable:$true] %s110
      %113 = dma.hbm_to_vmem [thread:$0]  %s8, 64, %s111, [#allocation16]
    $region37: #{tpu_custom_call.1} parent=1 // pred_fallthru
      _
    // Predicated region
    $region38: #{tpu_custom_call.1} parent=1 // pred_check
      _
    $region39: #{tpu_custom_call.1} parent=1 // pred_check_branch
      %115 = sbr.rel (0) target = $region41
    $region40: #{tpu_custom_call.1} parent=1 // pred_region
      %s117 = ssub.s32 16384, 16384
      %118 = vsyncadd [#allocation16], %s117
      %s119 = sshll.u32 [#allocation17], 4
      %s120 = int_to_ptr.vmem [resolvable:$true] %s119
      %125 = dma.hbm_to_vmem [thread:$0]  %s9, 16384, %s120, [#allocation16], 256, 256, 16
    $region41: #{tpu_custom_call.1} parent=1 // pred_fallthru
      _
    // Predicated region
    $region42: #{tpu_custom_call.1} parent=1 // pred_check
      _
    $region43: #{tpu_custom_call.1} parent=1 // pred_check_branch
      %127 = sbr.rel (0) target = $region45
    $region44: #{tpu_custom_call.1} parent=1 // pred_region
      %s129 = ssub.s32 32, 32
      %130 = vsyncadd [#allocation19], %s129
      %s132 = sshll.u32 [#allocation18], 4
      %s133 = int_to_ptr.vmem [resolvable:$true] %s132
      %135 = dma.hbm_to_vmem [thread:$0]  %s10, 32, %s133, [#allocation19]
    $region45: #{tpu_custom_call.1} parent=1 // pred_fallthru
      _
    // Predicated region
    $region46: #{tpu_custom_call.1} parent=1 // pred_check
      _
    $region47: #{tpu_custom_call.1} parent=1 // pred_check_branch
      %137 = sbr.rel (0) target = $region49
    $region48: #{tpu_custom_call.1} parent=1 // pred_region
      %s139 = ssub.s32 4096, 4096
      %140 = vsyncadd [#allocation19], %s139
      %s141 = sshll.u32 [#allocation20], 4
      %s142 = int_to_ptr.vmem [resolvable:$true] %s141
      %147 = dma.hbm_to_vmem [thread:$0]  %s11, 4096, %s142, [#allocation19], 128, 128, 8
    $region49: #{tpu_custom_call.1} parent=1 // pred_fallthru
      _
    // Predicated region
    $region50: #{tpu_custom_call.1} parent=1 // pred_check
      _
    $region51: #{tpu_custom_call.1} parent=1 // pred_check_branch
      %149 = sbr.rel (0) target = $region53
    $region52: #{tpu_custom_call.1} parent=1 // pred_region
      %s151 = ssub.s32 16, 16
      %152 = vsyncadd [#allocation22], %s151
      %s154 = sshll.u32 [#allocation21], 4
      %s155 = int_to_ptr.vmem [resolvable:$true] %s154
      %157 = dma.hbm_to_vmem [thread:$0]  %s12, 16, %s155, [#allocation22]
    $region53: #{tpu_custom_call.1} parent=1 // pred_fallthru
      _
    // Predicated region
    $region54: #{tpu_custom_call.1} parent=1 // pred_check
      _
    $region55: #{tpu_custom_call.1} parent=1 // pred_check_branch
      %159 = sbr.rel (0) target = $region57
    $region56: #{tpu_custom_call.1} parent=1 // pred_region
      %160 = dma.done [#allocation4], 128
    $region57: #{tpu_custom_call.1} parent=1 // pred_fallthru
      _
    // Predicated region
    $region58: #{tpu_custom_call.1} parent=1 // pred_check
      _
    $region59: #{tpu_custom_call.1} parent=1 // pred_check_branch
      %162 = sbr.rel (0) target = $region61
    $region60: #{tpu_custom_call.1} parent=1 // pred_region
      %163 = dma.done [#allocation7], 16
    $region61: #{tpu_custom_call.1} parent=1 // pred_fallthru
      _
    // Predicated region
    $region62: #{tpu_custom_call.1} parent=1 // pred_check
      _
    $region63: #{tpu_custom_call.1} parent=1 // pred_check_branch
      %165 = sbr.rel (0) target = $region65
    $region64: #{tpu_custom_call.1} parent=1 // pred_region
      %166 = dma.done [#allocation7], 1024
    $region65: #{tpu_custom_call.1} parent=1 // pred_fallthru
      _
    // Predicated region
    $region66: #{tpu_custom_call.1} parent=1 // pred_check
      _
    $region67: #{tpu_custom_call.1} parent=1 // pred_check_branch
      %168 = sbr.rel (0) target = $region69
    $region68: #{tpu_custom_call.1} parent=1 // pred_region
      %169 = dma.done [#allocation10], 16
    $region69: #{tpu_custom_call.1} parent=1 // pred_fallthru
      _
    // Predicated region
    $region70: #{tpu_custom_call.1} parent=1 // pred_check
      _
    $region71: #{tpu_custom_call.1} parent=1 // pred_check_branch
      %171 = sbr.rel (0) target = $region73
    $region72: #{tpu_custom_call.1} parent=1 // pred_region
      %172 = dma.done [#allocation10], 16384
    $region73: #{tpu_custom_call.1} parent=1 // pred_fallthru
      _
    // Predicated region
    $region74: #{tpu_custom_call.1} parent=1 // pred_check
      _
    $region75: #{tpu_custom_call.1} parent=1 // pred_check_branch
      %174 = sbr.rel (0) target = $region77
    $region76: #{tpu_custom_call.1} parent=1 // pred_region
      %175 = dma.done [#allocation13], 128
    $region77: #{tpu_custom_call.1} parent=1 // pred_fallthru
      _
    // Predicated region
    $region78: #{tpu_custom_call.1} parent=1 // pred_check
      _
    $region79: #{tpu_custom_call.1} parent=1 // pred_check_branch
      %177 = sbr.rel (0) target = $region81
    $region80: #{tpu_custom_call.1} parent=1 // pred_region
      %178 = dma.done [#allocation13], 65536
    $region81: #{tpu_custom_call.1} parent=1 // pred_fallthru
      _
    // Predicated region
    $region82: #{tpu_custom_call.1} parent=1 // pred_check
      _
    $region83: #{tpu_custom_call.1} parent=1 // pred_check_branch
      %180 = sbr.rel (0) target = $region85
    $region84: #{tpu_custom_call.1} parent=1 // pred_region
      %181 = dma.done [#allocation16], 64
    $region85: #{tpu_custom_call.1} parent=1 // pred_fallthru
      _
    // Predicated region
    $region86: #{tpu_custom_call.1} parent=1 // pred_check
      _
    $region87: #{tpu_custom_call.1} parent=1 // pred_check_branch
      %183 = sbr.rel (0) target = $region89
    $region88: #{tpu_custom_call.1} parent=1 // pred_region
      %184 = dma.done [#allocation16], 16384
    $region89: #{tpu_custom_call.1} parent=1 // pred_fallthru
      _
    // Predicated region
    $region90: #{tpu_custom_call.1} parent=1 // pred_check
      _
    $region91: #{tpu_custom_call.1} parent=1 // pred_check_branch
      %186 = sbr.rel (0) target = $region93
    $region92: #{tpu_custom_call.1} parent=1 // pred_region
      %187 = dma.done [#allocation19], 32
    $region93: #{tpu_custom_call.1} parent=1 // pred_fallthru
      _
    // Predicated region
    $region94: #{tpu_custom_call.1} parent=1 // pred_check
      _
    $region95: #{tpu_custom_call.1} parent=1 // pred_check_branch
      %189 = sbr.rel (0) target = $region97
    $region96: #{tpu_custom_call.1} parent=1 // pred_region
      %190 = dma.done [#allocation19], 4096
    $region97: #{tpu_custom_call.1} parent=1 // pred_fallthru
      _
    // Predicated region
    $region98: #{tpu_custom_call.1} parent=1 // pred_check
      _
    $region99: #{tpu_custom_call.1} parent=1 // pred_check_branch
      %192 = sbr.rel (0) target = $region101
    $region100: #{tpu_custom_call.1} parent=1 // pred_region
      %193 = dma.done [#allocation22], 16
    $region101: #{tpu_custom_call.1} parent=1 // pred_fallthru
      _
    %p194 = scmp.eq.s32.totalorder 0, 0
    // Predicated region
    $region102: #{tpu_custom_call.1} parent=1 // pred_check
      %p195 = pneg %p194
    $region103: #{tpu_custom_call.1} parent=1 // pred_check_branch
      %197 = sbr.rel (%p195) target = $region105
    $region104: #{tpu_custom_call.1} parent=1 // pred_region
      %198 = vst [vmem:[#allocation2] sm:$0xff] 0.0
      %199 = vst [vmem:[#allocation2 + $0x8] sm:$0xff] 0.0
      %200 = vst [vmem:[#allocation2 + $0x10] sm:$0xff] 0.0
      %201 = vst [vmem:[#allocation2 + $0x18] sm:$0xff] 0.0
      %202 = vst [vmem:[#allocation2 + $0x20] sm:$0xff] 0.0
      %203 = vst [vmem:[#allocation2 + $0x28] sm:$0xff] 0.0
      %204 = vst [vmem:[#allocation2 + $0x30] sm:$0xff] 0.0
      %205 = vst [vmem:[#allocation2 + $0x38] sm:$0xff] 0.0
    $region105: #{tpu_custom_call.1} parent=1 // pred_fallthru
      _
    %v206 = vld [vmem:[%s0] sm:$0xff]
    %v207 = vld [vmem:[%s0 + $0x8] sm:$0xff]
    %v208 = vld [vmem:[%s0 + $0x10] sm:$0xff]
    %v209 = vld [vmem:[%s0 + $0x18] sm:$0xff]
    %v210 = vld [vmem:[%s0 + $0x20] sm:$0xff]
    %v211 = vld [vmem:[%s0 + $0x28] sm:$0xff]
    %v212 = vld [vmem:[%s0 + $0x30] sm:$0xff]
    %v213 = vld [vmem:[%s0 + $0x38] sm:$0xff]
    %v214 = vld [vmem:[%s0 + $0x40] sm:$0xff]
    %v215 = vld [vmem:[%s0 + $0x48] sm:$0xff]
    %v216 = vld [vmem:[%s0 + $0x50] sm:$0xff]
    %v217 = vld [vmem:[%s0 + $0x58] sm:$0xff]
    %v218 = vld [vmem:[%s0 + $0x60] sm:$0xff]
    %v219 = vld [vmem:[%s0 + $0x68] sm:$0xff]
    %v220 = vld [vmem:[%s0 + $0x70] sm:$0xff]
    %v221 = vld [vmem:[%s0 + $0x78] sm:$0xff]
    %v222 = vld [vmem:[%s0 + $0x80] sm:$0xff]
    %v223 = vld [vmem:[%s0 + $0x88] sm:$0xff]
    %v224 = vld [vmem:[%s0 + $0x90] sm:$0xff]
    %v225 = vld [vmem:[%s0 + $0x98] sm:$0xff]
    %v226 = vld [vmem:[%s0 + $0xa0] sm:$0xff]
    %v227 = vld [vmem:[%s0 + $0xa8] sm:$0xff]
    %v228 = vld [vmem:[%s0 + $0xb0] sm:$0xff]
    %v229 = vld [vmem:[%s0 + $0xb8] sm:$0xff]
    %v230 = vld [vmem:[%s0 + $0xc0] sm:$0xff]
    %v231 = vld [vmem:[%s0 + $0xc8] sm:$0xff]
    %v232 = vld [vmem:[%s0 + $0xd0] sm:$0xff]
    %v233 = vld [vmem:[%s0 + $0xd8] sm:$0xff]
    %v234 = vld [vmem:[%s0 + $0xe0] sm:$0xff]
    %v235 = vld [vmem:[%s0 + $0xe8] sm:$0xff]
    %v236 = vld [vmem:[%s0 + $0xf0] sm:$0xff]
    %v237 = vld [vmem:[%s0 + $0xf8] sm:$0xff]
    %v238 = vld [vmem:[#allocation3] sm:$0xff]
    %v239 = vld [vmem:[#allocation6] sm:$0x1]
    %v241 = vlaneseq
    %v242 = vshrl.u32 %v241, 7
    %v243 = vsub.s32 0, %v242
    %v244 = vrot.slane %v239, %v243
    %vm246 = vcmask 64512
    %v248 = vsel %vm246, %v206, 0
    %v251 = vsel %vm246, %v207, 0
    %v254 = vsel %vm246, %v208, 0
    %v257 = vsel %vm246, %v209, 0
    %v260 = vsel %vm246, %v210, 0
    %v263 = vsel %vm246, %v211, 0
    %v266 = vsel %vm246, %v212, 0
    %v269 = vsel %vm246, %v213, 0
    %v272 = vsel %vm246, %v214, 0
    %v275 = vsel %vm246, %v215, 0
    %v278 = vsel %vm246, %v216, 0
    %v281 = vsel %vm246, %v217, 0
    %v284 = vsel %vm246, %v218, 0
    %v287 = vsel %vm246, %v219, 0
    %v290 = vsel %vm246, %v220, 0
    %v293 = vsel %vm246, %v221, 0
    %v296 = vsel %vm246, %v222, 0
    %v299 = vsel %vm246, %v223, 0
    %v302 = vsel %vm246, %v224, 0
    %v305 = vsel %vm246, %v225, 0
    %v308 = vsel %vm246, %v226, 0
    %v311 = vsel %vm246, %v227, 0
    %v314 = vsel %vm246, %v228, 0
    %v317 = vsel %vm246, %v229, 0
    %v320 = vsel %vm246, %v230, 0
    %v323 = vsel %vm246, %v231, 0
    %v326 = vsel %vm246, %v232, 0
    %v329 = vsel %vm246, %v233, 0
    %v332 = vsel %vm246, %v234, 0
    %v335 = vsel %vm246, %v235, 0
    %v338 = vsel %vm246, %v236, 0
    %v341 = vsel %vm246, %v237, 0
    %343 = vmatprep.subr.mxu0 0.0
    %344 = vmatpush1.msra.mxu0 %v238
    %345 = vmatprep.subr.mxu0 0.0
    %346 = vmatpush1.msra.mxu0 0.0
    %347 = vmatprep.subr.mxu0 0.0
    %348 = vmatpush1.msra.mxu0 0.0
    %349 = vmatprep.subr.mxu0 0.0
    %350 = vmatpush1.msra.mxu0 0.0
    %351 = vmatprep.subr.mxu0 0.0
    %352 = vmatpush1.msra.mxu0 0.0
    %353 = vmatprep.subr.mxu0 0.0
    %354 = vmatpush1.msra.mxu0 0.0
    %355 = vmatprep.subr.mxu0 0.0
    %356 = vmatpush1.msra.mxu0 0.0
    %357 = vmatprep.subr.mxu0 0.0
    %358 = vmatpush1.msra.mxu0 0.0
    %359 = vmatprep.subr.mxu0 0.0
    %360 = vmatpush1.msra.mxu0 0.0
    %361 = vmatprep.subr.mxu0 0.0
    %362 = vmatpush1.msra.mxu0 0.0
    %363 = vmatprep.subr.mxu0 0.0
    %364 = vmatpush1.msra.mxu0 0.0
    %365 = vmatprep.subr.mxu0 0.0
    %366 = vmatpush1.msra.mxu0 0.0
    %367 = vmatprep.subr.mxu0 0.0
    %368 = vmatpush1.msra.mxu0 0.0
    %369 = vmatprep.subr.mxu0 0.0
    %370 = vmatpush1.msra.mxu0 0.0
    %371 = vmatprep.subr.mxu0 0.0
    %372 = vmatpush1.msra.mxu0 0.0
    %373 = vmatprep.subr.mxu0 0.0
    %374 = vmatpush1.msra.mxu0 0.0
    %375 = vmatprep.subr.mxu0 0.0
    %376 = vmatpush1.msra.mxu0 0.0
    %377 = vmatprep.subr.mxu0 0.0
    %378 = vmatpush1.msra.mxu0 0.0
    %379 = vmatprep.subr.mxu0 0.0
    %380 = vmatpush1.msra.mxu0 0.0
    %381 = vmatprep.subr.mxu0 0.0
    %382 = vmatpush1.msra.mxu0 0.0
    %383 = vmatprep.subr.mxu0 0.0
    %384 = vmatpush1.msra.mxu0 0.0
    %385 = vmatprep.subr.mxu0 0.0
    %386 = vmatpush1.msra.mxu0 0.0
    %387 = vmatprep.subr.mxu0 0.0
    %388 = vmatpush1.msra.mxu0 0.0
    %389 = vmatprep.subr.mxu0 0.0
    %390 = vmatpush1.msra.mxu0 0.0
    %391 = vmatprep.subr.mxu0 0.0
    %392 = vmatpush1.msra.mxu0 0.0
    %393 = vmatprep.subr.mxu0 0.0
    %394 = vmatpush1.msra.mxu0 0.0
    %395 = vmatprep.subr.mxu0 0.0
    %396 = vmatpush1.msra.mxu0 0.0
    %397 = vmatprep.subr.mxu0 0.0
    %398 = vmatpush1.msra.mxu0 0.0
    %399 = vmatprep.subr.mxu0 0.0
    %400 = vmatpush1.msra.mxu0 0.0
    %401 = vmatprep.subr.mxu0 0.0
    %402 = vmatpush1.msra.mxu0 0.0
    %403 = vmatprep.subr.mxu0 0.0
    %404 = vmatpush1.msra.mxu0 0.0
    %405 = vmatprep.subr.mxu0 0.0
    %406 = vmatpush1.msra.mxu0 0.0
    %407 = vmatprep.mubr.f32.mxu0 0.0
    %408 = vmatmul.mubr.f32.gmra.mrb[0].mxu0 %v248
    %v409 = vpop.f32.mrb[0].mxu0
    %v410 = vadd.f32 %v244, %v409
    %v411 = vpop.f32.mrb[0].mxu0
    %412 = vmatprep.mubr.f32.mxu0 0.0
    %413 = vmatmul.mubr.f32.gmra.mrb[0].mxu0 %v251
    %v414 = vpop.f32.mrb[0].mxu0
    %v415 = vadd.f32 %v244, %v414
    %v416 = vpop.f32.mrb[0].mxu0
    %417 = vmatprep.mubr.f32.mxu0 0.0
    %418 = vmatmul.mubr.f32.gmra.mrb[0].mxu0 %v254
    %v419 = vpop.f32.mrb[0].mxu0
    %v420 = vadd.f32 %v244, %v419
    %v421 = vpop.f32.mrb[0].mxu0
    %422 = vmatprep.mubr.f32.mxu0 0.0
    %423 = vmatmul.mubr.f32.gmra.mrb[0].mxu0 %v257
    %v424 = vpop.f32.mrb[0].mxu0
    %v425 = vadd.f32 %v244, %v424
    %v426 = vpop.f32.mrb[0].mxu0
    %427 = vmatprep.mubr.f32.mxu0 0.0
    %428 = vmatmul.mubr.f32.gmra.mrb[0].mxu0 %v260
    %v429 = vpop.f32.mrb[0].mxu0
    %v430 = vadd.f32 %v244, %v429
    %v431 = vpop.f32.mrb[0].mxu0
    %432 = vmatprep.mubr.f32.mxu0 0.0
    %433 = vmatmul.mubr.f32.gmra.mrb[0].mxu0 %v263
    %v434 = vpop.f32.mrb[0].mxu0
    %v435 = vadd.f32 %v244, %v434
    %v436 = vpop.f32.mrb[0].mxu0
    %437 = vmatprep.mubr.f32.mxu0 0.0
    %438 = vmatmul.mubr.f32.gmra.mrb[0].mxu0 %v266
    %v439 = vpop.f32.mrb[0].mxu0
    %v440 = vadd.f32 %v244, %v439
    %v441 = vpop.f32.mrb[0].mxu0
    %442 = vmatprep.mubr.f32.mxu0 0.0
    %443 = vmatmul.mubr.f32.gmra.mrb[0].mxu0 %v269
    %v444 = vpop.f32.mrb[0].mxu0
    %v445 = vadd.f32 %v244, %v444
    %v446 = vpop.f32.mrb[0].mxu0
    %447 = vmatprep.mubr.f32.mxu0 0.0
    %448 = vmatmul.mubr.f32.gmra.mrb[0].mxu0 %v272
    %v449 = vpop.f32.mrb[0].mxu0
    %v450 = vadd.f32 %v244, %v449
    %v451 = vpop.f32.mrb[0].mxu0
    %452 = vmatprep.mubr.f32.mxu0 0.0
    %453 = vmatmul.mubr.f32.gmra.mrb[0].mxu0 %v275
    %v454 = vpop.f32.mrb[0].mxu0
    %v455 = vadd.f32 %v244, %v454
    %v456 = vpop.f32.mrb[0].mxu0
    %457 = vmatprep.mubr.f32.mxu0 0.0
    %458 = vmatmul.mubr.f32.gmra.mrb[0].mxu0 %v278
    %v459 = vpop.f32.mrb[0].mxu0
    %v460 = vadd.f32 %v244, %v459
    %v461 = vpop.f32.mrb[0].mxu0
    %462 = vmatprep.mubr.f32.mxu0 0.0
    %463 = vmatmul.mubr.f32.gmra.mrb[0].mxu0 %v281
    %v464 = vpop.f32.mrb[0].mxu0
    %v465 = vadd.f32 %v244, %v464
    %v466 = vpop.f32.mrb[0].mxu0
    %467 = vmatprep.mubr.f32.mxu0 0.0
    %468 = vmatmul.mubr.f32.gmra.mrb[0].mxu0 %v284
    %v469 = vpop.f32.mrb[0].mxu0
    %v470 = vadd.f32 %v244, %v469
    %v471 = vpop.f32.mrb[0].mxu0
    %472 = vmatprep.mubr.f32.mxu0 0.0
    %473 = vmatmul.mubr.f32.gmra.mrb[0].mxu0 %v287
    %v474 = vpop.f32.mrb[0].mxu0
    %v475 = vadd.f32 %v244, %v474
    %v476 = vpop.f32.mrb[0].mxu0
    %477 = vmatprep.mubr.f32.mxu0 0.0
    %478 = vmatmul.mubr.f32.gmra.mrb[0].mxu0 %v290
    %v479 = vpop.f32.mrb[0].mxu0
    %v480 = vadd.f32 %v244, %v479
    %v481 = vpop.f32.mrb[0].mxu0
    %482 = vmatprep.mubr.f32.mxu0 0.0
    %483 = vmatmul.mubr.f32.gmra.mrb[0].mxu0 %v293
    %v484 = vpop.f32.mrb[0].mxu0
    %v485 = vadd.f32 %v244, %v484
    %v486 = vpop.f32.mrb[0].mxu0
    %487 = vmatprep.mubr.f32.mxu0 0.0
    %488 = vmatmul.mubr.f32.gmra.mrb[0].mxu0 %v296
    %v489 = vpop.f32.mrb[0].mxu0
    %v490 = vadd.f32 %v244, %v489
    %v491 = vpop.f32.mrb[0].mxu0
    %492 = vmatprep.mubr.f32.mxu0 0.0
    %493 = vmatmul.mubr.f32.gmra.mrb[0].mxu0 %v299
    %v494 = vpop.f32.mrb[0].mxu0
    %v495 = vadd.f32 %v244, %v494
    %v496 = vpop.f32.mrb[0].mxu0
    %497 = vmatprep.mubr.f32.mxu0 0.0
    %498 = vmatmul.mubr.f32.gmra.mrb[0].mxu0 %v302
    %v499 = vpop.f32.mrb[0].mxu0
    %v500 = vadd.f32 %v244, %v499
    %v501 = vpop.f32.mrb[0].mxu0
    %502 = vmatprep.mubr.f32.mxu0 0.0
    %503 = vmatmul.mubr.f32.gmra.mrb[0].mxu0 %v305
    %v504 = vpop.f32.mrb[0].mxu0
    %v505 = vadd.f32 %v244, %v504
    %v506 = vpop.f32.mrb[0].mxu0
    %507 = vmatprep.mubr.f32.mxu0 0.0
    %508 = vmatmul.mubr.f32.gmra.mrb[0].mxu0 %v308
    %v509 = vpop.f32.mrb[0].mxu0
    %v510 = vadd.f32 %v244, %v509
    %v511 = vpop.f32.mrb[0].mxu0
    %512 = vmatprep.mubr.f32.mxu0 0.0
    %513 = vmatmul.mubr.f32.gmra.mrb[0].mxu0 %v311
    %v514 = vpop.f32.mrb[0].mxu0
    %v515 = vadd.f32 %v244, %v514
    %v516 = vpop.f32.mrb[0].mxu0
    %517 = vmatprep.mubr.f32.mxu0 0.0
    %518 = vmatmul.mubr.f32.gmra.mrb[0].mxu0 %v314
    %v519 = vpop.f32.mrb[0].mxu0
    %v520 = vadd.f32 %v244, %v519
    %v521 = vpop.f32.mrb[0].mxu0
    %522 = vmatprep.mubr.f32.mxu0 0.0
    %523 = vmatmul.mubr.f32.gmra.mrb[0].mxu0 %v317
    %v524 = vpop.f32.mrb[0].mxu0
    %v525 = vadd.f32 %v244, %v524
    %v526 = vpop.f32.mrb[0].mxu0
    %527 = vmatprep.mubr.f32.mxu0 0.0
    %528 = vmatmul.mubr.f32.gmra.mrb[0].mxu0 %v320
    %v529 = vpop.f32.mrb[0].mxu0
    %v530 = vadd.f32 %v244, %v529
    %v531 = vpop.f32.mrb[0].mxu0
    %532 = vmatprep.mubr.f32.mxu0 0.0
    %533 = vmatmul.mubr.f32.gmra.mrb[0].mxu0 %v323
    %v534 = vpop.f32.mrb[0].mxu0
    %v535 = vadd.f32 %v244, %v534
    %v536 = vpop.f32.mrb[0].mxu0
    %537 = vmatprep.mubr.f32.mxu0 0.0
    %538 = vmatmul.mubr.f32.gmra.mrb[0].mxu0 %v326
    %v539 = vpop.f32.mrb[0].mxu0
    %v540 = vadd.f32 %v244, %v539
    %v541 = vpop.f32.mrb[0].mxu0
    %542 = vmatprep.mubr.f32.mxu0 0.0
    %543 = vmatmul.mubr.f32.gmra.mrb[0].mxu0 %v329
    %v544 = vpop.f32.mrb[0].mxu0
    %v545 = vadd.f32 %v244, %v544
    %v546 = vpop.f32.mrb[0].mxu0
    %547 = vmatprep.mubr.f32.mxu0 0.0
    %548 = vmatmul.mubr.f32.gmra.mrb[0].mxu0 %v332
    %v549 = vpop.f32.mrb[0].mxu0
    %v550 = vadd.f32 %v244, %v549
    %v551 = vpop.f32.mrb[0].mxu0
    %552 = vmatprep.mubr.f32.mxu0 0.0
    %553 = vmatmul.mubr.f32.gmra.mrb[0].mxu0 %v335
    %v554 = vpop.f32.mrb[0].mxu0
    %v555 = vadd.f32 %v244, %v554
    %v556 = vpop.f32.mrb[0].mxu0
    %557 = vmatprep.mubr.f32.mxu0 0.0
    %558 = vmatmul.mubr.f32.gmra.mrb[0].mxu0 %v338
    %v559 = vpop.f32.mrb[0].mxu0
    %v560 = vadd.f32 %v244, %v559
    %v561 = vpop.f32.mrb[0].mxu0
    %562 = vmatprep.mubr.f32.mxu0 0.0
    %563 = vmatmul.mubr.f32.gmra.mrb[0].mxu0 %v341
    %v564 = vpop.f32.mrb[0].mxu0
    %v565 = vadd.f32 %v244, %v564
    %v566 = vpop.f32.mrb[0].mxu0
    %567 = vdwg.mxu0
    %v568 = vmax.f32 %v410, 0.0
    %v569 = vmax.f32 %v415, 0.0
    %v570 = vmax.f32 %v420, 0.0
    %v571 = vmax.f32 %v425, 0.0
    %v572 = vmax.f32 %v430, 0.0
    %v573 = vmax.f32 %v435, 0.0
    %v574 = vmax.f32 %v440, 0.0
    %v575 = vmax.f32 %v445, 0.0
    %v576 = vmax.f32 %v450, 0.0
    %v577 = vmax.f32 %v455, 0.0
    %v578 = vmax.f32 %v460, 0.0
    %v579 = vmax.f32 %v465, 0.0
    %v580 = vmax.f32 %v470, 0.0
    %v581 = vmax.f32 %v475, 0.0
    %v582 = vmax.f32 %v480, 0.0
    %v583 = vmax.f32 %v485, 0.0
    %v584 = vmax.f32 %v490, 0.0
    %v585 = vmax.f32 %v495, 0.0
    %v586 = vmax.f32 %v500, 0.0
    %v587 = vmax.f32 %v505, 0.0
    %v588 = vmax.f32 %v510, 0.0
    %v589 = vmax.f32 %v515, 0.0
    %v590 = vmax.f32 %v520, 0.0
    %v591 = vmax.f32 %v525, 0.0
    %v592 = vmax.f32 %v530, 0.0
    %v593 = vmax.f32 %v535, 0.0
    %v594 = vmax.f32 %v540, 0.0
    %v595 = vmax.f32 %v545, 0.0
    %v596 = vmax.f32 %v550, 0.0
    %v597 = vmax.f32 %v555, 0.0
    %v598 = vmax.f32 %v560, 0.0
    %v599 = vmax.f32 %v565, 0.0
    %v600 = vld [vmem:[#allocation8] sm:$0xff]
    %v601 = vld [vmem:[#allocation8 + $0x8] sm:$0xff]
    %v602 = vld [vmem:[#allocation8 + $0x10] sm:$0xff]
    %v603 = vld [vmem:[#allocation8 + $0x18] sm:$0xff]
    %v604 = vld [vmem:[#allocation8 + $0x20] sm:$0xff]
    %v605 = vld [vmem:[#allocation8 + $0x28] sm:$0xff]
    %v606 = vld [vmem:[#allocation8 + $0x30] sm:$0xff]
    %v607 = vld [vmem:[#allocation8 + $0x38] sm:$0xff]
    %v608 = vld [vmem:[#allocation9] sm:$0x1]
    %v610 = vlaneseq
    %v611 = vshrl.u32 %v610, 7
    %v612 = vsub.s32 0, %v611
    %v613 = vrot.slane %v608, %v612
    %vm615 = vcmask 523264
    %v617 = vsel %vm615, %v568, 0
    %v620 = vsel %vm615, %v569, 0
    %v623 = vsel %vm615, %v570, 0
    %v626 = vsel %vm615, %v571, 0
    %v629 = vsel %vm615, %v572, 0
    %v632 = vsel %vm615, %v573, 0
    %v635 = vsel %vm615, %v574, 0
    %v638 = vsel %vm615, %v575, 0
    %v641 = vsel %vm615, %v576, 0
    %v644 = vsel %vm615, %v577, 0
    %v647 = vsel %vm615, %v578, 0
    %v650 = vsel %vm615, %v579, 0
    %v653 = vsel %vm615, %v580, 0
    %v656 = vsel %vm615, %v581, 0
    %v659 = vsel %vm615, %v582, 0
    %v662 = vsel %vm615, %v583, 0
    %v665 = vsel %vm615, %v584, 0
    %v668 = vsel %vm615, %v585, 0
    %v671 = vsel %vm615, %v586, 0
    %v674 = vsel %vm615, %v587, 0
    %v677 = vsel %vm615, %v588, 0
    %v680 = vsel %vm615, %v589, 0
    %v683 = vsel %vm615, %v590, 0
    %v686 = vsel %vm615, %v591, 0
    %v689 = vsel %vm615, %v592, 0
    %v692 = vsel %vm615, %v593, 0
    %v695 = vsel %vm615, %v594, 0
    %v698 = vsel %vm615, %v595, 0
    %v701 = vsel %vm615, %v596, 0
    %v704 = vsel %vm615, %v597, 0
    %v707 = vsel %vm615, %v598, 0
    %v710 = vsel %vm615, %v599, 0
    %712 = vmatprep.subr.mxu0 0.0
    %713 = vmatpush1.msra.mxu0 %v600
    %714 = vmatprep.subr.mxu0 0.0
    %715 = vmatpush1.msra.mxu0 %v601
    %716 = vmatprep.subr.mxu0 0.0
    %717 = vmatpush1.msra.mxu0 %v602
    %718 = vmatprep.subr.mxu0 0.0
    %719 = vmatpush1.msra.mxu0 %v603
    %720 = vmatprep.subr.mxu0 0.0
    %721 = vmatpush1.msra.mxu0 %v604
    %722 = vmatprep.subr.mxu0 0.0
    %723 = vmatpush1.msra.mxu0 %v605
    %724 = vmatprep.subr.mxu0 0.0
    %725 = vmatpush1.msra.mxu0 %v606
    %726 = vmatprep.subr.mxu0 0.0
    %727 = vmatpush1.msra.mxu0 %v607
    %728 = vmatprep.subr.mxu0 0.0
    %729 = vmatpush1.msra.mxu0 0.0
    %730 = vmatprep.subr.mxu0 0.0
    %731 = vmatpush1.msra.mxu0 0.0
    %732 = vmatprep.subr.mxu0 0.0
    %733 = vmatpush1.msra.mxu0 0.0
    %734 = vmatprep.subr.mxu0 0.0
    %735 = vmatpush1.msra.mxu0 0.0
    %736 = vmatprep.subr.mxu0 0.0
    %737 = vmatpush1.msra.mxu0 0.0
    %738 = vmatprep.subr.mxu0 0.0
    %739 = vmatpush1.msra.mxu0 0.0
    %740 = vmatprep.subr.mxu0 0.0
    %741 = vmatpush1.msra.mxu0 0.0
    %742 = vmatprep.subr.mxu0 0.0
    %743 = vmatpush1.msra.mxu0 0.0
    %744 = vmatprep.subr.mxu0 0.0
    %745 = vmatpush1.msra.mxu0 0.0
    %746 = vmatprep.subr.mxu0 0.0
    %747 = vmatpush1.msra.mxu0 0.0
    %748 = vmatprep.subr.mxu0 0.0
    %749 = vmatpush1.msra.mxu0 0.0
    %750 = vmatprep.subr.mxu0 0.0
    %751 = vmatpush1.msra.mxu0 0.0
    %752 = vmatprep.subr.mxu0 0.0
    %753 = vmatpush1.msra.mxu0 0.0
    %754 = vmatprep.subr.mxu0 0.0
    %755 = vmatpush1.msra.mxu0 0.0
    %756 = vmatprep.subr.mxu0 0.0
    %757 = vmatpush1.msra.mxu0 0.0
    %758 = vmatprep.subr.mxu0 0.0
    %759 = vmatpush1.msra.mxu0 0.0
    %760 = vmatprep.subr.mxu0 0.0
    %761 = vmatpush1.msra.mxu0 0.0
    %762 = vmatprep.subr.mxu0 0.0
    %763 = vmatpush1.msra.mxu0 0.0
    %764 = vmatprep.subr.mxu0 0.0
    %765 = vmatpush1.msra.mxu0 0.0
    %766 = vmatprep.subr.mxu0 0.0
    %767 = vmatpush1.msra.mxu0 0.0
    %768 = vmatprep.subr.mxu0 0.0
    %769 = vmatpush1.msra.mxu0 0.0
    %770 = vmatprep.subr.mxu0 0.0
    %771 = vmatpush1.msra.mxu0 0.0
    %772 = vmatprep.subr.mxu0 0.0
    %773 = vmatpush1.msra.mxu0 0.0
    %774 = vmatprep.subr.mxu0 0.0
    %775 = vmatpush1.msra.mxu0 0.0
    %776 = vmatprep.mubr.f32.mxu0 0.0
    %777 = vmatmul.mubr.f32.gmra.mrb[0].mxu0 %v617
    %v778 = vpop.f32.mrb[0].mxu0
    %v779 = vadd.f32 %v613, %v778
    %v780 = vpop.f32.mrb[0].mxu0
    %781 = vmatprep.mubr.f32.mxu0 0.0
    %782 = vmatmul.mubr.f32.gmra.mrb[0].mxu0 %v620
    %v783 = vpop.f32.mrb[0].mxu0
    %v784 = vadd.f32 %v613, %v783
    %v785 = vpop.f32.mrb[0].mxu0
    %786 = vmatprep.mubr.f32.mxu0 0.0
    %787 = vmatmul.mubr.f32.gmra.mrb[0].mxu0 %v623
    %v788 = vpop.f32.mrb[0].mxu0
    %v789 = vadd.f32 %v613, %v788
    %v790 = vpop.f32.mrb[0].mxu0
    %791 = vmatprep.mubr.f32.mxu0 0.0
    %792 = vmatmul.mubr.f32.gmra.mrb[0].mxu0 %v626
    %v793 = vpop.f32.mrb[0].mxu0
    %v794 = vadd.f32 %v613, %v793
    %v795 = vpop.f32.mrb[0].mxu0
    %796 = vmatprep.mubr.f32.mxu0 0.0
    %797 = vmatmul.mubr.f32.gmra.mrb[0].mxu0 %v629
    %v798 = vpop.f32.mrb[0].mxu0
    %v799 = vadd.f32 %v613, %v798
    %v800 = vpop.f32.mrb[0].mxu0
    %801 = vmatprep.mubr.f32.mxu0 0.0
    %802 = vmatmul.mubr.f32.gmra.mrb[0].mxu0 %v632
    %v803 = vpop.f32.mrb[0].mxu0
    %v804 = vadd.f32 %v613, %v803
    %v805 = vpop.f32.mrb[0].mxu0
    %806 = vmatprep.mubr.f32.mxu0 0.0
    %807 = vmatmul.mubr.f32.gmra.mrb[0].mxu0 %v635
    %v808 = vpop.f32.mrb[0].mxu0
    %v809 = vadd.f32 %v613, %v808
    %v810 = vpop.f32.mrb[0].mxu0
    %811 = vmatprep.mubr.f32.mxu0 0.0
    %812 = vmatmul.mubr.f32.gmra.mrb[0].mxu0 %v638
    %v813 = vpop.f32.mrb[0].mxu0
    %v814 = vadd.f32 %v613, %v813
    %v815 = vpop.f32.mrb[0].mxu0
    %816 = vmatprep.mubr.f32.mxu0 0.0
    %817 = vmatmul.mubr.f32.gmra.mrb[0].mxu0 %v641
    %v818 = vpop.f32.mrb[0].mxu0
    %v819 = vadd.f32 %v613, %v818
    %v820 = vpop.f32.mrb[0].mxu0
    %821 = vmatprep.mubr.f32.mxu0 0.0
    %822 = vmatmul.mubr.f32.gmra.mrb[0].mxu0 %v644
    %v823 = vpop.f32.mrb[0].mxu0
    %v824 = vadd.f32 %v613, %v823
    %v825 = vpop.f32.mrb[0].mxu0
    %826 = vmatprep.mubr.f32.mxu0 0.0
    %827 = vmatmul.mubr.f32.gmra.mrb[0].mxu0 %v647
    %v828 = vpop.f32.mrb[0].mxu0
    %v829 = vadd.f32 %v613, %v828
    %v830 = vpop.f32.mrb[0].mxu0
    %831 = vmatprep.mubr.f32.mxu0 0.0
    %832 = vmatmul.mubr.f32.gmra.mrb[0].mxu0 %v650
    %v833 = vpop.f32.mrb[0].mxu0
    %v834 = vadd.f32 %v613, %v833
    %v835 = vpop.f32.mrb[0].mxu0
    %836 = vmatprep.mubr.f32.mxu0 0.0
    %837 = vmatmul.mubr.f32.gmra.mrb[0].mxu0 %v653
    %v838 = vpop.f32.mrb[0].mxu0
    %v839 = vadd.f32 %v613, %v838
    %v840 = vpop.f32.mrb[0].mxu0
    %841 = vmatprep.mubr.f32.mxu0 0.0
    %842 = vmatmul.mubr.f32.gmra.mrb[0].mxu0 %v656
    %v843 = vpop.f32.mrb[0].mxu0
    %v844 = vadd.f32 %v613, %v843
    %v845 = vpop.f32.mrb[0].mxu0
    %846 = vmatprep.mubr.f32.mxu0 0.0
    %847 = vmatmul.mubr.f32.gmra.mrb[0].mxu0 %v659
    %v848 = vpop.f32.mrb[0].mxu0
    %v849 = vadd.f32 %v613, %v848
    %v850 = vpop.f32.mrb[0].mxu0
    %851 = vmatprep.mubr.f32.mxu0 0.0
    %852 = vmatmul.mubr.f32.gmra.mrb[0].mxu0 %v662
    %v853 = vpop.f32.mrb[0].mxu0
    %v854 = vadd.f32 %v613, %v853
    %v855 = vpop.f32.mrb[0].mxu0
    %856 = vmatprep.mubr.f32.mxu0 0.0
    %857 = vmatmul.mubr.f32.gmra.mrb[0].mxu0 %v665
    %v858 = vpop.f32.mrb[0].mxu0
    %v859 = vadd.f32 %v613, %v858
    %v860 = vpop.f32.mrb[0].mxu0
    %861 = vmatprep.mubr.f32.mxu0 0.0
    %862 = vmatmul.mubr.f32.gmra.mrb[0].mxu0 %v668
    %v863 = vpop.f32.mrb[0].mxu0
    %v864 = vadd.f32 %v613, %v863
    %v865 = vpop.f32.mrb[0].mxu0
    %866 = vmatprep.mubr.f32.mxu0 0.0
    %867 = vmatmul.mubr.f32.gmra.mrb[0].mxu0 %v671
    %v868 = vpop.f32.mrb[0].mxu0
    %v869 = vadd.f32 %v613, %v868
    %v870 = vpop.f32.mrb[0].mxu0
    %871 = vmatprep.mubr.f32.mxu0 0.0
    %872 = vmatmul.mubr.f32.gmra.mrb[0].mxu0 %v674
    %v873 = vpop.f32.mrb[0].mxu0
    %v874 = vadd.f32 %v613, %v873
    %v875 = vpop.f32.mrb[0].mxu0
    %876 = vmatprep.mubr.f32.mxu0 0.0
    %877 = vmatmul.mubr.f32.gmra.mrb[0].mxu0 %v677
    %v878 = vpop.f32.mrb[0].mxu0
    %v879 = vadd.f32 %v613, %v878
    %v880 = vpop.f32.mrb[0].mxu0
    %881 = vmatprep.mubr.f32.mxu0 0.0
    %882 = vmatmul.mubr.f32.gmra.mrb[0].mxu0 %v680
    %v883 = vpop.f32.mrb[0].mxu0
    %v884 = vadd.f32 %v613, %v883
    %v885 = vpop.f32.mrb[0].mxu0
    %886 = vmatprep.mubr.f32.mxu0 0.0
    %887 = vmatmul.mubr.f32.gmra.mrb[0].mxu0 %v683
    %v888 = vpop.f32.mrb[0].mxu0
    %v889 = vadd.f32 %v613, %v888
    %v890 = vpop.f32.mrb[0].mxu0
    %891 = vmatprep.mubr.f32.mxu0 0.0
    %892 = vmatmul.mubr.f32.gmra.mrb[0].mxu0 %v686
    %v893 = vpop.f32.mrb[0].mxu0
    %v894 = vadd.f32 %v613, %v893
    %v895 = vpop.f32.mrb[0].mxu0
    %896 = vmatprep.mubr.f32.mxu0 0.0
    %897 = vmatmul.mubr.f32.gmra.mrb[0].mxu0 %v689
    %v898 = vpop.f32.mrb[0].mxu0
    %v899 = vadd.f32 %v613, %v898
    %v900 = vpop.f32.mrb[0].mxu0
    %901 = vmatprep.mubr.f32.mxu0 0.0
    %902 = vmatmul.mubr.f32.gmra.mrb[0].mxu0 %v692
    %v903 = vpop.f32.mrb[0].mxu0
    %v904 = vadd.f32 %v613, %v903
    %v905 = vpop.f32.mrb[0].mxu0
    %906 = vmatprep.mubr.f32.mxu0 0.0
    %907 = vmatmul.mubr.f32.gmra.mrb[0].mxu0 %v695
    %v908 = vpop.f32.mrb[0].mxu0
    %v909 = vadd.f32 %v613, %v908
    %v910 = vpop.f32.mrb[0].mxu0
    %911 = vmatprep.mubr.f32.mxu0 0.0
    %912 = vmatmul.mubr.f32.gmra.mrb[0].mxu0 %v698
    %v913 = vpop.f32.mrb[0].mxu0
    %v914 = vadd.f32 %v613, %v913
    %v915 = vpop.f32.mrb[0].mxu0
    %916 = vmatprep.mubr.f32.mxu0 0.0
    %917 = vmatmul.mubr.f32.gmra.mrb[0].mxu0 %v701
    %v918 = vpop.f32.mrb[0].mxu0
    %v919 = vadd.f32 %v613, %v918
    %v920 = vpop.f32.mrb[0].mxu0
    %921 = vmatprep.mubr.f32.mxu0 0.0
    %922 = vmatmul.mubr.f32.gmra.mrb[0].mxu0 %v704
    %v923 = vpop.f32.mrb[0].mxu0
    %v924 = vadd.f32 %v613, %v923
    %v925 = vpop.f32.mrb[0].mxu0
    %926 = vmatprep.mubr.f32.mxu0 0.0
    %927 = vmatmul.mubr.f32.gmra.mrb[0].mxu0 %v707
    %v928 = vpop.f32.mrb[0].mxu0
    %v929 = vadd.f32 %v613, %v928
    %v930 = vpop.f32.mrb[0].mxu0
    %931 = vmatprep.mubr.f32.mxu0 0.0
    %932 = vmatmul.mubr.f32.gmra.mrb[0].mxu0 %v710
    %v933 = vpop.f32.mrb[0].mxu0
    %v934 = vadd.f32 %v613, %v933
    %v935 = vpop.f32.mrb[0].mxu0
    %936 = vdwg.mxu0
    %v937 = vmax.f32 %v779, 0.0
    %v938 = vmax.f32 %v784, 0.0
    %v939 = vmax.f32 %v789, 0.0
    %v940 = vmax.f32 %v794, 0.0
    %v941 = vmax.f32 %v799, 0.0
    %v942 = vmax.f32 %v804, 0.0
    %v943 = vmax.f32 %v809, 0.0
    %v944 = vmax.f32 %v814, 0.0
    %v945 = vmax.f32 %v819, 0.0
    %v946 = vmax.f32 %v824, 0.0
    %v947 = vmax.f32 %v829, 0.0
    %v948 = vmax.f32 %v834, 0.0
    %v949 = vmax.f32 %v839, 0.0
    %v950 = vmax.f32 %v844, 0.0
    %v951 = vmax.f32 %v849, 0.0
    %v952 = vmax.f32 %v854, 0.0
    %v953 = vmax.f32 %v859, 0.0
    %v954 = vmax.f32 %v864, 0.0
    %v955 = vmax.f32 %v869, 0.0
    %v956 = vmax.f32 %v874, 0.0
    %v957 = vmax.f32 %v879, 0.0
    %v958 = vmax.f32 %v884, 0.0
    %v959 = vmax.f32 %v889, 0.0
    %v960 = vmax.f32 %v894, 0.0
    %v961 = vmax.f32 %v899, 0.0
    %v962 = vmax.f32 %v904, 0.0
    %v963 = vmax.f32 %v909, 0.0
    %v964 = vmax.f32 %v914, 0.0
    %v965 = vmax.f32 %v919, 0.0
    %v966 = vmax.f32 %v924, 0.0
    %v967 = vmax.f32 %v929, 0.0
    %v968 = vmax.f32 %v934, 0.0
    %v969 = vld [vmem:[#allocation11] sm:$0xff]
    %v970 = vld [vmem:[#allocation11 + $0x8] sm:$0xff]
    %v971 = vld [vmem:[#allocation11 + $0x10] sm:$0xff]
    %v972 = vld [vmem:[#allocation11 + $0x18] sm:$0xff]
    %v973 = vld [vmem:[#allocation11 + $0x20] sm:$0xff]
    %v974 = vld [vmem:[#allocation11 + $0x28] sm:$0xff]
    %v975 = vld [vmem:[#allocation11 + $0x30] sm:$0xff]
    %v976 = vld [vmem:[#allocation11 + $0x38] sm:$0xff]
    %v977 = vld [vmem:[#allocation11 + $0x40] sm:$0xff]
    %v978 = vld [vmem:[#allocation11 + $0x48] sm:$0xff]
    %v979 = vld [vmem:[#allocation11 + $0x50] sm:$0xff]
    %v980 = vld [vmem:[#allocation11 + $0x58] sm:$0xff]
    %v981 = vld [vmem:[#allocation11 + $0x60] sm:$0xff]
    %v982 = vld [vmem:[#allocation11 + $0x68] sm:$0xff]
    %v983 = vld [vmem:[#allocation11 + $0x70] sm:$0xff]
    %v984 = vld [vmem:[#allocation11 + $0x78] sm:$0xff]
    %v985 = vld [vmem:[#allocation11 + $0x80] sm:$0xff]
    %v986 = vld [vmem:[#allocation11 + $0x88] sm:$0xff]
    %v987 = vld [vmem:[#allocation11 + $0x90] sm:$0xff]
    %v988 = vld [vmem:[#allocation11 + $0x98] sm:$0xff]
    %v989 = vld [vmem:[#allocation11 + $0xa0] sm:$0xff]
    %v990 = vld [vmem:[#allocation11 + $0xa8] sm:$0xff]
    %v991 = vld [vmem:[#allocation11 + $0xb0] sm:$0xff]
    %v992 = vld [vmem:[#allocation11 + $0xb8] sm:$0xff]
    %v993 = vld [vmem:[#allocation11 + $0xc0] sm:$0xff]
    %v994 = vld [vmem:[#allocation11 + $0xc8] sm:$0xff]
    %v995 = vld [vmem:[#allocation11 + $0xd0] sm:$0xff]
    %v996 = vld [vmem:[#allocation11 + $0xd8] sm:$0xff]
    %v997 = vld [vmem:[#allocation11 + $0xe0] sm:$0xff]
    %v998 = vld [vmem:[#allocation11 + $0xe8] sm:$0xff]
    %v999 = vld [vmem:[#allocation11 + $0xf0] sm:$0xff]
    %v1000 = vld [vmem:[#allocation11 + $0xf8] sm:$0xff]
    %v1001 = vld [vmem:[#allocation11 + $0x100] sm:$0xff]
    %v1002 = vld [vmem:[#allocation11 + $0x108] sm:$0xff]
    %v1003 = vld [vmem:[#allocation11 + $0x110] sm:$0xff]
    %v1004 = vld [vmem:[#allocation11 + $0x118] sm:$0xff]
    %v1005 = vld [vmem:[#allocation11 + $0x120] sm:$0xff]
    %v1006 = vld [vmem:[#allocation11 + $0x128] sm:$0xff]
    %v1007 = vld [vmem:[#allocation11 + $0x130] sm:$0xff]
    %v1008 = vld [vmem:[#allocation11 + $0x138] sm:$0xff]
    %v1009 = vld [vmem:[#allocation11 + $0x140] sm:$0xff]
    %v1010 = vld [vmem:[#allocation11 + $0x148] sm:$0xff]
    %v1011 = vld [vmem:[#allocation11 + $0x150] sm:$0xff]
    %v1012 = vld [vmem:[#allocation11 + $0x158] sm:$0xff]
    %v1013 = vld [vmem:[#allocation11 + $0x160] sm:$0xff]
    %v1014 = vld [vmem:[#allocation11 + $0x168] sm:$0xff]
    %v1015 = vld [vmem:[#allocation11 + $0x170] sm:$0xff]
    %v1016 = vld [vmem:[#allocation11 + $0x178] sm:$0xff]
    %v1017 = vld [vmem:[#allocation11 + $0x180] sm:$0xff]
    %v1018 = vld [vmem:[#allocation11 + $0x188] sm:$0xff]
    %v1019 = vld [vmem:[#allocation11 + $0x190] sm:$0xff]
    %v1020 = vld [vmem:[#allocation11 + $0x198] sm:$0xff]
    %v1021 = vld [vmem:[#allocation11 + $0x1a0] sm:$0xff]
    %v1022 = vld [vmem:[#allocation11 + $0x1a8] sm:$0xff]
    %v1023 = vld [vmem:[#allocation11 + $0x1b0] sm:$0xff]
    %v1024 = vld [vmem:[#allocation11 + $0x1b8] sm:$0xff]
    %v1025 = vld [vmem:[#allocation11 + $0x1c0] sm:$0xff]
    %v1026 = vld [vmem:[#allocation11 + $0x1c8] sm:$0xff]
    %v1027 = vld [vmem:[#allocation11 + $0x1d0] sm:$0xff]
    %v1028 = vld [vmem:[#allocation11 + $0x1d8] sm:$0xff]
    %v1029 = vld [vmem:[#allocation11 + $0x1e0] sm:$0xff]
    %v1030 = vld [vmem:[#allocation11 + $0x1e8] sm:$0xff]
    %v1031 = vld [vmem:[#allocation11 + $0x1f0] sm:$0xff]
    %v1032 = vld [vmem:[#allocation11 + $0x1f8] sm:$0xff]
    %v1033 = vld [vmem:[#allocation11 + $0x200] sm:$0xff]
    %v1034 = vld [vmem:[#allocation11 + $0x208] sm:$0xff]
    %v1035 = vld [vmem:[#allocation11 + $0x210] sm:$0xff]
    %v1036 = vld [vmem:[#allocation11 + $0x218] sm:$0xff]
    %v1037 = vld [vmem:[#allocation11 + $0x220] sm:$0xff]
    %v1038 = vld [vmem:[#allocation11 + $0x228] sm:$0xff]
    %v1039 = vld [vmem:[#allocation11 + $0x230] sm:$0xff]
    %v1040 = vld [vmem:[#allocation11 + $0x238] sm:$0xff]
    %v1041 = vld [vmem:[#allocation11 + $0x240] sm:$0xff]
    %v1042 = vld [vmem:[#allocation11 + $0x248] sm:$0xff]
    %v1043 = vld [vmem:[#allocation11 + $0x250] sm:$0xff]
    %v1044 = vld [vmem:[#allocation11 + $0x258] sm:$0xff]
    %v1045 = vld [vmem:[#allocation11 + $0x260] sm:$0xff]
    %v1046 = vld [vmem:[#allocation11 + $0x268] sm:$0xff]
    %v1047 = vld [vmem:[#allocation11 + $0x270] sm:$0xff]
    %v1048 = vld [vmem:[#allocation11 + $0x278] sm:$0xff]
    %v1049 = vld [vmem:[#allocation11 + $0x280] sm:$0xff]
    %v1050 = vld [vmem:[#allocation11 + $0x288] sm:$0xff]
    %v1051 = vld [vmem:[#allocation11 + $0x290] sm:$0xff]
    %v1052 = vld [vmem:[#allocation11 + $0x298] sm:$0xff]
    %v1053 = vld [vmem:[#allocation11 + $0x2a0] sm:$0xff]
    %v1054 = vld [vmem:[#allocation11 + $0x2a8] sm:$0xff]
    %v1055 = vld [vmem:[#allocation11 + $0x2b0] sm:$0xff]
    %v1056 = vld [vmem:[#allocation11 + $0x2b8] sm:$0xff]
    %v1057 = vld [vmem:[#allocation11 + $0x2c0] sm:$0xff]
    %v1058 = vld [vmem:[#allocation11 + $0x2c8] sm:$0xff]
    %v1059 = vld [vmem:[#allocation11 + $0x2d0] sm:$0xff]
    %v1060 = vld [vmem:[#allocation11 + $0x2d8] sm:$0xff]
    %v1061 = vld [vmem:[#allocation11 + $0x2e0] sm:$0xff]
    %v1062 = vld [vmem:[#allocation11 + $0x2e8] sm:$0xff]
    %v1063 = vld [vmem:[#allocation11 + $0x2f0] sm:$0xff]
    %v1064 = vld [vmem:[#allocation11 + $0x2f8] sm:$0xff]
    %v1065 = vld [vmem:[#allocation11 + $0x300] sm:$0xff]
    %v1066 = vld [vmem:[#allocation11 + $0x308] sm:$0xff]
    %v1067 = vld [vmem:[#allocation11 + $0x310] sm:$0xff]
    %v1068 = vld [vmem:[#allocation11 + $0x318] sm:$0xff]
    %v1069 = vld [vmem:[#allocation11 + $0x320] sm:$0xff]
    %v1070 = vld [vmem:[#allocation11 + $0x328] sm:$0xff]
    %v1071 = vld [vmem:[#allocation11 + $0x330] sm:$0xff]
    %v1072 = vld [vmem:[#allocation11 + $0x338] sm:$0xff]
    %v1073 = vld [vmem:[#allocation11 + $0x340] sm:$0xff]
    %v1074 = vld [vmem:[#allocation11 + $0x348] sm:$0xff]
    %v1075 = vld [vmem:[#allocation11 + $0x350] sm:$0xff]
    %v1076 = vld [vmem:[#allocation11 + $0x358] sm:$0xff]
    %v1077 = vld [vmem:[#allocation11 + $0x360] sm:$0xff]
    %v1078 = vld [vmem:[#allocation11 + $0x368] sm:$0xff]
    %v1079 = vld [vmem:[#allocation11 + $0x370] sm:$0xff]
    %v1080 = vld [vmem:[#allocation11 + $0x378] sm:$0xff]
    %v1081 = vld [vmem:[#allocation11 + $0x380] sm:$0xff]
    %v1082 = vld [vmem:[#allocation11 + $0x388] sm:$0xff]
    %v1083 = vld [vmem:[#allocation11 + $0x390] sm:$0xff]
    %v1084 = vld [vmem:[#allocation11 + $0x398] sm:$0xff]
    %v1085 = vld [vmem:[#allocation11 + $0x3a0] sm:$0xff]
    %v1086 = vld [vmem:[#allocation11 + $0x3a8] sm:$0xff]
    %v1087 = vld [vmem:[#allocation11 + $0x3b0] sm:$0xff]
    %v1088 = vld [vmem:[#allocation11 + $0x3b8] sm:$0xff]
    %v1089 = vld [vmem:[#allocation11 + $0x3c0] sm:$0xff]
    %v1090 = vld [vmem:[#allocation11 + $0x3c8] sm:$0xff]
    %v1091 = vld [vmem:[#allocation11 + $0x3d0] sm:$0xff]
    %v1092 = vld [vmem:[#allocation11 + $0x3d8] sm:$0xff]
    %v1093 = vld [vmem:[#allocation11 + $0x3e0] sm:$0xff]
    %v1094 = vld [vmem:[#allocation11 + $0x3e8] sm:$0xff]
    %v1095 = vld [vmem:[#allocation11 + $0x3f0] sm:$0xff]
    %v1096 = vld [vmem:[#allocation11 + $0x3f8] sm:$0xff]
    %v1097 = vld [vmem:[#allocation12] sm:$0xff]
    %v1099 = vlaneseq
    %v1100 = vshrl.u32 %v1099, 7
    %v1101 = vsub.s32 0, %v1100
    %v1102 = vrot.slane %v1097, %v1101
    %v1103 = vlaneseq
    %v1104 = vshrl.u32 %v1103, 7
    %v1105 = vsub.s32 1, %v1104
    %v1106 = vrot.slane %v1097, %v1105
    %v1107 = vlaneseq
    %v1108 = vshrl.u32 %v1107, 7
    %v1109 = vsub.s32 2, %v1108
    %v1110 = vrot.slane %v1097, %v1109
    %v1111 = vlaneseq
    %v1112 = vshrl.u32 %v1111, 7
    %v1113 = vsub.s32 3, %v1112
    %v1114 = vrot.slane %v1097, %v1113
    %v1115 = vlaneseq
    %v1116 = vshrl.u32 %v1115, 7
    %v1117 = vsub.s32 4, %v1116
    %v1118 = vrot.slane %v1097, %v1117
    %v1119 = vlaneseq
    %v1120 = vshrl.u32 %v1119, 7
    %v1121 = vsub.s32 5, %v1120
    %v1122 = vrot.slane %v1097, %v1121
    %v1123 = vlaneseq
    %v1124 = vshrl.u32 %v1123, 7
    %v1125 = vsub.s32 6, %v1124
    %v1126 = vrot.slane %v1097, %v1125
    %v1127 = vlaneseq
    %v1128 = vshrl.u32 %v1127, 7
    %v1129 = vsub.s32 7, %v1128
    %v1130 = vrot.slane %v1097, %v1129
    %1139 = vmatprep.subr.mxu0 %v970
    %1140 = vmatpush1.msra.mxu0 %v969
    %1141 = vmatprep.subr.mxu0 %v978
    %1142 = vmatpush1.msra.mxu0 %v977
    %1143 = vmatprep.subr.mxu0 %v986
    %1144 = vmatpush1.msra.mxu0 %v985
    %1145 = vmatprep.subr.mxu0 %v994
    %1146 = vmatpush1.msra.mxu0 %v993
    %1147 = vmatprep.subr.mxu0 %v1002
    %1148 = vmatpush1.msra.mxu0 %v1001
    %1149 = vmatprep.subr.mxu0 %v1010
    %1150 = vmatpush1.msra.mxu0 %v1009
    %1151 = vmatprep.subr.mxu0 %v1018
    %1152 = vmatpush1.msra.mxu0 %v1017
    %1153 = vmatprep.subr.mxu0 %v1026
    %1154 = vmatpush1.msra.mxu0 %v1025
    %1155 = vmatprep.subr.mxu0 %v1034
    %1156 = vmatpush1.msra.mxu0 %v1033
    %1157 = vmatprep.subr.mxu0 %v1042
    %1158 = vmatpush1.msra.mxu0 %v1041
    %1159 = vmatprep.subr.mxu0 %v1050
    %1160 = vmatpush1.msra.mxu0 %v1049
    %1161 = vmatprep.subr.mxu0 %v1058
    %1162 = vmatpush1.msra.mxu0 %v1057
    %1163 = vmatprep.subr.mxu0 %v1066
    %1164 = vmatpush1.msra.mxu0 %v1065
    %1165 = vmatprep.subr.mxu0 %v1074
    %1166 = vmatpush1.msra.mxu0 %v1073
    %1167 = vmatprep.subr.mxu0 %v1082
    %1168 = vmatpush1.msra.mxu0 %v1081
    %1169 = vmatprep.subr.mxu0 %v1090
    %1170 = vmatpush1.msra.mxu0 %v1089
    %1171 = vmatprep.subr.mxu0 0.0
    %1172 = vmatpush1.msra.mxu0 0.0
    %1173 = vmatprep.subr.mxu0 0.0
    %1174 = vmatpush1.msra.mxu0 0.0
    %1175 = vmatprep.subr.mxu0 0.0
    %1176 = vmatpush1.msra.mxu0 0.0
    %1177 = vmatprep.subr.mxu0 0.0
    %1178 = vmatpush1.msra.mxu0 0.0
    %1179 = vmatprep.subr.mxu0 0.0
    %1180 = vmatpush1.msra.mxu0 0.0
    %1181 = vmatprep.subr.mxu0 0.0
    %1182 = vmatpush1.msra.mxu0 0.0
    %1183 = vmatprep.subr.mxu0 0.0
    %1184 = vmatpush1.msra.mxu0 0.0
    %1185 = vmatprep.subr.mxu0 0.0
    %1186 = vmatpush1.msra.mxu0 0.0
    %1187 = vmatprep.subr.mxu0 0.0
    %1188 = vmatpush1.msra.mxu0 0.0
    %1189 = vmatprep.subr.mxu0 0.0
    %1190 = vmatpush1.msra.mxu0 0.0
    %1191 = vmatprep.subr.mxu0 0.0
    %1192 = vmatpush1.msra.mxu0 0.0
    %1193 = vmatprep.subr.mxu0 0.0
    %1194 = vmatpush1.msra.mxu0 0.0
    %1195 = vmatprep.subr.mxu0 0.0
    %1196 = vmatpush1.msra.mxu0 0.0
    %1197 = vmatprep.subr.mxu0 0.0
    %1198 = vmatpush1.msra.mxu0 0.0
    %1199 = vmatprep.subr.mxu0 0.0
    %1200 = vmatpush1.msra.mxu0 0.0
    %1201 = vmatprep.subr.mxu0 0.0
    %1202 = vmatpush1.msra.mxu0 0.0
    %1203 = vmatprep.mubr.f32.mxu0 0.0
    %1204 = vmatmul.mubr.f32.gmra.mrb[0].mxu0 %v937
    %v1205 = vpop.f32.mrb[0].mxu0
    %v1206 = vadd.f32 %v1102, %v1205
    %v1207 = vpop.f32.mrb[0].mxu0
    %v1208 = vadd.f32 %v1106, %v1207
    %1209 = vmatprep.mubr.f32.mxu0 0.0
    %1210 = vmatmul.mubr.f32.gmra.mrb[0].mxu0 %v938
    %v1211 = vpop.f32.mrb[0].mxu0
    %v1212 = vadd.f32 %v1102, %v1211
    %v1213 = vpop.f32.mrb[0].mxu0
    %v1214 = vadd.f32 %v1106, %v1213
    %1215 = vmatprep.mubr.f32.mxu0 0.0
    %1216 = vmatmul.mubr.f32.gmra.mrb[0].mxu0 %v939
    %v1217 = vpop.f32.mrb[0].mxu0
    %v1218 = vadd.f32 %v1102, %v1217
    %v1219 = vpop.f32.mrb[0].mxu0
    %v1220 = vadd.f32 %v1106, %v1219
    %1221 = vmatprep.mubr.f32.mxu0 0.0
    %1222 = vmatmul.mubr.f32.gmra.mrb[0].mxu0 %v940
    %v1223 = vpop.f32.mrb[0].mxu0
    %v1224 = vadd.f32 %v1102, %v1223
    %v1225 = vpop.f32.mrb[0].mxu0
    %v1226 = vadd.f32 %v1106, %v1225
    %1227 = vmatprep.mubr.f32.mxu0 0.0
    %1228 = vmatmul.mubr.f32.gmra.mrb[0].mxu0 %v941
    %v1229 = vpop.f32.mrb[0].mxu0
    %v1230 = vadd.f32 %v1102, %v1229
    %v1231 = vpop.f32.mrb[0].mxu0
    %v1232 = vadd.f32 %v1106, %v1231
    %1233 = vmatprep.mubr.f32.mxu0 0.0
    %1234 = vmatmul.mubr.f32.gmra.mrb[0].mxu0 %v942
    %v1235 = vpop.f32.mrb[0].mxu0
    %v1236 = vadd.f32 %v1102, %v1235
    %v1237 = vpop.f32.mrb[0].mxu0
    %v1238 = vadd.f32 %v1106, %v1237
    %1239 = vmatprep.mubr.f32.mxu0 0.0
    %1240 = vmatmul.mubr.f32.gmra.mrb[0].mxu0 %v943
    %v1241 = vpop.f32.mrb[0].mxu0
    %v1242 = vadd.f32 %v1102, %v1241
    %v1243 = vpop.f32.mrb[0].mxu0
    %v1244 = vadd.f32 %v1106, %v1243
    %1245 = vmatprep.mubr.f32.mxu0 0.0
    %1246 = vmatmul.mubr.f32.gmra.mrb[0].mxu0 %v944
    %v1247 = vpop.f32.mrb[0].mxu0
    %v1248 = vadd.f32 %v1102, %v1247
    %v1249 = vpop.f32.mrb[0].mxu0
    %v1250 = vadd.f32 %v1106, %v1249
    %1251 = vmatprep.mubr.f32.mxu0 0.0
    %1252 = vmatmul.mubr.f32.gmra.mrb[0].mxu0 %v945
    %v1253 = vpop.f32.mrb[0].mxu0
    %v1254 = vadd.f32 %v1102, %v1253
    %v1255 = vpop.f32.mrb[0].mxu0
    %v1256 = vadd.f32 %v1106, %v1255
    %1257 = vmatprep.mubr.f32.mxu0 0.0
    %1258 = vmatmul.mubr.f32.gmra.mrb[0].mxu0 %v946
    %v1259 = vpop.f32.mrb[0].mxu0
    %v1260 = vadd.f32 %v1102, %v1259
    %v1261 = vpop.f32.mrb[0].mxu0
    %v1262 = vadd.f32 %v1106, %v1261
    %1263 = vmatprep.mubr.f32.mxu0 0.0
    %1264 = vmatmul.mubr.f32.gmra.mrb[0].mxu0 %v947
    %v1265 = vpop.f32.mrb[0].mxu0
    %v1266 = vadd.f32 %v1102, %v1265
    %v1267 = vpop.f32.mrb[0].mxu0
    %v1268 = vadd.f32 %v1106, %v1267
    %1269 = vmatprep.mubr.f32.mxu0 0.0
    %1270 = vmatmul.mubr.f32.gmra.mrb[0].mxu0 %v948
    %v1271 = vpop.f32.mrb[0].mxu0
    %v1272 = vadd.f32 %v1102, %v1271
    %v1273 = vpop.f32.mrb[0].mxu0
    %v1274 = vadd.f32 %v1106, %v1273
    %1275 = vmatprep.mubr.f32.mxu0 0.0
    %1276 = vmatmul.mubr.f32.gmra.mrb[0].mxu0 %v949
    %v1277 = vpop.f32.mrb[0].mxu0
    %v1278 = vadd.f32 %v1102, %v1277
    %v1279 = vpop.f32.mrb[0].mxu0
    %v1280 = vadd.f32 %v1106, %v1279
    %1281 = vmatprep.mubr.f32.mxu0 0.0
    %1282 = vmatmul.mubr.f32.gmra.mrb[0].mxu0 %v950
    %v1283 = vpop.f32.mrb[0].mxu0
    %v1284 = vadd.f32 %v1102, %v1283
    %v1285 = vpop.f32.mrb[0].mxu0
    %v1286 = vadd.f32 %v1106, %v1285
    %1287 = vmatprep.mubr.f32.mxu0 0.0
    %1288 = vmatmul.mubr.f32.gmra.mrb[0].mxu0 %v951
    %v1289 = vpop.f32.mrb[0].mxu0
    %v1290 = vadd.f32 %v1102, %v1289
    %v1291 = vpop.f32.mrb[0].mxu0
    %v1292 = vadd.f32 %v1106, %v1291
    %1293 = vmatprep.mubr.f32.mxu0 0.0
    %1294 = vmatmul.mubr.f32.gmra.mrb[0].mxu0 %v952
    %v1295 = vpop.f32.mrb[0].mxu0
    %v1296 = vadd.f32 %v1102, %v1295
    %v1297 = vpop.f32.mrb[0].mxu0
    %v1298 = vadd.f32 %v1106, %v1297
    %1299 = vmatprep.mubr.f32.mxu0 0.0
    %1300 = vmatmul.mubr.f32.gmra.mrb[0].mxu0 %v953
    %v1301 = vpop.f32.mrb[0].mxu0
    %v1302 = vadd.f32 %v1102, %v1301
    %v1303 = vpop.f32.mrb[0].mxu0
    %v1304 = vadd.f32 %v1106, %v1303
    %1305 = vmatprep.mubr.f32.mxu0 0.0
    %1306 = vmatmul.mubr.f32.gmra.mrb[0].mxu0 %v954
    %v1307 = vpop.f32.mrb[0].mxu0
    %v1308 = vadd.f32 %v1102, %v1307
    %v1309 = vpop.f32.mrb[0].mxu0
    %v1310 = vadd.f32 %v1106, %v1309
    %1311 = vmatprep.mubr.f32.mxu0 0.0
    %1312 = vmatmul.mubr.f32.gmra.mrb[0].mxu0 %v955
    %v1313 = vpop.f32.mrb[0].mxu0
    %v1314 = vadd.f32 %v1102, %v1313
    %v1315 = vpop.f32.mrb[0].mxu0
    %v1316 = vadd.f32 %v1106, %v1315
    %1317 = vmatprep.mubr.f32.mxu0 0.0
    %1318 = vmatmul.mubr.f32.gmra.mrb[0].mxu0 %v956
    %v1319 = vpop.f32.mrb[0].mxu0
    %v1320 = vadd.f32 %v1102, %v1319
    %v1321 = vpop.f32.mrb[0].mxu0
    %v1322 = vadd.f32 %v1106, %v1321
    %1323 = vmatprep.mubr.f32.mxu0 0.0
    %1324 = vmatmul.mubr.f32.gmra.mrb[0].mxu0 %v957
    %v1325 = vpop.f32.mrb[0].mxu0
    %v1326 = vadd.f32 %v1102, %v1325
    %v1327 = vpop.f32.mrb[0].mxu0
    %v1328 = vadd.f32 %v1106, %v1327
    %1329 = vmatprep.mubr.f32.mxu0 0.0
    %1330 = vmatmul.mubr.f32.gmra.mrb[0].mxu0 %v958
    %v1331 = vpop.f32.mrb[0].mxu0
    %v1332 = vadd.f32 %v1102, %v1331
    %v1333 = vpop.f32.mrb[0].mxu0
    %v1334 = vadd.f32 %v1106, %v1333
    %1335 = vmatprep.mubr.f32.mxu0 0.0
    %1336 = vmatmul.mubr.f32.gmra.mrb[0].mxu0 %v959
    %v1337 = vpop.f32.mrb[0].mxu0
    %v1338 = vadd.f32 %v1102, %v1337
    %v1339 = vpop.f32.mrb[0].mxu0
    %v1340 = vadd.f32 %v1106, %v1339
    %1341 = vmatprep.mubr.f32.mxu0 0.0
    %1342 = vmatmul.mubr.f32.gmra.mrb[0].mxu0 %v960
    %v1343 = vpop.f32.mrb[0].mxu0
    %v1344 = vadd.f32 %v1102, %v1343
    %v1345 = vpop.f32.mrb[0].mxu0
    %v1346 = vadd.f32 %v1106, %v1345
    %1347 = vmatprep.mubr.f32.mxu0 0.0
    %1348 = vmatmul.mubr.f32.gmra.mrb[0].mxu0 %v961
    %v1349 = vpop.f32.mrb[0].mxu0
    %v1350 = vadd.f32 %v1102, %v1349
    %v1351 = vpop.f32.mrb[0].mxu0
    %v1352 = vadd.f32 %v1106, %v1351
    %1353 = vmatprep.mubr.f32.mxu0 0.0
    %1354 = vmatmul.mubr.f32.gmra.mrb[0].mxu0 %v962
    %v1355 = vpop.f32.mrb[0].mxu0
    %v1356 = vadd.f32 %v1102, %v1355
    %v1357 = vpop.f32.mrb[0].mxu0
    %v1358 = vadd.f32 %v1106, %v1357
    %1359 = vmatprep.mubr.f32.mxu0 0.0
    %1360 = vmatmul.mubr.f32.gmra.mrb[0].mxu0 %v963
    %v1361 = vpop.f32.mrb[0].mxu0
    %v1362 = vadd.f32 %v1102, %v1361
    %v1363 = vpop.f32.mrb[0].mxu0
    %v1364 = vadd.f32 %v1106, %v1363
    %1365 = vmatprep.mubr.f32.mxu0 0.0
    %1366 = vmatmul.mubr.f32.gmra.mrb[0].mxu0 %v964
    %v1367 = vpop.f32.mrb[0].mxu0
    %v1368 = vadd.f32 %v1102, %v1367
    %v1369 = vpop.f32.mrb[0].mxu0
    %v1370 = vadd.f32 %v1106, %v1369
    %1371 = vmatprep.mubr.f32.mxu0 0.0
    %1372 = vmatmul.mubr.f32.gmra.mrb[0].mxu0 %v965
    %v1373 = vpop.f32.mrb[0].mxu0
    %v1374 = vadd.f32 %v1102, %v1373
    %v1375 = vpop.f32.mrb[0].mxu0
    %v1376 = vadd.f32 %v1106, %v1375
    %1377 = vmatprep.mubr.f32.mxu0 0.0
    %1378 = vmatmul.mubr.f32.gmra.mrb[0].mxu0 %v966
    %v1379 = vpop.f32.mrb[0].mxu0
    %v1380 = vadd.f32 %v1102, %v1379
    %v1381 = vpop.f32.mrb[0].mxu0
    %v1382 = vadd.f32 %v1106, %v1381
    %1383 = vmatprep.mubr.f32.mxu0 0.0
    %1384 = vmatmul.mubr.f32.gmra.mrb[0].mxu0 %v967
    %v1385 = vpop.f32.mrb[0].mxu0
    %v1386 = vadd.f32 %v1102, %v1385
    %v1387 = vpop.f32.mrb[0].mxu0
    %v1388 = vadd.f32 %v1106, %v1387
    %1389 = vmatprep.mubr.f32.mxu0 0.0
    %1390 = vmatmul.mubr.f32.gmra.mrb[0].mxu0 %v968
    %v1391 = vpop.f32.mrb[0].mxu0
    %v1392 = vadd.f32 %v1102, %v1391
    %v1393 = vpop.f32.mrb[0].mxu0
    %v1394 = vadd.f32 %v1106, %v1393
    %1395 = vdwg.mxu0
    %1396 = vmatprep.subr.mxu0 %v972
    %1397 = vmatpush1.msra.mxu0 %v971
    %1398 = vmatprep.subr.mxu0 %v980
    %1399 = vmatpush1.msra.mxu0 %v979
    %1400 = vmatprep.subr.mxu0 %v988
    %1401 = vmatpush1.msra.mxu0 %v987
    %1402 = vmatprep.subr.mxu0 %v996
    %1403 = vmatpush1.msra.mxu0 %v995
    %1404 = vmatprep.subr.mxu0 %v1004
    %1405 = vmatpush1.msra.mxu0 %v1003
    %1406 = vmatprep.subr.mxu0 %v1012
    %1407 = vmatpush1.msra.mxu0 %v1011
    %1408 = vmatprep.subr.mxu0 %v1020
    %1409 = vmatpush1.msra.mxu0 %v1019
    %1410 = vmatprep.subr.mxu0 %v1028
    %1411 = vmatpush1.msra.mxu0 %v1027
    %1412 = vmatprep.subr.mxu0 %v1036
    %1413 = vmatpush1.msra.mxu0 %v1035
    %1414 = vmatprep.subr.mxu0 %v1044
    %1415 = vmatpush1.msra.mxu0 %v1043
    %1416 = vmatprep.subr.mxu0 %v1052
    %1417 = vmatpush1.msra.mxu0 %v1051
    %1418 = vmatprep.subr.mxu0 %v1060
    %1419 = vmatpush1.msra.mxu0 %v1059
    %1420 = vmatprep.subr.mxu0 %v1068
    %1421 = vmatpush1.msra.mxu0 %v1067
    %1422 = vmatprep.subr.mxu0 %v1076
    %1423 = vmatpush1.msra.mxu0 %v1075
    %1424 = vmatprep.subr.mxu0 %v1084
    %1425 = vmatpush1.msra.mxu0 %v1083
    %1426 = vmatprep.subr.mxu0 %v1092
    %1427 = vmatpush1.msra.mxu0 %v1091
    %1428 = vmatprep.subr.mxu0 0.0
    %1429 = vmatpush1.msra.mxu0 0.0
    %1430 = vmatprep.subr.mxu0 0.0
    %1431 = vmatpush1.msra.mxu0 0.0
    %1432 = vmatprep.subr.mxu0 0.0
    %1433 = vmatpush1.msra.mxu0 0.0
    %1434 = vmatprep.subr.mxu0 0.0
    %1435 = vmatpush1.msra.mxu0 0.0
    %1436 = vmatprep.subr.mxu0 0.0
    %1437 = vmatpush1.msra.mxu0 0.0
    %1438 = vmatprep.subr.mxu0 0.0
    %1439 = vmatpush1.msra.mxu0 0.0
    %1440 = vmatprep.subr.mxu0 0.0
    %1441 = vmatpush1.msra.mxu0 0.0
    %1442 = vmatprep.subr.mxu0 0.0
    %1443 = vmatpush1.msra.mxu0 0.0
    %1444 = vmatprep.subr.mxu0 0.0
    %1445 = vmatpush1.msra.mxu0 0.0
    %1446 = vmatprep.subr.mxu0 0.0
    %1447 = vmatpush1.msra.mxu0 0.0
    %1448 = vmatprep.subr.mxu0 0.0
    %1449 = vmatpush1.msra.mxu0 0.0
    %1450 = vmatprep.subr.mxu0 0.0
    %1451 = vmatpush1.msra.mxu0 0.0
    %1452 = vmatprep.subr.mxu0 0.0
    %1453 = vmatpush1.msra.mxu0 0.0
    %1454 = vmatprep.subr.mxu0 0.0
    %1455 = vmatpush1.msra.mxu0 0.0
    %1456 = vmatprep.subr.mxu0 0.0
    %1457 = vmatpush1.msra.mxu0 0.0
    %1458 = vmatprep.subr.mxu0 0.0
    %1459 = vmatpush1.msra.mxu0 0.0
    %1460 = vmatprep.mubr.f32.mxu0 0.0
    %1461 = vmatmul.mubr.f32.gmra.mrb[0].mxu0 %v937
    %v1462 = vpop.f32.mrb[0].mxu0
    %v1463 = vadd.f32 %v1110, %v1462
    %v1464 = vpop.f32.mrb[0].mxu0
    %v1465 = vadd.f32 %v1114, %v1464
    %1466 = vmatprep.mubr.f32.mxu0 0.0
    %1467 = vmatmul.mubr.f32.gmra.mrb[0].mxu0 %v938
    %v1468 = vpop.f32.mrb[0].mxu0
    %v1469 = vadd.f32 %v1110, %v1468
    %v1470 = vpop.f32.mrb[0].mxu0
    %v1471 = vadd.f32 %v1114, %v1470
    %1472 = vmatprep.mubr.f32.mxu0 0.0
    %1473 = vmatmul.mubr.f32.gmra.mrb[0].mxu0 %v939
    %v1474 = vpop.f32.mrb[0].mxu0
    %v1475 = vadd.f32 %v1110, %v1474
    %v1476 = vpop.f32.mrb[0].mxu0
    %v1477 = vadd.f32 %v1114, %v1476
    %1478 = vmatprep.mubr.f32.mxu0 0.0
    %1479 = vmatmul.mubr.f32.gmra.mrb[0].mxu0 %v940
    %v1480 = vpop.f32.mrb[0].mxu0
    %v1481 = vadd.f32 %v1110, %v1480
    %v1482 = vpop.f32.mrb[0].mxu0
    %v1483 = vadd.f32 %v1114, %v1482
    %1484 = vmatprep.mubr.f32.mxu0 0.0
    %1485 = vmatmul.mubr.f32.gmra.mrb[0].mxu0 %v941
    %v1486 = vpop.f32.mrb[0].mxu0
    %v1487 = vadd.f32 %v1110, %v1486
    %v1488 = vpop.f32.mrb[0].mxu0
    %v1489 = vadd.f32 %v1114, %v1488
    %1490 = vmatprep.mubr.f32.mxu0 0.0
    %1491 = vmatmul.mubr.f32.gmra.mrb[0].mxu0 %v942
    %v1492 = vpop.f32.mrb[0].mxu0
    %v1493 = vadd.f32 %v1110, %v1492
    %v1494 = vpop.f32.mrb[0].mxu0
    %v1495 = vadd.f32 %v1114, %v1494
    %1496 = vmatprep.mubr.f32.mxu0 0.0
    %1497 = vmatmul.mubr.f32.gmra.mrb[0].mxu0 %v943
    %v1498 = vpop.f32.mrb[0].mxu0
    %v1499 = vadd.f32 %v1110, %v1498
    %v1500 = vpop.f32.mrb[0].mxu0
    %v1501 = vadd.f32 %v1114, %v1500
    %1502 = vmatprep.mubr.f32.mxu0 0.0
    %1503 = vmatmul.mubr.f32.gmra.mrb[0].mxu0 %v944
    %v1504 = vpop.f32.mrb[0].mxu0
    %v1505 = vadd.f32 %v1110, %v1504
    %v1506 = vpop.f32.mrb[0].mxu0
    %v1507 = vadd.f32 %v1114, %v1506
    %1508 = vmatprep.mubr.f32.mxu0 0.0
    %1509 = vmatmul.mubr.f32.gmra.mrb[0].mxu0 %v945
    %v1510 = vpop.f32.mrb[0].mxu0
    %v1511 = vadd.f32 %v1110, %v1510
    %v1512 = vpop.f32.mrb[0].mxu0
    %v1513 = vadd.f32 %v1114, %v1512
    %1514 = vmatprep.mubr.f32.mxu0 0.0
    %1515 = vmatmul.mubr.f32.gmra.mrb[0].mxu0 %v946
    %v1516 = vpop.f32.mrb[0].mxu0
    %v1517 = vadd.f32 %v1110, %v1516
    %v1518 = vpop.f32.mrb[0].mxu0
    %v1519 = vadd.f32 %v1114, %v1518
    %1520 = vmatprep.mubr.f32.mxu0 0.0
    %1521 = vmatmul.mubr.f32.gmra.mrb[0].mxu0 %v947
    %v1522 = vpop.f32.mrb[0].mxu0
    %v1523 = vadd.f32 %v1110, %v1522
    %v1524 = vpop.f32.mrb[0].mxu0
    %v1525 = vadd.f32 %v1114, %v1524
    %1526 = vmatprep.mubr.f32.mxu0 0.0
    %1527 = vmatmul.mubr.f32.gmra.mrb[0].mxu0 %v948
    %v1528 = vpop.f32.mrb[0].mxu0
    %v1529 = vadd.f32 %v1110, %v1528
    %v1530 = vpop.f32.mrb[0].mxu0
    %v1531 = vadd.f32 %v1114, %v1530
    %1532 = vmatprep.mubr.f32.mxu0 0.0
    %1533 = vmatmul.mubr.f32.gmra.mrb[0].mxu0 %v949
    %v1534 = vpop.f32.mrb[0].mxu0
    %v1535 = vadd.f32 %v1110, %v1534
    %v1536 = vpop.f32.mrb[0].mxu0
    %v1537 = vadd.f32 %v1114, %v1536
    %1538 = vmatprep.mubr.f32.mxu0 0.0
    %1539 = vmatmul.mubr.f32.gmra.mrb[0].mxu0 %v950
    %v1540 = vpop.f32.mrb[0].mxu0
    %v1541 = vadd.f32 %v1110, %v1540
    %v1542 = vpop.f32.mrb[0].mxu0
    %v1543 = vadd.f32 %v1114, %v1542
    %1544 = vmatprep.mubr.f32.mxu0 0.0
    %1545 = vmatmul.mubr.f32.gmra.mrb[0].mxu0 %v951
    %v1546 = vpop.f32.mrb[0].mxu0
    %v1547 = vadd.f32 %v1110, %v1546
    %v1548 = vpop.f32.mrb[0].mxu0
    %v1549 = vadd.f32 %v1114, %v1548
    %1550 = vmatprep.mubr.f32.mxu0 0.0
    %1551 = vmatmul.mubr.f32.gmra.mrb[0].mxu0 %v952
    %v1552 = vpop.f32.mrb[0].mxu0
    %v1553 = vadd.f32 %v1110, %v1552
    %v1554 = vpop.f32.mrb[0].mxu0
    %v1555 = vadd.f32 %v1114, %v1554
    %1556 = vmatprep.mubr.f32.mxu0 0.0
    %1557 = vmatmul.mubr.f32.gmra.mrb[0].mxu0 %v953
    %v1558 = vpop.f32.mrb[0].mxu0
    %v1559 = vadd.f32 %v1110, %v1558
    %v1560 = vpop.f32.mrb[0].mxu0
    %v1561 = vadd.f32 %v1114, %v1560
    %1562 = vmatprep.mubr.f32.mxu0 0.0
    %1563 = vmatmul.mubr.f32.gmra.mrb[0].mxu0 %v954
    %v1564 = vpop.f32.mrb[0].mxu0
    %v1565 = vadd.f32 %v1110, %v1564
    %v1566 = vpop.f32.mrb[0].mxu0
    %v1567 = vadd.f32 %v1114, %v1566
    %1568 = vmatprep.mubr.f32.mxu0 0.0
    %1569 = vmatmul.mubr.f32.gmra.mrb[0].mxu0 %v955
    %v1570 = vpop.f32.mrb[0].mxu0
    %v1571 = vadd.f32 %v1110, %v1570
    %v1572 = vpop.f32.mrb[0].mxu0
    %v1573 = vadd.f32 %v1114, %v1572
    %1574 = vmatprep.mubr.f32.mxu0 0.0
    %1575 = vmatmul.mubr.f32.gmra.mrb[0].mxu0 %v956
    %v1576 = vpop.f32.mrb[0].mxu0
    %v1577 = vadd.f32 %v1110, %v1576
    %v1578 = vpop.f32.mrb[0].mxu0
    %v1579 = vadd.f32 %v1114, %v1578
    %1580 = vmatprep.mubr.f32.mxu0 0.0
    %1581 = vmatmul.mubr.f32.gmra.mrb[0].mxu0 %v957
    %v1582 = vpop.f32.mrb[0].mxu0
    %v1583 = vadd.f32 %v1110, %v1582
    %v1584 = vpop.f32.mrb[0].mxu0
    %v1585 = vadd.f32 %v1114, %v1584
    %1586 = vmatprep.mubr.f32.mxu0 0.0
    %1587 = vmatmul.mubr.f32.gmra.mrb[0].mxu0 %v958
    %v1588 = vpop.f32.mrb[0].mxu0
    %v1589 = vadd.f32 %v1110, %v1588
    %v1590 = vpop.f32.mrb[0].mxu0
    %v1591 = vadd.f32 %v1114, %v1590
    %1592 = vmatprep.mubr.f32.mxu0 0.0
    %1593 = vmatmul.mubr.f32.gmra.mrb[0].mxu0 %v959
    %v1594 = vpop.f32.mrb[0].mxu0
    %v1595 = vadd.f32 %v1110, %v1594
    %v1596 = vpop.f32.mrb[0].mxu0
    %v1597 = vadd.f32 %v1114, %v1596
    %1598 = vmatprep.mubr.f32.mxu0 0.0
    %1599 = vmatmul.mubr.f32.gmra.mrb[0].mxu0 %v960
    %v1600 = vpop.f32.mrb[0].mxu0
    %v1601 = vadd.f32 %v1110, %v1600
    %v1602 = vpop.f32.mrb[0].mxu0
    %v1603 = vadd.f32 %v1114, %v1602
    %1604 = vmatprep.mubr.f32.mxu0 0.0
    %1605 = vmatmul.mubr.f32.gmra.mrb[0].mxu0 %v961
    %v1606 = vpop.f32.mrb[0].mxu0
    %v1607 = vadd.f32 %v1110, %v1606
    %v1608 = vpop.f32.mrb[0].mxu0
    %v1609 = vadd.f32 %v1114, %v1608
    %1610 = vmatprep.mubr.f32.mxu0 0.0
    %1611 = vmatmul.mubr.f32.gmra.mrb[0].mxu0 %v962
    %v1612 = vpop.f32.mrb[0].mxu0
    %v1613 = vadd.f32 %v1110, %v1612
    %v1614 = vpop.f32.mrb[0].mxu0
    %v1615 = vadd.f32 %v1114, %v1614
    %1616 = vmatprep.mubr.f32.mxu0 0.0
    %1617 = vmatmul.mubr.f32.gmra.mrb[0].mxu0 %v963
    %v1618 = vpop.f32.mrb[0].mxu0
    %v1619 = vadd.f32 %v1110, %v1618
    %v1620 = vpop.f32.mrb[0].mxu0
    %v1621 = vadd.f32 %v1114, %v1620
    %1622 = vmatprep.mubr.f32.mxu0 0.0
    %1623 = vmatmul.mubr.f32.gmra.mrb[0].mxu0 %v964
    %v1624 = vpop.f32.mrb[0].mxu0
    %v1625 = vadd.f32 %v1110, %v1624
    %v1626 = vpop.f32.mrb[0].mxu0
    %v1627 = vadd.f32 %v1114, %v1626
    %1628 = vmatprep.mubr.f32.mxu0 0.0
    %1629 = vmatmul.mubr.f32.gmra.mrb[0].mxu0 %v965
    %v1630 = vpop.f32.mrb[0].mxu0
    %v1631 = vadd.f32 %v1110, %v1630
    %v1632 = vpop.f32.mrb[0].mxu0
    %v1633 = vadd.f32 %v1114, %v1632
    %1634 = vmatprep.mubr.f32.mxu0 0.0
    %1635 = vmatmul.mubr.f32.gmra.mrb[0].mxu0 %v966
    %v1636 = vpop.f32.mrb[0].mxu0
    %v1637 = vadd.f32 %v1110, %v1636
    %v1638 = vpop.f32.mrb[0].mxu0
    %v1639 = vadd.f32 %v1114, %v1638
    %1640 = vmatprep.mubr.f32.mxu0 0.0
    %1641 = vmatmul.mubr.f32.gmra.mrb[0].mxu0 %v967
    %v1642 = vpop.f32.mrb[0].mxu0
    %v1643 = vadd.f32 %v1110, %v1642
    %v1644 = vpop.f32.mrb[0].mxu0
    %v1645 = vadd.f32 %v1114, %v1644
    %1646 = vmatprep.mubr.f32.mxu0 0.0
    %1647 = vmatmul.mubr.f32.gmra.mrb[0].mxu0 %v968
    %v1648 = vpop.f32.mrb[0].mxu0
    %v1649 = vadd.f32 %v1110, %v1648
    %v1650 = vpop.f32.mrb[0].mxu0
    %v1651 = vadd.f32 %v1114, %v1650
    %1652 = vdwg.mxu0
    %1653 = vmatprep.subr.mxu0 %v974
    %1654 = vmatpush1.msra.mxu0 %v973
    %1655 = vmatprep.subr.mxu0 %v982
    %1656 = vmatpush1.msra.mxu0 %v981
    %1657 = vmatprep.subr.mxu0 %v990
    %1658 = vmatpush1.msra.mxu0 %v989
    %1659 = vmatprep.subr.mxu0 %v998
    %1660 = vmatpush1.msra.mxu0 %v997
    %1661 = vmatprep.subr.mxu0 %v1006
    %1662 = vmatpush1.msra.mxu0 %v1005
    %1663 = vmatprep.subr.mxu0 %v1014
    %1664 = vmatpush1.msra.mxu0 %v1013
    %1665 = vmatprep.subr.mxu0 %v1022
    %1666 = vmatpush1.msra.mxu0 %v1021
    %1667 = vmatprep.subr.mxu0 %v1030
    %1668 = vmatpush1.msra.mxu0 %v1029
    %1669 = vmatprep.subr.mxu0 %v1038
    %1670 = vmatpush1.msra.mxu0 %v1037
    %1671 = vmatprep.subr.mxu0 %v1046
    %1672 = vmatpush1.msra.mxu0 %v1045
    %1673 = vmatprep.subr.mxu0 %v1054
    %1674 = vmatpush1.msra.mxu0 %v1053
    %1675 = vmatprep.subr.mxu0 %v1062
    %1676 = vmatpush1.msra.mxu0 %v1061
    %1677 = vmatprep.subr.mxu0 %v1070
    %1678 = vmatpush1.msra.mxu0 %v1069
    %1679 = vmatprep.subr.mxu0 %v1078
    %1680 = vmatpush1.msra.mxu0 %v1077
    %1681 = vmatprep.subr.mxu0 %v1086
    %1682 = vmatpush1.msra.mxu0 %v1085
    %1683 = vmatprep.subr.mxu0 %v1094
    %1684 = vmatpush1.msra.mxu0 %v1093
    %1685 = vmatprep.subr.mxu0 0.0
    %1686 = vmatpush1.msra.mxu0 0.0
    %1687 = vmatprep.subr.mxu0 0.0
    %1688 = vmatpush1.msra.mxu0 0.0
    %1689 = vmatprep.subr.mxu0 0.0
    %1690 = vmatpush1.msra.mxu0 0.0
    %1691 = vmatprep.subr.mxu0 0.0
    %1692 = vmatpush1.msra.mxu0 0.0
    %1693 = vmatprep.subr.mxu0 0.0
    %1694 = vmatpush1.msra.mxu0 0.0
    %1695 = vmatprep.subr.mxu0 0.0
    %1696 = vmatpush1.msra.mxu0 0.0
    %1697 = vmatprep.subr.mxu0 0.0
    %1698 = vmatpush1.msra.mxu0 0.0
    %1699 = vmatprep.subr.mxu0 0.0
    %1700 = vmatpush1.msra.mxu0 0.0
    %1701 = vmatprep.subr.mxu0 0.0
    %1702 = vmatpush1.msra.mxu0 0.0
    %1703 = vmatprep.subr.mxu0 0.0
    %1704 = vmatpush1.msra.mxu0 0.0
    %1705 = vmatprep.subr.mxu0 0.0
    %1706 = vmatpush1.msra.mxu0 0.0
    %1707 = vmatprep.subr.mxu0 0.0
    %1708 = vmatpush1.msra.mxu0 0.0
    %1709 = vmatprep.subr.mxu0 0.0
    %1710 = vmatpush1.msra.mxu0 0.0
    %1711 = vmatprep.subr.mxu0 0.0
    %1712 = vmatpush1.msra.mxu0 0.0
    %1713 = vmatprep.subr.mxu0 0.0
    %1714 = vmatpush1.msra.mxu0 0.0
    %1715 = vmatprep.subr.mxu0 0.0
    %1716 = vmatpush1.msra.mxu0 0.0
    %1717 = vmatprep.mubr.f32.mxu0 0.0
    %1718 = vmatmul.mubr.f32.gmra.mrb[0].mxu0 %v937
    %v1719 = vpop.f32.mrb[0].mxu0
    %v1720 = vadd.f32 %v1118, %v1719
    %v1721 = vpop.f32.mrb[0].mxu0
    %v1722 = vadd.f32 %v1122, %v1721
    %1723 = vmatprep.mubr.f32.mxu0 0.0
    %1724 = vmatmul.mubr.f32.gmra.mrb[0].mxu0 %v938
    %v1725 = vpop.f32.mrb[0].mxu0
    %v1726 = vadd.f32 %v1118, %v1725
    %v1727 = vpop.f32.mrb[0].mxu0
    %v1728 = vadd.f32 %v1122, %v1727
    %1729 = vmatprep.mubr.f32.mxu0 0.0
    %1730 = vmatmul.mubr.f32.gmra.mrb[0].mxu0 %v939
    %v1731 = vpop.f32.mrb[0].mxu0
    %v1732 = vadd.f32 %v1118, %v1731
    %v1733 = vpop.f32.mrb[0].mxu0
    %v1734 = vadd.f32 %v1122, %v1733
    %1735 = vmatprep.mubr.f32.mxu0 0.0
    %1736 = vmatmul.mubr.f32.gmra.mrb[0].mxu0 %v940
    %v1737 = vpop.f32.mrb[0].mxu0
    %v1738 = vadd.f32 %v1118, %v1737
    %v1739 = vpop.f32.mrb[0].mxu0
    %v1740 = vadd.f32 %v1122, %v1739
    %1741 = vmatprep.mubr.f32.mxu0 0.0
    %1742 = vmatmul.mubr.f32.gmra.mrb[0].mxu0 %v941
    %v1743 = vpop.f32.mrb[0].mxu0
    %v1744 = vadd.f32 %v1118, %v1743
    %v1745 = vpop.f32.mrb[0].mxu0
    %v1746 = vadd.f32 %v1122, %v1745
    %1747 = vmatprep.mubr.f32.mxu0 0.0
    %1748 = vmatmul.mubr.f32.gmra.mrb[0].mxu0 %v942
    %v1749 = vpop.f32.mrb[0].mxu0
    %v1750 = vadd.f32 %v1118, %v1749
    %v1751 = vpop.f32.mrb[0].mxu0
    %v1752 = vadd.f32 %v1122, %v1751
    %1753 = vmatprep.mubr.f32.mxu0 0.0
    %1754 = vmatmul.mubr.f32.gmra.mrb[0].mxu0 %v943
    %v1755 = vpop.f32.mrb[0].mxu0
    %v1756 = vadd.f32 %v1118, %v1755
    %v1757 = vpop.f32.mrb[0].mxu0
    %v1758 = vadd.f32 %v1122, %v1757
    %1759 = vmatprep.mubr.f32.mxu0 0.0
    %1760 = vmatmul.mubr.f32.gmra.mrb[0].mxu0 %v944
    %v1761 = vpop.f32.mrb[0].mxu0
    %v1762 = vadd.f32 %v1118, %v1761
    %v1763 = vpop.f32.mrb[0].mxu0
    %v1764 = vadd.f32 %v1122, %v1763
    %1765 = vmatprep.mubr.f32.mxu0 0.0
    %1766 = vmatmul.mubr.f32.gmra.mrb[0].mxu0 %v945
    %v1767 = vpop.f32.mrb[0].mxu0
    %v1768 = vadd.f32 %v1118, %v1767
    %v1769 = vpop.f32.mrb[0].mxu0
    %v1770 = vadd.f32 %v1122, %v1769
    %1771 = vmatprep.mubr.f32.mxu0 0.0
    %1772 = vmatmul.mubr.f32.gmra.mrb[0].mxu0 %v946
    %v1773 = vpop.f32.mrb[0].mxu0
    %v1774 = vadd.f32 %v1118, %v1773
    %v1775 = vpop.f32.mrb[0].mxu0
    %v1776 = vadd.f32 %v1122, %v1775
    %1777 = vmatprep.mubr.f32.mxu0 0.0
    %1778 = vmatmul.mubr.f32.gmra.mrb[0].mxu0 %v947
    %v1779 = vpop.f32.mrb[0].mxu0
    %v1780 = vadd.f32 %v1118, %v1779
    %v1781 = vpop.f32.mrb[0].mxu0
    %v1782 = vadd.f32 %v1122, %v1781
    %1783 = vmatprep.mubr.f32.mxu0 0.0
    %1784 = vmatmul.mubr.f32.gmra.mrb[0].mxu0 %v948
    %v1785 = vpop.f32.mrb[0].mxu0
    %v1786 = vadd.f32 %v1118, %v1785
    %v1787 = vpop.f32.mrb[0].mxu0
    %v1788 = vadd.f32 %v1122, %v1787
    %1789 = vmatprep.mubr.f32.mxu0 0.0
    %1790 = vmatmul.mubr.f32.gmra.mrb[0].mxu0 %v949
    %v1791 = vpop.f32.mrb[0].mxu0
    %v1792 = vadd.f32 %v1118, %v1791
    %v1793 = vpop.f32.mrb[0].mxu0
    %v1794 = vadd.f32 %v1122, %v1793
    %1795 = vmatprep.mubr.f32.mxu0 0.0
    %1796 = vmatmul.mubr.f32.gmra.mrb[0].mxu0 %v950
    %v1797 = vpop.f32.mrb[0].mxu0
    %v1798 = vadd.f32 %v1118, %v1797
    %v1799 = vpop.f32.mrb[0].mxu0
    %v1800 = vadd.f32 %v1122, %v1799
    %1801 = vmatprep.mubr.f32.mxu0 0.0
    %1802 = vmatmul.mubr.f32.gmra.mrb[0].mxu0 %v951
    %v1803 = vpop.f32.mrb[0].mxu0
    %v1804 = vadd.f32 %v1118, %v1803
    %v1805 = vpop.f32.mrb[0].mxu0
    %v1806 = vadd.f32 %v1122, %v1805
    %1807 = vmatprep.mubr.f32.mxu0 0.0
    %1808 = vmatmul.mubr.f32.gmra.mrb[0].mxu0 %v952
    %v1809 = vpop.f32.mrb[0].mxu0
    %v1810 = vadd.f32 %v1118, %v1809
    %v1811 = vpop.f32.mrb[0].mxu0
    %v1812 = vadd.f32 %v1122, %v1811
    %1813 = vmatprep.mubr.f32.mxu0 0.0
    %1814 = vmatmul.mubr.f32.gmra.mrb[0].mxu0 %v953
    %v1815 = vpop.f32.mrb[0].mxu0
    %v1816 = vadd.f32 %v1118, %v1815
    %v1817 = vpop.f32.mrb[0].mxu0
    %v1818 = vadd.f32 %v1122, %v1817
    %1819 = vmatprep.mubr.f32.mxu0 0.0
    %1820 = vmatmul.mubr.f32.gmra.mrb[0].mxu0 %v954
    %v1821 = vpop.f32.mrb[0].mxu0
    %v1822 = vadd.f32 %v1118, %v1821
    %v1823 = vpop.f32.mrb[0].mxu0
    %v1824 = vadd.f32 %v1122, %v1823
    %1825 = vmatprep.mubr.f32.mxu0 0.0
    %1826 = vmatmul.mubr.f32.gmra.mrb[0].mxu0 %v955
    %v1827 = vpop.f32.mrb[0].mxu0
    %v1828 = vadd.f32 %v1118, %v1827
    %v1829 = vpop.f32.mrb[0].mxu0
    %v1830 = vadd.f32 %v1122, %v1829
    %1831 = vmatprep.mubr.f32.mxu0 0.0
    %1832 = vmatmul.mubr.f32.gmra.mrb[0].mxu0 %v956
    %v1833 = vpop.f32.mrb[0].mxu0
    %v1834 = vadd.f32 %v1118, %v1833
    %v1835 = vpop.f32.mrb[0].mxu0
    %v1836 = vadd.f32 %v1122, %v1835
    %1837 = vmatprep.mubr.f32.mxu0 0.0
    %1838 = vmatmul.mubr.f32.gmra.mrb[0].mxu0 %v957
    %v1839 = vpop.f32.mrb[0].mxu0
    %v1840 = vadd.f32 %v1118, %v1839
    %v1841 = vpop.f32.mrb[0].mxu0
    %v1842 = vadd.f32 %v1122, %v1841
    %1843 = vmatprep.mubr.f32.mxu0 0.0
    %1844 = vmatmul.mubr.f32.gmra.mrb[0].mxu0 %v958
    %v1845 = vpop.f32.mrb[0].mxu0
    %v1846 = vadd.f32 %v1118, %v1845
    %v1847 = vpop.f32.mrb[0].mxu0
    %v1848 = vadd.f32 %v1122, %v1847
    %1849 = vmatprep.mubr.f32.mxu0 0.0
    %1850 = vmatmul.mubr.f32.gmra.mrb[0].mxu0 %v959
    %v1851 = vpop.f32.mrb[0].mxu0
    %v1852 = vadd.f32 %v1118, %v1851
    %v1853 = vpop.f32.mrb[0].mxu0
    %v1854 = vadd.f32 %v1122, %v1853
    %1855 = vmatprep.mubr.f32.mxu0 0.0
    %1856 = vmatmul.mubr.f32.gmra.mrb[0].mxu0 %v960
    %v1857 = vpop.f32.mrb[0].mxu0
    %v1858 = vadd.f32 %v1118, %v1857
    %v1859 = vpop.f32.mrb[0].mxu0
    %v1860 = vadd.f32 %v1122, %v1859
    %1861 = vmatprep.mubr.f32.mxu0 0.0
    %1862 = vmatmul.mubr.f32.gmra.mrb[0].mxu0 %v961
    %v1863 = vpop.f32.mrb[0].mxu0
    %v1864 = vadd.f32 %v1118, %v1863
    %v1865 = vpop.f32.mrb[0].mxu0
    %v1866 = vadd.f32 %v1122, %v1865
    %1867 = vmatprep.mubr.f32.mxu0 0.0
    %1868 = vmatmul.mubr.f32.gmra.mrb[0].mxu0 %v962
    %v1869 = vpop.f32.mrb[0].mxu0
    %v1870 = vadd.f32 %v1118, %v1869
    %v1871 = vpop.f32.mrb[0].mxu0
    %v1872 = vadd.f32 %v1122, %v1871
    %1873 = vmatprep.mubr.f32.mxu0 0.0
    %1874 = vmatmul.mubr.f32.gmra.mrb[0].mxu0 %v963
    %v1875 = vpop.f32.mrb[0].mxu0
    %v1876 = vadd.f32 %v1118, %v1875
    %v1877 = vpop.f32.mrb[0].mxu0
    %v1878 = vadd.f32 %v1122, %v1877
    %1879 = vmatprep.mubr.f32.mxu0 0.0
    %1880 = vmatmul.mubr.f32.gmra.mrb[0].mxu0 %v964
    %v1881 = vpop.f32.mrb[0].mxu0
    %v1882 = vadd.f32 %v1118, %v1881
    %v1883 = vpop.f32.mrb[0].mxu0
    %v1884 = vadd.f32 %v1122, %v1883
    %1885 = vmatprep.mubr.f32.mxu0 0.0
    %1886 = vmatmul.mubr.f32.gmra.mrb[0].mxu0 %v965
    %v1887 = vpop.f32.mrb[0].mxu0
    %v1888 = vadd.f32 %v1118, %v1887
    %v1889 = vpop.f32.mrb[0].mxu0
    %v1890 = vadd.f32 %v1122, %v1889
    %1891 = vmatprep.mubr.f32.mxu0 0.0
    %1892 = vmatmul.mubr.f32.gmra.mrb[0].mxu0 %v966
    %v1893 = vpop.f32.mrb[0].mxu0
    %v1894 = vadd.f32 %v1118, %v1893
    %v1895 = vpop.f32.mrb[0].mxu0
    %v1896 = vadd.f32 %v1122, %v1895
    %1897 = vmatprep.mubr.f32.mxu0 0.0
    %1898 = vmatmul.mubr.f32.gmra.mrb[0].mxu0 %v967
    %v1899 = vpop.f32.mrb[0].mxu0
    %v1900 = vadd.f32 %v1118, %v1899
    %v1901 = vpop.f32.mrb[0].mxu0
    %v1902 = vadd.f32 %v1122, %v1901
    %1903 = vmatprep.mubr.f32.mxu0 0.0
    %1904 = vmatmul.mubr.f32.gmra.mrb[0].mxu0 %v968
    %v1905 = vpop.f32.mrb[0].mxu0
    %v1906 = vadd.f32 %v1118, %v1905
    %v1907 = vpop.f32.mrb[0].mxu0
    %v1908 = vadd.f32 %v1122, %v1907
    %1909 = vdwg.mxu0
    %1910 = vmatprep.subr.mxu0 %v976
    %1911 = vmatpush1.msra.mxu0 %v975
    %1912 = vmatprep.subr.mxu0 %v984
    %1913 = vmatpush1.msra.mxu0 %v983
    %1914 = vmatprep.subr.mxu0 %v992
    %1915 = vmatpush1.msra.mxu0 %v991
    %1916 = vmatprep.subr.mxu0 %v1000
    %1917 = vmatpush1.msra.mxu0 %v999
    %1918 = vmatprep.subr.mxu0 %v1008
    %1919 = vmatpush1.msra.mxu0 %v1007
    %1920 = vmatprep.subr.mxu0 %v1016
    %1921 = vmatpush1.msra.mxu0 %v1015
    %1922 = vmatprep.subr.mxu0 %v1024
    %1923 = vmatpush1.msra.mxu0 %v1023
    %1924 = vmatprep.subr.mxu0 %v1032
    %1925 = vmatpush1.msra.mxu0 %v1031
    %1926 = vmatprep.subr.mxu0 %v1040
    %1927 = vmatpush1.msra.mxu0 %v1039
    %1928 = vmatprep.subr.mxu0 %v1048
    %1929 = vmatpush1.msra.mxu0 %v1047
    %1930 = vmatprep.subr.mxu0 %v1056
    %1931 = vmatpush1.msra.mxu0 %v1055
    %1932 = vmatprep.subr.mxu0 %v1064
    %1933 = vmatpush1.msra.mxu0 %v1063
    %1934 = vmatprep.subr.mxu0 %v1072
    %1935 = vmatpush1.msra.mxu0 %v1071
    %1936 = vmatprep.subr.mxu0 %v1080
    %1937 = vmatpush1.msra.mxu0 %v1079
    %1938 = vmatprep.subr.mxu0 %v1088
    %1939 = vmatpush1.msra.mxu0 %v1087
    %1940 = vmatprep.subr.mxu0 %v1096
    %1941 = vmatpush1.msra.mxu0 %v1095
    %1942 = vmatprep.subr.mxu0 0.0
    %1943 = vmatpush1.msra.mxu0 0.0
    %1944 = vmatprep.subr.mxu0 0.0
    %1945 = vmatpush1.msra.mxu0 0.0
    %1946 = vmatprep.subr.mxu0 0.0
    %1947 = vmatpush1.msra.mxu0 0.0
    %1948 = vmatprep.subr.mxu0 0.0
    %1949 = vmatpush1.msra.mxu0 0.0
    %1950 = vmatprep.subr.mxu0 0.0
    %1951 = vmatpush1.msra.mxu0 0.0
    %1952 = vmatprep.subr.mxu0 0.0
    %1953 = vmatpush1.msra.mxu0 0.0
    %1954 = vmatprep.subr.mxu0 0.0
    %1955 = vmatpush1.msra.mxu0 0.0
    %1956 = vmatprep.subr.mxu0 0.0
    %1957 = vmatpush1.msra.mxu0 0.0
    %1958 = vmatprep.subr.mxu0 0.0
    %1959 = vmatpush1.msra.mxu0 0.0
    %1960 = vmatprep.subr.mxu0 0.0
    %1961 = vmatpush1.msra.mxu0 0.0
    %1962 = vmatprep.subr.mxu0 0.0
    %1963 = vmatpush1.msra.mxu0 0.0
    %1964 = vmatprep.subr.mxu0 0.0
    %1965 = vmatpush1.msra.mxu0 0.0
    %1966 = vmatprep.subr.mxu0 0.0
    %1967 = vmatpush1.msra.mxu0 0.0
    %1968 = vmatprep.subr.mxu0 0.0
    %1969 = vmatpush1.msra.mxu0 0.0
    %1970 = vmatprep.subr.mxu0 0.0
    %1971 = vmatpush1.msra.mxu0 0.0
    %1972 = vmatprep.subr.mxu0 0.0
    %1973 = vmatpush1.msra.mxu0 0.0
    %1974 = vmatprep.mubr.f32.mxu0 0.0
    %1975 = vmatmul.mubr.f32.gmra.mrb[0].mxu0 %v937
    %v1976 = vpop.f32.mrb[0].mxu0
    %v1977 = vadd.f32 %v1126, %v1976
    %v1978 = vpop.f32.mrb[0].mxu0
    %v1979 = vadd.f32 %v1130, %v1978
    %1980 = vmatprep.mubr.f32.mxu0 0.0
    %1981 = vmatmul.mubr.f32.gmra.mrb[0].mxu0 %v938
    %v1982 = vpop.f32.mrb[0].mxu0
    %v1983 = vadd.f32 %v1126, %v1982
    %v1984 = vpop.f32.mrb[0].mxu0
    %v1985 = vadd.f32 %v1130, %v1984
    %1986 = vmatprep.mubr.f32.mxu0 0.0
    %1987 = vmatmul.mubr.f32.gmra.mrb[0].mxu0 %v939
    %v1988 = vpop.f32.mrb[0].mxu0
    %v1989 = vadd.f32 %v1126, %v1988
    %v1990 = vpop.f32.mrb[0].mxu0
    %v1991 = vadd.f32 %v1130, %v1990
    %1992 = vmatprep.mubr.f32.mxu0 0.0
    %1993 = vmatmul.mubr.f32.gmra.mrb[0].mxu0 %v940
    %v1994 = vpop.f32.mrb[0].mxu0
    %v1995 = vadd.f32 %v1126, %v1994
    %v1996 = vpop.f32.mrb[0].mxu0
    %v1997 = vadd.f32 %v1130, %v1996
    %1998 = vmatprep.mubr.f32.mxu0 0.0
    %1999 = vmatmul.mubr.f32.gmra.mrb[0].mxu0 %v941
    %v2000 = vpop.f32.mrb[0].mxu0
    %v2001 = vadd.f32 %v1126, %v2000
    %v2002 = vpop.f32.mrb[0].mxu0
    %v2003 = vadd.f32 %v1130, %v2002
    %2004 = vmatprep.mubr.f32.mxu0 0.0
    %2005 = vmatmul.mubr.f32.gmra.mrb[0].mxu0 %v942
    %v2006 = vpop.f32.mrb[0].mxu0
    %v2007 = vadd.f32 %v1126, %v2006
    %v2008 = vpop.f32.mrb[0].mxu0
    %v2009 = vadd.f32 %v1130, %v2008
    %2010 = vmatprep.mubr.f32.mxu0 0.0
    %2011 = vmatmul.mubr.f32.gmra.mrb[0].mxu0 %v943
    %v2012 = vpop.f32.mrb[0].mxu0
    %v2013 = vadd.f32 %v1126, %v2012
    %v2014 = vpop.f32.mrb[0].mxu0
    %v2015 = vadd.f32 %v1130, %v2014
    %2016 = vmatprep.mubr.f32.mxu0 0.0
    %2017 = vmatmul.mubr.f32.gmra.mrb[0].mxu0 %v944
    %v2018 = vpop.f32.mrb[0].mxu0
    %v2019 = vadd.f32 %v1126, %v2018
    %v2020 = vpop.f32.mrb[0].mxu0
    %v2021 = vadd.f32 %v1130, %v2020
    %2022 = vmatprep.mubr.f32.mxu0 0.0
    %2023 = vmatmul.mubr.f32.gmra.mrb[0].mxu0 %v945
    %v2024 = vpop.f32.mrb[0].mxu0
    %v2025 = vadd.f32 %v1126, %v2024
    %v2026 = vpop.f32.mrb[0].mxu0
    %v2027 = vadd.f32 %v1130, %v2026
    %2028 = vmatprep.mubr.f32.mxu0 0.0
    %2029 = vmatmul.mubr.f32.gmra.mrb[0].mxu0 %v946
    %v2030 = vpop.f32.mrb[0].mxu0
    %v2031 = vadd.f32 %v1126, %v2030
    %v2032 = vpop.f32.mrb[0].mxu0
    %v2033 = vadd.f32 %v1130, %v2032
    %2034 = vmatprep.mubr.f32.mxu0 0.0
    %2035 = vmatmul.mubr.f32.gmra.mrb[0].mxu0 %v947
    %v2036 = vpop.f32.mrb[0].mxu0
    %v2037 = vadd.f32 %v1126, %v2036
    %v2038 = vpop.f32.mrb[0].mxu0
    %v2039 = vadd.f32 %v1130, %v2038
    %2040 = vmatprep.mubr.f32.mxu0 0.0
    %2041 = vmatmul.mubr.f32.gmra.mrb[0].mxu0 %v948
    %v2042 = vpop.f32.mrb[0].mxu0
    %v2043 = vadd.f32 %v1126, %v2042
    %v2044 = vpop.f32.mrb[0].mxu0
    %v2045 = vadd.f32 %v1130, %v2044
    %2046 = vmatprep.mubr.f32.mxu0 0.0
    %2047 = vmatmul.mubr.f32.gmra.mrb[0].mxu0 %v949
    %v2048 = vpop.f32.mrb[0].mxu0
    %v2049 = vadd.f32 %v1126, %v2048
    %v2050 = vpop.f32.mrb[0].mxu0
    %v2051 = vadd.f32 %v1130, %v2050
    %2052 = vmatprep.mubr.f32.mxu0 0.0
    %2053 = vmatmul.mubr.f32.gmra.mrb[0].mxu0 %v950
    %v2054 = vpop.f32.mrb[0].mxu0
    %v2055 = vadd.f32 %v1126, %v2054
    %v2056 = vpop.f32.mrb[0].mxu0
    %v2057 = vadd.f32 %v1130, %v2056
    %2058 = vmatprep.mubr.f32.mxu0 0.0
    %2059 = vmatmul.mubr.f32.gmra.mrb[0].mxu0 %v951
    %v2060 = vpop.f32.mrb[0].mxu0
    %v2061 = vadd.f32 %v1126, %v2060
    %v2062 = vpop.f32.mrb[0].mxu0
    %v2063 = vadd.f32 %v1130, %v2062
    %2064 = vmatprep.mubr.f32.mxu0 0.0
    %2065 = vmatmul.mubr.f32.gmra.mrb[0].mxu0 %v952
    %v2066 = vpop.f32.mrb[0].mxu0
    %v2067 = vadd.f32 %v1126, %v2066
    %v2068 = vpop.f32.mrb[0].mxu0
    %v2069 = vadd.f32 %v1130, %v2068
    %2070 = vmatprep.mubr.f32.mxu0 0.0
    %2071 = vmatmul.mubr.f32.gmra.mrb[0].mxu0 %v953
    %v2072 = vpop.f32.mrb[0].mxu0
    %v2073 = vadd.f32 %v1126, %v2072
    %v2074 = vpop.f32.mrb[0].mxu0
    %v2075 = vadd.f32 %v1130, %v2074
    %2076 = vmatprep.mubr.f32.mxu0 0.0
    %2077 = vmatmul.mubr.f32.gmra.mrb[0].mxu0 %v954
    %v2078 = vpop.f32.mrb[0].mxu0
    %v2079 = vadd.f32 %v1126, %v2078
    %v2080 = vpop.f32.mrb[0].mxu0
    %v2081 = vadd.f32 %v1130, %v2080
    %2082 = vmatprep.mubr.f32.mxu0 0.0
    %2083 = vmatmul.mubr.f32.gmra.mrb[0].mxu0 %v955
    %v2084 = vpop.f32.mrb[0].mxu0
    %v2085 = vadd.f32 %v1126, %v2084
    %v2086 = vpop.f32.mrb[0].mxu0
    %v2087 = vadd.f32 %v1130, %v2086
    %2088 = vmatprep.mubr.f32.mxu0 0.0
    %2089 = vmatmul.mubr.f32.gmra.mrb[0].mxu0 %v956
    %v2090 = vpop.f32.mrb[0].mxu0
    %v2091 = vadd.f32 %v1126, %v2090
    %v2092 = vpop.f32.mrb[0].mxu0
    %v2093 = vadd.f32 %v1130, %v2092
    %2094 = vmatprep.mubr.f32.mxu0 0.0
    %2095 = vmatmul.mubr.f32.gmra.mrb[0].mxu0 %v957
    %v2096 = vpop.f32.mrb[0].mxu0
    %v2097 = vadd.f32 %v1126, %v2096
    %v2098 = vpop.f32.mrb[0].mxu0
    %v2099 = vadd.f32 %v1130, %v2098
    %2100 = vmatprep.mubr.f32.mxu0 0.0
    %2101 = vmatmul.mubr.f32.gmra.mrb[0].mxu0 %v958
    %v2102 = vpop.f32.mrb[0].mxu0
    %v2103 = vadd.f32 %v1126, %v2102
    %v2104 = vpop.f32.mrb[0].mxu0
    %v2105 = vadd.f32 %v1130, %v2104
    %2106 = vmatprep.mubr.f32.mxu0 0.0
    %2107 = vmatmul.mubr.f32.gmra.mrb[0].mxu0 %v959
    %v2108 = vpop.f32.mrb[0].mxu0
    %v2109 = vadd.f32 %v1126, %v2108
    %v2110 = vpop.f32.mrb[0].mxu0
    %v2111 = vadd.f32 %v1130, %v2110
    %2112 = vmatprep.mubr.f32.mxu0 0.0
    %2113 = vmatmul.mubr.f32.gmra.mrb[0].mxu0 %v960
    %v2114 = vpop.f32.mrb[0].mxu0
    %v2115 = vadd.f32 %v1126, %v2114
    %v2116 = vpop.f32.mrb[0].mxu0
    %v2117 = vadd.f32 %v1130, %v2116
    %2118 = vmatprep.mubr.f32.mxu0 0.0
    %2119 = vmatmul.mubr.f32.gmra.mrb[0].mxu0 %v961
    %v2120 = vpop.f32.mrb[0].mxu0
    %v2121 = vadd.f32 %v1126, %v2120
    %v2122 = vpop.f32.mrb[0].mxu0
    %v2123 = vadd.f32 %v1130, %v2122
    %2124 = vmatprep.mubr.f32.mxu0 0.0
    %2125 = vmatmul.mubr.f32.gmra.mrb[0].mxu0 %v962
    %v2126 = vpop.f32.mrb[0].mxu0
    %v2127 = vadd.f32 %v1126, %v2126
    %v2128 = vpop.f32.mrb[0].mxu0
    %v2129 = vadd.f32 %v1130, %v2128
    %2130 = vmatprep.mubr.f32.mxu0 0.0
    %2131 = vmatmul.mubr.f32.gmra.mrb[0].mxu0 %v963
    %v2132 = vpop.f32.mrb[0].mxu0
    %v2133 = vadd.f32 %v1126, %v2132
    %v2134 = vpop.f32.mrb[0].mxu0
    %v2135 = vadd.f32 %v1130, %v2134
    %2136 = vmatprep.mubr.f32.mxu0 0.0
    %2137 = vmatmul.mubr.f32.gmra.mrb[0].mxu0 %v964
    %v2138 = vpop.f32.mrb[0].mxu0
    %v2139 = vadd.f32 %v1126, %v2138
    %v2140 = vpop.f32.mrb[0].mxu0
    %v2141 = vadd.f32 %v1130, %v2140
    %2142 = vmatprep.mubr.f32.mxu0 0.0
    %2143 = vmatmul.mubr.f32.gmra.mrb[0].mxu0 %v965
    %v2144 = vpop.f32.mrb[0].mxu0
    %v2145 = vadd.f32 %v1126, %v2144
    %v2146 = vpop.f32.mrb[0].mxu0
    %v2147 = vadd.f32 %v1130, %v2146
    %2148 = vmatprep.mubr.f32.mxu0 0.0
    %2149 = vmatmul.mubr.f32.gmra.mrb[0].mxu0 %v966
    %v2150 = vpop.f32.mrb[0].mxu0
    %v2151 = vadd.f32 %v1126, %v2150
    %v2152 = vpop.f32.mrb[0].mxu0
    %v2153 = vadd.f32 %v1130, %v2152
    %2154 = vmatprep.mubr.f32.mxu0 0.0
    %2155 = vmatmul.mubr.f32.gmra.mrb[0].mxu0 %v967
    %v2156 = vpop.f32.mrb[0].mxu0
    %v2157 = vadd.f32 %v1126, %v2156
    %v2158 = vpop.f32.mrb[0].mxu0
    %v2159 = vadd.f32 %v1130, %v2158
    %2160 = vmatprep.mubr.f32.mxu0 0.0
    %2161 = vmatmul.mubr.f32.gmra.mrb[0].mxu0 %v968
    %v2162 = vpop.f32.mrb[0].mxu0
    %v2163 = vadd.f32 %v1126, %v2162
    %v2164 = vpop.f32.mrb[0].mxu0
    %v2165 = vadd.f32 %v1130, %v2164
    %2166 = vdwg.mxu0
    %v2167 = vmax.f32 %v1206, 0.0
    %v2168 = vmax.f32 %v1208, 0.0
    %v2169 = vmax.f32 %v1463, 0.0
    %v2170 = vmax.f32 %v1465, 0.0
    %v2171 = vmax.f32 %v1720, 0.0
    %v2172 = vmax.f32 %v1722, 0.0
    %v2173 = vmax.f32 %v1977, 0.0
    %v2174 = vmax.f32 %v1979, 0.0
    %v2175 = vmax.f32 %v1212, 0.0
    %v2176 = vmax.f32 %v1214, 0.0
    %v2177 = vmax.f32 %v1469, 0.0
    %v2178 = vmax.f32 %v1471, 0.0
    %v2179 = vmax.f32 %v1726, 0.0
    %v2180 = vmax.f32 %v1728, 0.0
    %v2181 = vmax.f32 %v1983, 0.0
    %v2182 = vmax.f32 %v1985, 0.0
    %v2183 = vmax.f32 %v1218, 0.0
    %v2184 = vmax.f32 %v1220, 0.0
    %v2185 = vmax.f32 %v1475, 0.0
    %v2186 = vmax.f32 %v1477, 0.0
    %v2187 = vmax.f32 %v1732, 0.0
    %v2188 = vmax.f32 %v1734, 0.0
    %v2189 = vmax.f32 %v1989, 0.0
    %v2190 = vmax.f32 %v1991, 0.0
    %v2191 = vmax.f32 %v1224, 0.0
    %v2192 = vmax.f32 %v1226, 0.0
    %v2193 = vmax.f32 %v1481, 0.0
    %v2194 = vmax.f32 %v1483, 0.0
    %v2195 = vmax.f32 %v1738, 0.0
    %v2196 = vmax.f32 %v1740, 0.0
    %v2197 = vmax.f32 %v1995, 0.0
    %v2198 = vmax.f32 %v1997, 0.0
    %v2199 = vmax.f32 %v1230, 0.0
    %v2200 = vmax.f32 %v1232, 0.0
    %v2201 = vmax.f32 %v1487, 0.0
    %v2202 = vmax.f32 %v1489, 0.0
    %v2203 = vmax.f32 %v1744, 0.0
    %v2204 = vmax.f32 %v1746, 0.0
    %v2205 = vmax.f32 %v2001, 0.0
    %v2206 = vmax.f32 %v2003, 0.0
    %v2207 = vmax.f32 %v1236, 0.0
    %v2208 = vmax.f32 %v1238, 0.0
    %v2209 = vmax.f32 %v1493, 0.0
    %v2210 = vmax.f32 %v1495, 0.0
    %v2211 = vmax.f32 %v1750, 0.0
    %v2212 = vmax.f32 %v1752, 0.0
    %v2213 = vmax.f32 %v2007, 0.0
    %v2214 = vmax.f32 %v2009, 0.0
    %v2215 = vmax.f32 %v1242, 0.0
    %v2216 = vmax.f32 %v1244, 0.0
    %v2217 = vmax.f32 %v1499, 0.0
    %v2218 = vmax.f32 %v1501, 0.0
    %v2219 = vmax.f32 %v1756, 0.0
    %v2220 = vmax.f32 %v1758, 0.0
    %v2221 = vmax.f32 %v2013, 0.0
    %v2222 = vmax.f32 %v2015, 0.0
    %v2223 = vmax.f32 %v1248, 0.0
    %v2224 = vmax.f32 %v1250, 0.0
    %v2225 = vmax.f32 %v1505, 0.0
    %v2226 = vmax.f32 %v1507, 0.0
    %v2227 = vmax.f32 %v1762, 0.0
    %v2228 = vmax.f32 %v1764, 0.0
    %v2229 = vmax.f32 %v2019, 0.0
    %v2230 = vmax.f32 %v2021, 0.0
    %v2231 = vmax.f32 %v1254, 0.0
    %v2232 = vmax.f32 %v1256, 0.0
    %v2233 = vmax.f32 %v1511, 0.0
    %v2234 = vmax.f32 %v1513, 0.0
    %v2235 = vmax.f32 %v1768, 0.0
    %v2236 = vmax.f32 %v1770, 0.0
    %v2237 = vmax.f32 %v2025, 0.0
    %v2238 = vmax.f32 %v2027, 0.0
    %v2239 = vmax.f32 %v1260, 0.0
    %v2240 = vmax.f32 %v1262, 0.0
    %v2241 = vmax.f32 %v1517, 0.0
    %v2242 = vmax.f32 %v1519, 0.0
    %v2243 = vmax.f32 %v1774, 0.0
    %v2244 = vmax.f32 %v1776, 0.0
    %v2245 = vmax.f32 %v2031, 0.0
    %v2246 = vmax.f32 %v2033, 0.0
    %v2247 = vmax.f32 %v1266, 0.0
    %v2248 = vmax.f32 %v1268, 0.0
    %v2249 = vmax.f32 %v1523, 0.0
    %v2250 = vmax.f32 %v1525, 0.0
    %v2251 = vmax.f32 %v1780, 0.0
    %v2252 = vmax.f32 %v1782, 0.0
    %v2253 = vmax.f32 %v2037, 0.0
    %v2254 = vmax.f32 %v2039, 0.0
    %v2255 = vmax.f32 %v1272, 0.0
    %v2256 = vmax.f32 %v1274, 0.0
    %v2257 = vmax.f32 %v1529, 0.0
    %v2258 = vmax.f32 %v1531, 0.0
    %v2259 = vmax.f32 %v1786, 0.0
    %v2260 = vmax.f32 %v1788, 0.0
    %v2261 = vmax.f32 %v2043, 0.0
    %v2262 = vmax.f32 %v2045, 0.0
    %v2263 = vmax.f32 %v1278, 0.0
    %v2264 = vmax.f32 %v1280, 0.0
    %v2265 = vmax.f32 %v1535, 0.0
    %v2266 = vmax.f32 %v1537, 0.0
    %v2267 = vmax.f32 %v1792, 0.0
    %v2268 = vmax.f32 %v1794, 0.0
    %v2269 = vmax.f32 %v2049, 0.0
    %v2270 = vmax.f32 %v2051, 0.0
    %v2271 = vmax.f32 %v1284, 0.0
    %v2272 = vmax.f32 %v1286, 0.0
    %v2273 = vmax.f32 %v1541, 0.0
    %v2274 = vmax.f32 %v1543, 0.0
    %v2275 = vmax.f32 %v1798, 0.0
    %v2276 = vmax.f32 %v1800, 0.0
    %v2277 = vmax.f32 %v2055, 0.0
    %v2278 = vmax.f32 %v2057, 0.0
    %v2279 = vmax.f32 %v1290, 0.0
    %v2280 = vmax.f32 %v1292, 0.0
    %v2281 = vmax.f32 %v1547, 0.0
    %v2282 = vmax.f32 %v1549, 0.0
    %v2283 = vmax.f32 %v1804, 0.0
    %v2284 = vmax.f32 %v1806, 0.0
    %v2285 = vmax.f32 %v2061, 0.0
    %v2286 = vmax.f32 %v2063, 0.0
    %v2287 = vmax.f32 %v1296, 0.0
    %v2288 = vmax.f32 %v1298, 0.0
    %v2289 = vmax.f32 %v1553, 0.0
    %v2290 = vmax.f32 %v1555, 0.0
    %v2291 = vmax.f32 %v1810, 0.0
    %v2292 = vmax.f32 %v1812, 0.0
    %v2293 = vmax.f32 %v2067, 0.0
    %v2294 = vmax.f32 %v2069, 0.0
    %v2295 = vmax.f32 %v1302, 0.0
    %v2296 = vmax.f32 %v1304, 0.0
    %v2297 = vmax.f32 %v1559, 0.0
    %v2298 = vmax.f32 %v1561, 0.0
    %v2299 = vmax.f32 %v1816, 0.0
    %v2300 = vmax.f32 %v1818, 0.0
    %v2301 = vmax.f32 %v2073, 0.0
    %v2302 = vmax.f32 %v2075, 0.0
    %v2303 = vmax.f32 %v1308, 0.0
    %v2304 = vmax.f32 %v1310, 0.0
    %v2305 = vmax.f32 %v1565, 0.0
    %v2306 = vmax.f32 %v1567, 0.0
    %v2307 = vmax.f32 %v1822, 0.0
    %v2308 = vmax.f32 %v1824, 0.0
    %v2309 = vmax.f32 %v2079, 0.0
    %v2310 = vmax.f32 %v2081, 0.0
    %v2311 = vmax.f32 %v1314, 0.0
    %v2312 = vmax.f32 %v1316, 0.0
    %v2313 = vmax.f32 %v1571, 0.0
    %v2314 = vmax.f32 %v1573, 0.0
    %v2315 = vmax.f32 %v1828, 0.0
    %v2316 = vmax.f32 %v1830, 0.0
    %v2317 = vmax.f32 %v2085, 0.0
    %v2318 = vmax.f32 %v2087, 0.0
    %v2319 = vmax.f32 %v1320, 0.0
    %v2320 = vmax.f32 %v1322, 0.0
    %v2321 = vmax.f32 %v1577, 0.0
    %v2322 = vmax.f32 %v1579, 0.0
    %v2323 = vmax.f32 %v1834, 0.0
    %v2324 = vmax.f32 %v1836, 0.0
    %v2325 = vmax.f32 %v2091, 0.0
    %v2326 = vmax.f32 %v2093, 0.0
    %v2327 = vmax.f32 %v1326, 0.0
    %v2328 = vmax.f32 %v1328, 0.0
    %v2329 = vmax.f32 %v1583, 0.0
    %v2330 = vmax.f32 %v1585, 0.0
    %v2331 = vmax.f32 %v1840, 0.0
    %v2332 = vmax.f32 %v1842, 0.0
    %v2333 = vmax.f32 %v2097, 0.0
    %v2334 = vmax.f32 %v2099, 0.0
    %v2335 = vmax.f32 %v1332, 0.0
    %v2336 = vmax.f32 %v1334, 0.0
    %v2337 = vmax.f32 %v1589, 0.0
    %v2338 = vmax.f32 %v1591, 0.0
    %v2339 = vmax.f32 %v1846, 0.0
    %v2340 = vmax.f32 %v1848, 0.0
    %v2341 = vmax.f32 %v2103, 0.0
    %v2342 = vmax.f32 %v2105, 0.0
    %v2343 = vmax.f32 %v1338, 0.0
    %v2344 = vmax.f32 %v1340, 0.0
    %v2345 = vmax.f32 %v1595, 0.0
    %v2346 = vmax.f32 %v1597, 0.0
    %v2347 = vmax.f32 %v1852, 0.0
    %v2348 = vmax.f32 %v1854, 0.0
    %v2349 = vmax.f32 %v2109, 0.0
    %v2350 = vmax.f32 %v2111, 0.0
    %v2351 = vmax.f32 %v1344, 0.0
    %v2352 = vmax.f32 %v1346, 0.0
    %v2353 = vmax.f32 %v1601, 0.0
    %v2354 = vmax.f32 %v1603, 0.0
    %v2355 = vmax.f32 %v1858, 0.0
    %v2356 = vmax.f32 %v1860, 0.0
    %v2357 = vmax.f32 %v2115, 0.0
    %v2358 = vmax.f32 %v2117, 0.0
    %v2359 = vmax.f32 %v1350, 0.0
    %v2360 = vmax.f32 %v1352, 0.0
    %v2361 = vmax.f32 %v1607, 0.0
    %v2362 = vmax.f32 %v1609, 0.0
    %v2363 = vmax.f32 %v1864, 0.0
    %v2364 = vmax.f32 %v1866, 0.0
    %v2365 = vmax.f32 %v2121, 0.0
    %v2366 = vmax.f32 %v2123, 0.0
    %v2367 = vmax.f32 %v1356, 0.0
    %v2368 = vmax.f32 %v1358, 0.0
    %v2369 = vmax.f32 %v1613, 0.0
    %v2370 = vmax.f32 %v1615, 0.0
    %v2371 = vmax.f32 %v1870, 0.0
    %v2372 = vmax.f32 %v1872, 0.0
    %v2373 = vmax.f32 %v2127, 0.0
    %v2374 = vmax.f32 %v2129, 0.0
    %v2375 = vmax.f32 %v1362, 0.0
    %v2376 = vmax.f32 %v1364, 0.0
    %v2377 = vmax.f32 %v1619, 0.0
    %v2378 = vmax.f32 %v1621, 0.0
    %v2379 = vmax.f32 %v1876, 0.0
    %v2380 = vmax.f32 %v1878, 0.0
    %v2381 = vmax.f32 %v2133, 0.0
    %v2382 = vmax.f32 %v2135, 0.0
    %v2383 = vmax.f32 %v1368, 0.0
    %v2384 = vmax.f32 %v1370, 0.0
    %v2385 = vmax.f32 %v1625, 0.0
    %v2386 = vmax.f32 %v1627, 0.0
    %v2387 = vmax.f32 %v1882, 0.0
    %v2388 = vmax.f32 %v1884, 0.0
    %v2389 = vmax.f32 %v2139, 0.0
    %v2390 = vmax.f32 %v2141, 0.0
    %v2391 = vmax.f32 %v1374, 0.0
    %v2392 = vmax.f32 %v1376, 0.0
    %v2393 = vmax.f32 %v1631, 0.0
    %v2394 = vmax.f32 %v1633, 0.0
    %v2395 = vmax.f32 %v1888, 0.0
    %v2396 = vmax.f32 %v1890, 0.0
    %v2397 = vmax.f32 %v2145, 0.0
    %v2398 = vmax.f32 %v2147, 0.0
    %v2399 = vmax.f32 %v1380, 0.0
    %v2400 = vmax.f32 %v1382, 0.0
    %v2401 = vmax.f32 %v1637, 0.0
    %v2402 = vmax.f32 %v1639, 0.0
    %v2403 = vmax.f32 %v1894, 0.0
    %v2404 = vmax.f32 %v1896, 0.0
    %v2405 = vmax.f32 %v2151, 0.0
    %v2406 = vmax.f32 %v2153, 0.0
    %v2407 = vmax.f32 %v1386, 0.0
    %v2408 = vmax.f32 %v1388, 0.0
    %v2409 = vmax.f32 %v1643, 0.0
    %v2410 = vmax.f32 %v1645, 0.0
    %v2411 = vmax.f32 %v1900, 0.0
    %v2412 = vmax.f32 %v1902, 0.0
    %v2413 = vmax.f32 %v2157, 0.0
    %v2414 = vmax.f32 %v2159, 0.0
    %v2415 = vmax.f32 %v1392, 0.0
    %v2416 = vmax.f32 %v1394, 0.0
    %v2417 = vmax.f32 %v1649, 0.0
    %v2418 = vmax.f32 %v1651, 0.0
    %v2419 = vmax.f32 %v1906, 0.0
    %v2420 = vmax.f32 %v1908, 0.0
    %v2421 = vmax.f32 %v2163, 0.0
    %v2422 = vmax.f32 %v2165, 0.0
    %v2423 = vld [vmem:[#allocation2] sm:$0xff]
    %v2424 = vld [vmem:[#allocation2 + $0x8] sm:$0xff]
    %v2425 = vld [vmem:[#allocation2 + $0x10] sm:$0xff]
    %v2426 = vld [vmem:[#allocation2 + $0x18] sm:$0xff]
    %v2427 = vld [vmem:[#allocation2 + $0x20] sm:$0xff]
    %v2428 = vld [vmem:[#allocation2 + $0x28] sm:$0xff]
    %v2429 = vld [vmem:[#allocation2 + $0x30] sm:$0xff]
    %v2430 = vld [vmem:[#allocation2 + $0x38] sm:$0xff]
    %v2431 = vmax.f32 %v2167, %v2175
    %v2432 = vmax.f32 %v2431, %v2183
    %v2433 = vmax.f32 %v2432, %v2191
    %v2434 = vrot.slane %v2433, 4
    %v2435 = vmax.f32 %v2433, %v2434
    %v2436 = vrot.slane %v2435, 2
    %v2437 = vmax.f32 %v2435, %v2436
    %v2438 = vrot.slane %v2437, 1
    %v2439 = vmax.f32 %v2437, %v2438
    %v2440 = vmax.f32 %v2168, %v2176
    %v2441 = vmax.f32 %v2440, %v2184
    %v2442 = vmax.f32 %v2441, %v2192
    %v2443 = vrot.slane %v2442, 4
    %v2444 = vmax.f32 %v2442, %v2443
    %v2445 = vrot.slane %v2444, 2
    %v2446 = vmax.f32 %v2444, %v2445
    %v2447 = vrot.slane %v2446, 1
    %v2448 = vmax.f32 %v2446, %v2447
    %v2449 = vmax.f32 %v2169, %v2177
    %v2450 = vmax.f32 %v2449, %v2185
    %v2451 = vmax.f32 %v2450, %v2193
    %v2452 = vrot.slane %v2451, 4
    %v2453 = vmax.f32 %v2451, %v2452
    %v2454 = vrot.slane %v2453, 2
    %v2455 = vmax.f32 %v2453, %v2454
    %v2456 = vrot.slane %v2455, 1
    %v2457 = vmax.f32 %v2455, %v2456
    %v2458 = vmax.f32 %v2170, %v2178
    %v2459 = vmax.f32 %v2458, %v2186
    %v2460 = vmax.f32 %v2459, %v2194
    %v2461 = vrot.slane %v2460, 4
    %v2462 = vmax.f32 %v2460, %v2461
    %v2463 = vrot.slane %v2462, 2
    %v2464 = vmax.f32 %v2462, %v2463
    %v2465 = vrot.slane %v2464, 1
    %v2466 = vmax.f32 %v2464, %v2465
    %v2467 = vmax.f32 %v2171, %v2179
    %v2468 = vmax.f32 %v2467, %v2187
    %v2469 = vmax.f32 %v2468, %v2195
    %v2470 = vrot.slane %v2469, 4
    %v2471 = vmax.f32 %v2469, %v2470
    %v2472 = vrot.slane %v2471, 2
    %v2473 = vmax.f32 %v2471, %v2472
    %v2474 = vrot.slane %v2473, 1
    %v2475 = vmax.f32 %v2473, %v2474
    %v2476 = vmax.f32 %v2172, %v2180
    %v2477 = vmax.f32 %v2476, %v2188
    %v2478 = vmax.f32 %v2477, %v2196
    %v2479 = vrot.slane %v2478, 4
    %v2480 = vmax.f32 %v2478, %v2479
    %v2481 = vrot.slane %v2480, 2
    %v2482 = vmax.f32 %v2480, %v2481
    %v2483 = vrot.slane %v2482, 1
    %v2484 = vmax.f32 %v2482, %v2483
    %v2485 = vmax.f32 %v2173, %v2181
    %v2486 = vmax.f32 %v2485, %v2189
    %v2487 = vmax.f32 %v2486, %v2197
    %v2488 = vrot.slane %v2487, 4
    %v2489 = vmax.f32 %v2487, %v2488
    %v2490 = vrot.slane %v2489, 2
    %v2491 = vmax.f32 %v2489, %v2490
    %v2492 = vrot.slane %v2491, 1
    %v2493 = vmax.f32 %v2491, %v2492
    %v2494 = vmax.f32 %v2174, %v2182
    %v2495 = vmax.f32 %v2494, %v2190
    %v2496 = vmax.f32 %v2495, %v2198
    %v2497 = vrot.slane %v2496, 4
    %v2498 = vmax.f32 %v2496, %v2497
    %v2499 = vrot.slane %v2498, 2
    %v2500 = vmax.f32 %v2498, %v2499
    %v2501 = vrot.slane %v2500, 1
    %v2502 = vmax.f32 %v2500, %v2501
    %v2503 = vmax.f32 %v2199, %v2207
    %v2504 = vmax.f32 %v2503, %v2215
    %v2505 = vmax.f32 %v2504, %v2223
    %v2506 = vrot.slane %v2505, 4
    %v2507 = vmax.f32 %v2505, %v2506
    %v2508 = vrot.slane %v2507, 2
    %v2509 = vmax.f32 %v2507, %v2508
    %v2510 = vrot.slane %v2509, 1
    %v2511 = vmax.f32 %v2509, %v2510
    %v2512 = vmax.f32 %v2200, %v2208
    %v2513 = vmax.f32 %v2512, %v2216
    %v2514 = vmax.f32 %v2513, %v2224
    %v2515 = vrot.slane %v2514, 4
    %v2516 = vmax.f32 %v2514, %v2515
    %v2517 = vrot.slane %v2516, 2
    %v2518 = vmax.f32 %v2516, %v2517
    %v2519 = vrot.slane %v2518, 1
    %v2520 = vmax.f32 %v2518, %v2519
    %v2521 = vmax.f32 %v2201, %v2209
    %v2522 = vmax.f32 %v2521, %v2217
    %v2523 = vmax.f32 %v2522, %v2225
    %v2524 = vrot.slane %v2523, 4
    %v2525 = vmax.f32 %v2523, %v2524
    %v2526 = vrot.slane %v2525, 2
    %v2527 = vmax.f32 %v2525, %v2526
    %v2528 = vrot.slane %v2527, 1
    %v2529 = vmax.f32 %v2527, %v2528
    %v2530 = vmax.f32 %v2202, %v2210
    %v2531 = vmax.f32 %v2530, %v2218
    %v2532 = vmax.f32 %v2531, %v2226
    %v2533 = vrot.slane %v2532, 4
    %v2534 = vmax.f32 %v2532, %v2533
    %v2535 = vrot.slane %v2534, 2
    %v2536 = vmax.f32 %v2534, %v2535
    %v2537 = vrot.slane %v2536, 1
    %v2538 = vmax.f32 %v2536, %v2537
    %v2539 = vmax.f32 %v2203, %v2211
    %v2540 = vmax.f32 %v2539, %v2219
    %v2541 = vmax.f32 %v2540, %v2227
    %v2542 = vrot.slane %v2541, 4
    %v2543 = vmax.f32 %v2541, %v2542
    %v2544 = vrot.slane %v2543, 2
    %v2545 = vmax.f32 %v2543, %v2544
    %v2546 = vrot.slane %v2545, 1
    %v2547 = vmax.f32 %v2545, %v2546
    %v2548 = vmax.f32 %v2204, %v2212
    %v2549 = vmax.f32 %v2548, %v2220
    %v2550 = vmax.f32 %v2549, %v2228
    %v2551 = vrot.slane %v2550, 4
    %v2552 = vmax.f32 %v2550, %v2551
    %v2553 = vrot.slane %v2552, 2
    %v2554 = vmax.f32 %v2552, %v2553
    %v2555 = vrot.slane %v2554, 1
    %v2556 = vmax.f32 %v2554, %v2555
    %v2557 = vmax.f32 %v2205, %v2213
    %v2558 = vmax.f32 %v2557, %v2221
    %v2559 = vmax.f32 %v2558, %v2229
    %v2560 = vrot.slane %v2559, 4
    %v2561 = vmax.f32 %v2559, %v2560
    %v2562 = vrot.slane %v2561, 2
    %v2563 = vmax.f32 %v2561, %v2562
    %v2564 = vrot.slane %v2563, 1
    %v2565 = vmax.f32 %v2563, %v2564
    %v2566 = vmax.f32 %v2206, %v2214
    %v2567 = vmax.f32 %v2566, %v2222
    %v2568 = vmax.f32 %v2567, %v2230
    %v2569 = vrot.slane %v2568, 4
    %v2570 = vmax.f32 %v2568, %v2569
    %v2571 = vrot.slane %v2570, 2
    %v2572 = vmax.f32 %v2570, %v2571
    %v2573 = vrot.slane %v2572, 1
    %v2574 = vmax.f32 %v2572, %v2573
    %v2575 = vmax.f32 %v2231, %v2239
    %v2576 = vmax.f32 %v2575, %v2247
    %v2577 = vmax.f32 %v2576, %v2255
    %v2578 = vrot.slane %v2577, 4
    %v2579 = vmax.f32 %v2577, %v2578
    %v2580 = vrot.slane %v2579, 2
    %v2581 = vmax.f32 %v2579, %v2580
    %v2582 = vrot.slane %v2581, 1
    %v2583 = vmax.f32 %v2581, %v2582
    %v2584 = vmax.f32 %v2232, %v2240
    %v2585 = vmax.f32 %v2584, %v2248
    %v2586 = vmax.f32 %v2585, %v2256
    %v2587 = vrot.slane %v2586, 4
    %v2588 = vmax.f32 %v2586, %v2587
    %v2589 = vrot.slane %v2588, 2
    %v2590 = vmax.f32 %v2588, %v2589
    %v2591 = vrot.slane %v2590, 1
    %v2592 = vmax.f32 %v2590, %v2591
    %v2593 = vmax.f32 %v2233, %v2241
    %v2594 = vmax.f32 %v2593, %v2249
    %v2595 = vmax.f32 %v2594, %v2257
    %v2596 = vrot.slane %v2595, 4
    %v2597 = vmax.f32 %v2595, %v2596
    %v2598 = vrot.slane %v2597, 2
    %v2599 = vmax.f32 %v2597, %v2598
    %v2600 = vrot.slane %v2599, 1
    %v2601 = vmax.f32 %v2599, %v2600
    %v2602 = vmax.f32 %v2234, %v2242
    %v2603 = vmax.f32 %v2602, %v2250
    %v2604 = vmax.f32 %v2603, %v2258
    %v2605 = vrot.slane %v2604, 4
    %v2606 = vmax.f32 %v2604, %v2605
    %v2607 = vrot.slane %v2606, 2
    %v2608 = vmax.f32 %v2606, %v2607
    %v2609 = vrot.slane %v2608, 1
    %v2610 = vmax.f32 %v2608, %v2609
    %v2611 = vmax.f32 %v2235, %v2243
    %v2612 = vmax.f32 %v2611, %v2251
    %v2613 = vmax.f32 %v2612, %v2259
    %v2614 = vrot.slane %v2613, 4
    %v2615 = vmax.f32 %v2613, %v2614
    %v2616 = vrot.slane %v2615, 2
    %v2617 = vmax.f32 %v2615, %v2616
    %v2618 = vrot.slane %v2617, 1
    %v2619 = vmax.f32 %v2617, %v2618
    %v2620 = vmax.f32 %v2236, %v2244
    %v2621 = vmax.f32 %v2620, %v2252
    %v2622 = vmax.f32 %v2621, %v2260
    %v2623 = vrot.slane %v2622, 4
    %v2624 = vmax.f32 %v2622, %v2623
    %v2625 = vrot.slane %v2624, 2
    %v2626 = vmax.f32 %v2624, %v2625
    %v2627 = vrot.slane %v2626, 1
    %v2628 = vmax.f32 %v2626, %v2627
    %v2629 = vmax.f32 %v2237, %v2245
    %v2630 = vmax.f32 %v2629, %v2253
    %v2631 = vmax.f32 %v2630, %v2261
    %v2632 = vrot.slane %v2631, 4
    %v2633 = vmax.f32 %v2631, %v2632
    %v2634 = vrot.slane %v2633, 2
    %v2635 = vmax.f32 %v2633, %v2634
    %v2636 = vrot.slane %v2635, 1
    %v2637 = vmax.f32 %v2635, %v2636
    %v2638 = vmax.f32 %v2238, %v2246
    %v2639 = vmax.f32 %v2638, %v2254
    %v2640 = vmax.f32 %v2639, %v2262
    %v2641 = vrot.slane %v2640, 4
    %v2642 = vmax.f32 %v2640, %v2641
    %v2643 = vrot.slane %v2642, 2
    %v2644 = vmax.f32 %v2642, %v2643
    %v2645 = vrot.slane %v2644, 1
    %v2646 = vmax.f32 %v2644, %v2645
    %v2647 = vmax.f32 %v2263, %v2271
    %v2648 = vmax.f32 %v2647, %v2279
    %v2649 = vmax.f32 %v2648, %v2287
    %v2650 = vrot.slane %v2649, 4
    %v2651 = vmax.f32 %v2649, %v2650
    %v2652 = vrot.slane %v2651, 2
    %v2653 = vmax.f32 %v2651, %v2652
    %v2654 = vrot.slane %v2653, 1
    %v2655 = vmax.f32 %v2653, %v2654
    %v2656 = vmax.f32 %v2264, %v2272
    %v2657 = vmax.f32 %v2656, %v2280
    %v2658 = vmax.f32 %v2657, %v2288
    %v2659 = vrot.slane %v2658, 4
    %v2660 = vmax.f32 %v2658, %v2659
    %v2661 = vrot.slane %v2660, 2
    %v2662 = vmax.f32 %v2660, %v2661
    %v2663 = vrot.slane %v2662, 1
    %v2664 = vmax.f32 %v2662, %v2663
    %v2665 = vmax.f32 %v2265, %v2273
    %v2666 = vmax.f32 %v2665, %v2281
    %v2667 = vmax.f32 %v2666, %v2289
    %v2668 = vrot.slane %v2667, 4
    %v2669 = vmax.f32 %v2667, %v2668
    %v2670 = vrot.slane %v2669, 2
    %v2671 = vmax.f32 %v2669, %v2670
    %v2672 = vrot.slane %v2671, 1
    %v2673 = vmax.f32 %v2671, %v2672
    %v2674 = vmax.f32 %v2266, %v2274
    %v2675 = vmax.f32 %v2674, %v2282
    %v2676 = vmax.f32 %v2675, %v2290
    %v2677 = vrot.slane %v2676, 4
    %v2678 = vmax.f32 %v2676, %v2677
    %v2679 = vrot.slane %v2678, 2
    %v2680 = vmax.f32 %v2678, %v2679
    %v2681 = vrot.slane %v2680, 1
    %v2682 = vmax.f32 %v2680, %v2681
    %v2683 = vmax.f32 %v2267, %v2275
    %v2684 = vmax.f32 %v2683, %v2283
    %v2685 = vmax.f32 %v2684, %v2291
    %v2686 = vrot.slane %v2685, 4
    %v2687 = vmax.f32 %v2685, %v2686
    %v2688 = vrot.slane %v2687, 2
    %v2689 = vmax.f32 %v2687, %v2688
    %v2690 = vrot.slane %v2689, 1
    %v2691 = vmax.f32 %v2689, %v2690
    %v2692 = vmax.f32 %v2268, %v2276
    %v2693 = vmax.f32 %v2692, %v2284
    %v2694 = vmax.f32 %v2693, %v2292
    %v2695 = vrot.slane %v2694, 4
    %v2696 = vmax.f32 %v2694, %v2695
    %v2697 = vrot.slane %v2696, 2
    %v2698 = vmax.f32 %v2696, %v2697
    %v2699 = vrot.slane %v2698, 1
    %v2700 = vmax.f32 %v2698, %v2699
    %v2701 = vmax.f32 %v2269, %v2277
    %v2702 = vmax.f32 %v2701, %v2285
    %v2703 = vmax.f32 %v2702, %v2293
    %v2704 = vrot.slane %v2703, 4
    %v2705 = vmax.f32 %v2703, %v2704
    %v2706 = vrot.slane %v2705, 2
    %v2707 = vmax.f32 %v2705, %v2706
    %v2708 = vrot.slane %v2707, 1
    %v2709 = vmax.f32 %v2707, %v2708
    %v2710 = vmax.f32 %v2270, %v2278
    %v2711 = vmax.f32 %v2710, %v2286
    %v2712 = vmax.f32 %v2711, %v2294
    %v2713 = vrot.slane %v2712, 4
    %v2714 = vmax.f32 %v2712, %v2713
    %v2715 = vrot.slane %v2714, 2
    %v2716 = vmax.f32 %v2714, %v2715
    %v2717 = vrot.slane %v2716, 1
    %v2718 = vmax.f32 %v2716, %v2717
    %v2719 = vmax.f32 %v2295, %v2303
    %v2720 = vmax.f32 %v2719, %v2311
    %v2721 = vmax.f32 %v2720, %v2319
    %v2722 = vrot.slane %v2721, 4
    %v2723 = vmax.f32 %v2721, %v2722
    %v2724 = vrot.slane %v2723, 2
    %v2725 = vmax.f32 %v2723, %v2724
    %v2726 = vrot.slane %v2725, 1
    %v2727 = vmax.f32 %v2725, %v2726
    %v2728 = vmax.f32 %v2296, %v2304
    %v2729 = vmax.f32 %v2728, %v2312
    %v2730 = vmax.f32 %v2729, %v2320
    %v2731 = vrot.slane %v2730, 4
    %v2732 = vmax.f32 %v2730, %v2731
    %v2733 = vrot.slane %v2732, 2
    %v2734 = vmax.f32 %v2732, %v2733
    %v2735 = vrot.slane %v2734, 1
    %v2736 = vmax.f32 %v2734, %v2735
    %v2737 = vmax.f32 %v2297, %v2305
    %v2738 = vmax.f32 %v2737, %v2313
    %v2739 = vmax.f32 %v2738, %v2321
    %v2740 = vrot.slane %v2739, 4
    %v2741 = vmax.f32 %v2739, %v2740
    %v2742 = vrot.slane %v2741, 2
    %v2743 = vmax.f32 %v2741, %v2742
    %v2744 = vrot.slane %v2743, 1
    %v2745 = vmax.f32 %v2743, %v2744
    %v2746 = vmax.f32 %v2298, %v2306
    %v2747 = vmax.f32 %v2746, %v2314
    %v2748 = vmax.f32 %v2747, %v2322
    %v2749 = vrot.slane %v2748, 4
    %v2750 = vmax.f32 %v2748, %v2749
    %v2751 = vrot.slane %v2750, 2
    %v2752 = vmax.f32 %v2750, %v2751
    %v2753 = vrot.slane %v2752, 1
    %v2754 = vmax.f32 %v2752, %v2753
    %v2755 = vmax.f32 %v2299, %v2307
    %v2756 = vmax.f32 %v2755, %v2315
    %v2757 = vmax.f32 %v2756, %v2323
    %v2758 = vrot.slane %v2757, 4
    %v2759 = vmax.f32 %v2757, %v2758
    %v2760 = vrot.slane %v2759, 2
    %v2761 = vmax.f32 %v2759, %v2760
    %v2762 = vrot.slane %v2761, 1
    %v2763 = vmax.f32 %v2761, %v2762
    %v2764 = vmax.f32 %v2300, %v2308
    %v2765 = vmax.f32 %v2764, %v2316
    %v2766 = vmax.f32 %v2765, %v2324
    %v2767 = vrot.slane %v2766, 4
    %v2768 = vmax.f32 %v2766, %v2767
    %v2769 = vrot.slane %v2768, 2
    %v2770 = vmax.f32 %v2768, %v2769
    %v2771 = vrot.slane %v2770, 1
    %v2772 = vmax.f32 %v2770, %v2771
    %v2773 = vmax.f32 %v2301, %v2309
    %v2774 = vmax.f32 %v2773, %v2317
    %v2775 = vmax.f32 %v2774, %v2325
    %v2776 = vrot.slane %v2775, 4
    %v2777 = vmax.f32 %v2775, %v2776
    %v2778 = vrot.slane %v2777, 2
    %v2779 = vmax.f32 %v2777, %v2778
    %v2780 = vrot.slane %v2779, 1
    %v2781 = vmax.f32 %v2779, %v2780
    %v2782 = vmax.f32 %v2302, %v2310
    %v2783 = vmax.f32 %v2782, %v2318
    %v2784 = vmax.f32 %v2783, %v2326
    %v2785 = vrot.slane %v2784, 4
    %v2786 = vmax.f32 %v2784, %v2785
    %v2787 = vrot.slane %v2786, 2
    %v2788 = vmax.f32 %v2786, %v2787
    %v2789 = vrot.slane %v2788, 1
    %v2790 = vmax.f32 %v2788, %v2789
    %v2791 = vmax.f32 %v2327, %v2335
    %v2792 = vmax.f32 %v2791, %v2343
    %v2793 = vmax.f32 %v2792, %v2351
    %v2794 = vrot.slane %v2793, 4
    %v2795 = vmax.f32 %v2793, %v2794
    %v2796 = vrot.slane %v2795, 2
    %v2797 = vmax.f32 %v2795, %v2796
    %v2798 = vrot.slane %v2797, 1
    %v2799 = vmax.f32 %v2797, %v2798
    %v2800 = vmax.f32 %v2328, %v2336
    %v2801 = vmax.f32 %v2800, %v2344
    %v2802 = vmax.f32 %v2801, %v2352
    %v2803 = vrot.slane %v2802, 4
    %v2804 = vmax.f32 %v2802, %v2803
    %v2805 = vrot.slane %v2804, 2
    %v2806 = vmax.f32 %v2804, %v2805
    %v2807 = vrot.slane %v2806, 1
    %v2808 = vmax.f32 %v2806, %v2807
    %v2809 = vmax.f32 %v2329, %v2337
    %v2810 = vmax.f32 %v2809, %v2345
    %v2811 = vmax.f32 %v2810, %v2353
    %v2812 = vrot.slane %v2811, 4
    %v2813 = vmax.f32 %v2811, %v2812
    %v2814 = vrot.slane %v2813, 2
    %v2815 = vmax.f32 %v2813, %v2814
    %v2816 = vrot.slane %v2815, 1
    %v2817 = vmax.f32 %v2815, %v2816
    %v2818 = vmax.f32 %v2330, %v2338
    %v2819 = vmax.f32 %v2818, %v2346
    %v2820 = vmax.f32 %v2819, %v2354
    %v2821 = vrot.slane %v2820, 4
    %v2822 = vmax.f32 %v2820, %v2821
    %v2823 = vrot.slane %v2822, 2
    %v2824 = vmax.f32 %v2822, %v2823
    %v2825 = vrot.slane %v2824, 1
    %v2826 = vmax.f32 %v2824, %v2825
    %v2827 = vmax.f32 %v2331, %v2339
    %v2828 = vmax.f32 %v2827, %v2347
    %v2829 = vmax.f32 %v2828, %v2355
    %v2830 = vrot.slane %v2829, 4
    %v2831 = vmax.f32 %v2829, %v2830
    %v2832 = vrot.slane %v2831, 2
    %v2833 = vmax.f32 %v2831, %v2832
    %v2834 = vrot.slane %v2833, 1
    %v2835 = vmax.f32 %v2833, %v2834
    %v2836 = vmax.f32 %v2332, %v2340
    %v2837 = vmax.f32 %v2836, %v2348
    %v2838 = vmax.f32 %v2837, %v2356
    %v2839 = vrot.slane %v2838, 4
    %v2840 = vmax.f32 %v2838, %v2839
    %v2841 = vrot.slane %v2840, 2
    %v2842 = vmax.f32 %v2840, %v2841
    %v2843 = vrot.slane %v2842, 1
    %v2844 = vmax.f32 %v2842, %v2843
    %v2845 = vmax.f32 %v2333, %v2341
    %v2846 = vmax.f32 %v2845, %v2349
    %v2847 = vmax.f32 %v2846, %v2357
    %v2848 = vrot.slane %v2847, 4
    %v2849 = vmax.f32 %v2847, %v2848
    %v2850 = vrot.slane %v2849, 2
    %v2851 = vmax.f32 %v2849, %v2850
    %v2852 = vrot.slane %v2851, 1
    %v2853 = vmax.f32 %v2851, %v2852
    %v2854 = vmax.f32 %v2334, %v2342
    %v2855 = vmax.f32 %v2854, %v2350
    %v2856 = vmax.f32 %v2855, %v2358
    %v2857 = vrot.slane %v2856, 4
    %v2858 = vmax.f32 %v2856, %v2857
    %v2859 = vrot.slane %v2858, 2
    %v2860 = vmax.f32 %v2858, %v2859
    %v2861 = vrot.slane %v2860, 1
    %v2862 = vmax.f32 %v2860, %v2861
    %v2863 = vmax.f32 %v2359, %v2367
    %v2864 = vmax.f32 %v2863, %v2375
    %v2865 = vmax.f32 %v2864, %v2383
    %v2866 = vrot.slane %v2865, 4
    %v2867 = vmax.f32 %v2865, %v2866
    %v2868 = vrot.slane %v2867, 2
    %v2869 = vmax.f32 %v2867, %v2868
    %v2870 = vrot.slane %v2869, 1
    %v2871 = vmax.f32 %v2869, %v2870
    %v2872 = vmax.f32 %v2360, %v2368
    %v2873 = vmax.f32 %v2872, %v2376
    %v2874 = vmax.f32 %v2873, %v2384
    %v2875 = vrot.slane %v2874, 4
    %v2876 = vmax.f32 %v2874, %v2875
    %v2877 = vrot.slane %v2876, 2
    %v2878 = vmax.f32 %v2876, %v2877
    %v2879 = vrot.slane %v2878, 1
    %v2880 = vmax.f32 %v2878, %v2879
    %v2881 = vmax.f32 %v2361, %v2369
    %v2882 = vmax.f32 %v2881, %v2377
    %v2883 = vmax.f32 %v2882, %v2385
    %v2884 = vrot.slane %v2883, 4
    %v2885 = vmax.f32 %v2883, %v2884
    %v2886 = vrot.slane %v2885, 2
    %v2887 = vmax.f32 %v2885, %v2886
    %v2888 = vrot.slane %v2887, 1
    %v2889 = vmax.f32 %v2887, %v2888
    %v2890 = vmax.f32 %v2362, %v2370
    %v2891 = vmax.f32 %v2890, %v2378
    %v2892 = vmax.f32 %v2891, %v2386
    %v2893 = vrot.slane %v2892, 4
    %v2894 = vmax.f32 %v2892, %v2893
    %v2895 = vrot.slane %v2894, 2
    %v2896 = vmax.f32 %v2894, %v2895
    %v2897 = vrot.slane %v2896, 1
    %v2898 = vmax.f32 %v2896, %v2897
    %v2899 = vmax.f32 %v2363, %v2371
    %v2900 = vmax.f32 %v2899, %v2379
    %v2901 = vmax.f32 %v2900, %v2387
    %v2902 = vrot.slane %v2901, 4
    %v2903 = vmax.f32 %v2901, %v2902
    %v2904 = vrot.slane %v2903, 2
    %v2905 = vmax.f32 %v2903, %v2904
    %v2906 = vrot.slane %v2905, 1
    %v2907 = vmax.f32 %v2905, %v2906
    %v2908 = vmax.f32 %v2364, %v2372
    %v2909 = vmax.f32 %v2908, %v2380
    %v2910 = vmax.f32 %v2909, %v2388
    %v2911 = vrot.slane %v2910, 4
    %v2912 = vmax.f32 %v2910, %v2911
    %v2913 = vrot.slane %v2912, 2
    %v2914 = vmax.f32 %v2912, %v2913
    %v2915 = vrot.slane %v2914, 1
    %v2916 = vmax.f32 %v2914, %v2915
    %v2917 = vmax.f32 %v2365, %v2373
    %v2918 = vmax.f32 %v2917, %v2381
    %v2919 = vmax.f32 %v2918, %v2389
    %v2920 = vrot.slane %v2919, 4
    %v2921 = vmax.f32 %v2919, %v2920
    %v2922 = vrot.slane %v2921, 2
    %v2923 = vmax.f32 %v2921, %v2922
    %v2924 = vrot.slane %v2923, 1
    %v2925 = vmax.f32 %v2923, %v2924
    %v2926 = vmax.f32 %v2366, %v2374
    %v2927 = vmax.f32 %v2926, %v2382
    %v2928 = vmax.f32 %v2927, %v2390
    %v2929 = vrot.slane %v2928, 4
    %v2930 = vmax.f32 %v2928, %v2929
    %v2931 = vrot.slane %v2930, 2
    %v2932 = vmax.f32 %v2930, %v2931
    %v2933 = vrot.slane %v2932, 1
    %v2934 = vmax.f32 %v2932, %v2933
    %v2935 = vmax.f32 %v2391, %v2399
    %v2936 = vmax.f32 %v2935, %v2407
    %v2937 = vmax.f32 %v2936, %v2415
    %v2938 = vrot.slane %v2937, 4
    %v2939 = vmax.f32 %v2937, %v2938
    %v2940 = vrot.slane %v2939, 2
    %v2941 = vmax.f32 %v2939, %v2940
    %v2942 = vrot.slane %v2941, 1
    %v2943 = vmax.f32 %v2941, %v2942
    %v2944 = vmax.f32 %v2392, %v2400
    %v2945 = vmax.f32 %v2944, %v2408
    %v2946 = vmax.f32 %v2945, %v2416
    %v2947 = vrot.slane %v2946, 4
    %v2948 = vmax.f32 %v2946, %v2947
    %v2949 = vrot.slane %v2948, 2
    %v2950 = vmax.f32 %v2948, %v2949
    %v2951 = vrot.slane %v2950, 1
    %v2952 = vmax.f32 %v2950, %v2951
    %v2953 = vmax.f32 %v2393, %v2401
    %v2954 = vmax.f32 %v2953, %v2409
    %v2955 = vmax.f32 %v2954, %v2417
    %v2956 = vrot.slane %v2955, 4
    %v2957 = vmax.f32 %v2955, %v2956
    %v2958 = vrot.slane %v2957, 2
    %v2959 = vmax.f32 %v2957, %v2958
    %v2960 = vrot.slane %v2959, 1
    %v2961 = vmax.f32 %v2959, %v2960
    %v2962 = vmax.f32 %v2394, %v2402
    %v2963 = vmax.f32 %v2962, %v2410
    %v2964 = vmax.f32 %v2963, %v2418
    %v2965 = vrot.slane %v2964, 4
    %v2966 = vmax.f32 %v2964, %v2965
    %v2967 = vrot.slane %v2966, 2
    %v2968 = vmax.f32 %v2966, %v2967
    %v2969 = vrot.slane %v2968, 1
    %v2970 = vmax.f32 %v2968, %v2969
    %v2971 = vmax.f32 %v2395, %v2403
    %v2972 = vmax.f32 %v2971, %v2411
    %v2973 = vmax.f32 %v2972, %v2419
    %v2974 = vrot.slane %v2973, 4
    %v2975 = vmax.f32 %v2973, %v2974
    %v2976 = vrot.slane %v2975, 2
    %v2977 = vmax.f32 %v2975, %v2976
    %v2978 = vrot.slane %v2977, 1
    %v2979 = vmax.f32 %v2977, %v2978
    %v2980 = vmax.f32 %v2396, %v2404
    %v2981 = vmax.f32 %v2980, %v2412
    %v2982 = vmax.f32 %v2981, %v2420
    %v2983 = vrot.slane %v2982, 4
    %v2984 = vmax.f32 %v2982, %v2983
    %v2985 = vrot.slane %v2984, 2
    %v2986 = vmax.f32 %v2984, %v2985
    %v2987 = vrot.slane %v2986, 1
    %v2988 = vmax.f32 %v2986, %v2987
    %v2989 = vmax.f32 %v2397, %v2405
    %v2990 = vmax.f32 %v2989, %v2413
    %v2991 = vmax.f32 %v2990, %v2421
    %v2992 = vrot.slane %v2991, 4
    %v2993 = vmax.f32 %v2991, %v2992
    %v2994 = vrot.slane %v2993, 2
    %v2995 = vmax.f32 %v2993, %v2994
    %v2996 = vrot.slane %v2995, 1
    %v2997 = vmax.f32 %v2995, %v2996
    %v2998 = vmax.f32 %v2398, %v2406
    %v2999 = vmax.f32 %v2998, %v2414
    %v3000 = vmax.f32 %v2999, %v2422
    %v3001 = vrot.slane %v3000, 4
    %v3002 = vmax.f32 %v3000, %v3001
    %v3003 = vrot.slane %v3002, 2
    %v3004 = vmax.f32 %v3002, %v3003
    %v3005 = vrot.slane %v3004, 1
    %v3006 = vmax.f32 %v3004, %v3005
    %vm3071 = vcmask 1041409
    %v3072 = vsel %vm3071, %v2511, %v2439
    %vm3073 = vcmask 1042434
    %v3074 = vsel %vm3073, %v2583, %v3072
    %vm3075 = vcmask 1043459
    %v3076 = vsel %vm3075, %v2655, %v3074
    %vm3077 = vcmask 1044484
    %v3078 = vsel %vm3077, %v2727, %v3076
    %vm3079 = vcmask 1045509
    %v3080 = vsel %vm3079, %v2799, %v3078
    %vm3081 = vcmask 1046534
    %v3082 = vsel %vm3081, %v2871, %v3080
    %vm3083 = vcmask 1047559
    %v3084 = vsel %vm3083, %v2943, %v3082
    %v3085 = vsel %vm3071, %v2520, %v2448
    %v3086 = vsel %vm3073, %v2592, %v3085
    %v3087 = vsel %vm3075, %v2664, %v3086
    %v3088 = vsel %vm3077, %v2736, %v3087
    %v3089 = vsel %vm3079, %v2808, %v3088
    %v3090 = vsel %vm3081, %v2880, %v3089
    %v3091 = vsel %vm3083, %v2952, %v3090
    %v3092 = vsel %vm3071, %v2529, %v2457
    %v3093 = vsel %vm3073, %v2601, %v3092
    %v3094 = vsel %vm3075, %v2673, %v3093
    %v3095 = vsel %vm3077, %v2745, %v3094
    %v3096 = vsel %vm3079, %v2817, %v3095
    %v3097 = vsel %vm3081, %v2889, %v3096
    %v3098 = vsel %vm3083, %v2961, %v3097
    %v3099 = vsel %vm3071, %v2538, %v2466
    %v3100 = vsel %vm3073, %v2610, %v3099
    %v3101 = vsel %vm3075, %v2682, %v3100
    %v3102 = vsel %vm3077, %v2754, %v3101
    %v3103 = vsel %vm3079, %v2826, %v3102
    %v3104 = vsel %vm3081, %v2898, %v3103
    %v3105 = vsel %vm3083, %v2970, %v3104
    %v3106 = vsel %vm3071, %v2547, %v2475
    %v3107 = vsel %vm3073, %v2619, %v3106
    %v3108 = vsel %vm3075, %v2691, %v3107
    %v3109 = vsel %vm3077, %v2763, %v3108
    %v3110 = vsel %vm3079, %v2835, %v3109
    %v3111 = vsel %vm3081, %v2907, %v3110
    %v3112 = vsel %vm3083, %v2979, %v3111
    %v3113 = vsel %vm3071, %v2556, %v2484
    %v3114 = vsel %vm3073, %v2628, %v3113
    %v3115 = vsel %vm3075, %v2700, %v3114
    %v3116 = vsel %vm3077, %v2772, %v3115
    %v3117 = vsel %vm3079, %v2844, %v3116
    %v3118 = vsel %vm3081, %v2916, %v3117
    %v3119 = vsel %vm3083, %v2988, %v3118
    %v3120 = vsel %vm3071, %v2565, %v2493
    %v3121 = vsel %vm3073, %v2637, %v3120
    %v3122 = vsel %vm3075, %v2709, %v3121
    %v3123 = vsel %vm3077, %v2781, %v3122
    %v3124 = vsel %vm3079, %v2853, %v3123
    %v3125 = vsel %vm3081, %v2925, %v3124
    %v3126 = vsel %vm3083, %v2997, %v3125
    %v3127 = vsel %vm3071, %v2574, %v2502
    %v3128 = vsel %vm3073, %v2646, %v3127
    %v3129 = vsel %vm3075, %v2718, %v3128
    %v3130 = vsel %vm3077, %v2790, %v3129
    %v3131 = vsel %vm3079, %v2862, %v3130
    %v3132 = vsel %vm3081, %v2934, %v3131
    %v3133 = vsel %vm3083, %v3006, %v3132
    %v3142 = vmax.f32 %v2423, %v3084
    %v3143 = vmax.f32 %v2424, %v3091
    %v3144 = vmax.f32 %v2425, %v3098
    %v3145 = vmax.f32 %v2426, %v3105
    %v3146 = vmax.f32 %v2427, %v3112
    %v3147 = vmax.f32 %v2428, %v3119
    %v3148 = vmax.f32 %v2429, %v3126
    %v3149 = vmax.f32 %v2430, %v3133
    %3150 = vst [vmem:[#allocation2] sm:$0xff] %v3142
    %3151 = vst [vmem:[#allocation2 + $0x8] sm:$0xff] %v3143
    %3152 = vst [vmem:[#allocation2 + $0x10] sm:$0xff] %v3144
    %3153 = vst [vmem:[#allocation2 + $0x18] sm:$0xff] %v3145
    %3154 = vst [vmem:[#allocation2 + $0x20] sm:$0xff] %v3146
    %3155 = vst [vmem:[#allocation2 + $0x28] sm:$0xff] %v3147
    %3156 = vst [vmem:[#allocation2 + $0x30] sm:$0xff] %v3148
    %3157 = vst [vmem:[#allocation2 + $0x38] sm:$0xff] %v3149
    // Predicated region
    $region106: #{tpu_custom_call.1} parent=1 // pred_check
      %p3158 = pneg %p194
    $region107: #{tpu_custom_call.1} parent=1 // pred_check_branch
      %3160 = sbr.rel (%p3158) target = $region109
    $region108: #{tpu_custom_call.1} parent=1 // pred_region
      %v3161 = vld [vmem:[#allocation2] sm:$0xff]
      %v3162 = vld [vmem:[#allocation2 + $0x8] sm:$0xff]
      %v3163 = vld [vmem:[#allocation2 + $0x10] sm:$0xff]
      %v3164 = vld [vmem:[#allocation2 + $0x18] sm:$0xff]
      %v3165 = vld [vmem:[#allocation2 + $0x20] sm:$0xff]
      %v3166 = vld [vmem:[#allocation2 + $0x28] sm:$0xff]
      %v3167 = vld [vmem:[#allocation2 + $0x30] sm:$0xff]
      %v3168 = vld [vmem:[#allocation2 + $0x38] sm:$0xff]
      %v3169 = vld [vmem:[#allocation14] sm:$0xff]
      %v3170 = vld [vmem:[#allocation14 + $0x8] sm:$0xff]
      %v3171 = vld [vmem:[#allocation14 + $0x10] sm:$0xff]
      %v3172 = vld [vmem:[#allocation14 + $0x18] sm:$0xff]
      %v3173 = vld [vmem:[#allocation14 + $0x20] sm:$0xff]
      %v3174 = vld [vmem:[#allocation14 + $0x28] sm:$0xff]
      %v3175 = vld [vmem:[#allocation14 + $0x30] sm:$0xff]
      %v3176 = vld [vmem:[#allocation14 + $0x38] sm:$0xff]
      %v3177 = vld [vmem:[#allocation14 + $0x40] sm:$0xff]
      %v3178 = vld [vmem:[#allocation14 + $0x48] sm:$0xff]
      %v3179 = vld [vmem:[#allocation14 + $0x50] sm:$0xff]
      %v3180 = vld [vmem:[#allocation14 + $0x58] sm:$0xff]
      %v3181 = vld [vmem:[#allocation14 + $0x60] sm:$0xff]
      %v3182 = vld [vmem:[#allocation14 + $0x68] sm:$0xff]
      %v3183 = vld [vmem:[#allocation14 + $0x70] sm:$0xff]
      %v3184 = vld [vmem:[#allocation14 + $0x78] sm:$0xff]
      %v3185 = vld [vmem:[#allocation14 + $0x80] sm:$0xff]
      %v3186 = vld [vmem:[#allocation14 + $0x88] sm:$0xff]
      %v3187 = vld [vmem:[#allocation14 + $0x90] sm:$0xff]
      %v3188 = vld [vmem:[#allocation14 + $0x98] sm:$0xff]
      %v3189 = vld [vmem:[#allocation14 + $0xa0] sm:$0xff]
      %v3190 = vld [vmem:[#allocation14 + $0xa8] sm:$0xff]
      %v3191 = vld [vmem:[#allocation14 + $0xb0] sm:$0xff]
      %v3192 = vld [vmem:[#allocation14 + $0xb8] sm:$0xff]
      %v3193 = vld [vmem:[#allocation14 + $0xc0] sm:$0xff]
      %v3194 = vld [vmem:[#allocation14 + $0xc8] sm:$0xff]
      %v3195 = vld [vmem:[#allocation14 + $0xd0] sm:$0xff]
      %v3196 = vld [vmem:[#allocation14 + $0xd8] sm:$0xff]
      %v3197 = vld [vmem:[#allocation14 + $0xe0] sm:$0xff]
      %v3198 = vld [vmem:[#allocation14 + $0xe8] sm:$0xff]
      %v3199 = vld [vmem:[#allocation14 + $0xf0] sm:$0xff]
      %v3200 = vld [vmem:[#allocation14 + $0xf8] sm:$0xff]
      %v3201 = vld [vmem:[#allocation14 + $0x100] sm:$0xff]
      %v3202 = vld [vmem:[#allocation14 + $0x108] sm:$0xff]
      %v3203 = vld [vmem:[#allocation14 + $0x110] sm:$0xff]
      %v3204 = vld [vmem:[#allocation14 + $0x118] sm:$0xff]
      %v3205 = vld [vmem:[#allocation14 + $0x120] sm:$0xff]
      %v3206 = vld [vmem:[#allocation14 + $0x128] sm:$0xff]
      %v3207 = vld [vmem:[#allocation14 + $0x130] sm:$0xff]
      %v3208 = vld [vmem:[#allocation14 + $0x138] sm:$0xff]
      %v3209 = vld [vmem:[#allocation14 + $0x140] sm:$0xff]
      %v3210 = vld [vmem:[#allocation14 + $0x148] sm:$0xff]
      %v3211 = vld [vmem:[#allocation14 + $0x150] sm:$0xff]
      %v3212 = vld [vmem:[#allocation14 + $0x158] sm:$0xff]
      %v3213 = vld [vmem:[#allocation14 + $0x160] sm:$0xff]
      %v3214 = vld [vmem:[#allocation14 + $0x168] sm:$0xff]
      %v3215 = vld [vmem:[#allocation14 + $0x170] sm:$0xff]
      %v3216 = vld [vmem:[#allocation14 + $0x178] sm:$0xff]
      %v3217 = vld [vmem:[#allocation14 + $0x180] sm:$0xff]
      %v3218 = vld [vmem:[#allocation14 + $0x188] sm:$0xff]
      %v3219 = vld [vmem:[#allocation14 + $0x190] sm:$0xff]
      %v3220 = vld [vmem:[#allocation14 + $0x198] sm:$0xff]
      %v3221 = vld [vmem:[#allocation14 + $0x1a0] sm:$0xff]
      %v3222 = vld [vmem:[#allocation14 + $0x1a8] sm:$0xff]
      %v3223 = vld [vmem:[#allocation14 + $0x1b0] sm:$0xff]
      %v3224 = vld [vmem:[#allocation14 + $0x1b8] sm:$0xff]
      %v3225 = vld [vmem:[#allocation14 + $0x1c0] sm:$0xff]
      %v3226 = vld [vmem:[#allocation14 + $0x1c8] sm:$0xff]
      %v3227 = vld [vmem:[#allocation14 + $0x1d0] sm:$0xff]
      %v3228 = vld [vmem:[#allocation14 + $0x1d8] sm:$0xff]
      %v3229 = vld [vmem:[#allocation14 + $0x1e0] sm:$0xff]
      %v3230 = vld [vmem:[#allocation14 + $0x1e8] sm:$0xff]
      %v3231 = vld [vmem:[#allocation14 + $0x1f0] sm:$0xff]
      %v3232 = vld [vmem:[#allocation14 + $0x1f8] sm:$0xff]
      %v3233 = vld [vmem:[#allocation14 + $0x200] sm:$0xff]
      %v3234 = vld [vmem:[#allocation14 + $0x208] sm:$0xff]
      %v3235 = vld [vmem:[#allocation14 + $0x210] sm:$0xff]
      %v3236 = vld [vmem:[#allocation14 + $0x218] sm:$0xff]
      %v3237 = vld [vmem:[#allocation14 + $0x220] sm:$0xff]
      %v3238 = vld [vmem:[#allocation14 + $0x228] sm:$0xff]
      %v3239 = vld [vmem:[#allocation14 + $0x230] sm:$0xff]
      %v3240 = vld [vmem:[#allocation14 + $0x238] sm:$0xff]
      %v3241 = vld [vmem:[#allocation14 + $0x240] sm:$0xff]
      %v3242 = vld [vmem:[#allocation14 + $0x248] sm:$0xff]
      %v3243 = vld [vmem:[#allocation14 + $0x250] sm:$0xff]
      %v3244 = vld [vmem:[#allocation14 + $0x258] sm:$0xff]
      %v3245 = vld [vmem:[#allocation14 + $0x260] sm:$0xff]
      %v3246 = vld [vmem:[#allocation14 + $0x268] sm:$0xff]
      %v3247 = vld [vmem:[#allocation14 + $0x270] sm:$0xff]
      %v3248 = vld [vmem:[#allocation14 + $0x278] sm:$0xff]
      %v3249 = vld [vmem:[#allocation14 + $0x280] sm:$0xff]
      %v3250 = vld [vmem:[#allocation14 + $0x288] sm:$0xff]
      %v3251 = vld [vmem:[#allocation14 + $0x290] sm:$0xff]
      %v3252 = vld [vmem:[#allocation14 + $0x298] sm:$0xff]
      %v3253 = vld [vmem:[#allocation14 + $0x2a0] sm:$0xff]
      %v3254 = vld [vmem:[#allocation14 + $0x2a8] sm:$0xff]
      %v3255 = vld [vmem:[#allocation14 + $0x2b0] sm:$0xff]
      %v3256 = vld [vmem:[#allocation14 + $0x2b8] sm:$0xff]
      %v3257 = vld [vmem:[#allocation14 + $0x2c0] sm:$0xff]
      %v3258 = vld [vmem:[#allocation14 + $0x2c8] sm:$0xff]
      %v3259 = vld [vmem:[#allocation14 + $0x2d0] sm:$0xff]
      %v3260 = vld [vmem:[#allocation14 + $0x2d8] sm:$0xff]
      %v3261 = vld [vmem:[#allocation14 + $0x2e0] sm:$0xff]
      %v3262 = vld [vmem:[#allocation14 + $0x2e8] sm:$0xff]
      %v3263 = vld [vmem:[#allocation14 + $0x2f0] sm:$0xff]
      %v3264 = vld [vmem:[#allocation14 + $0x2f8] sm:$0xff]
      %v3265 = vld [vmem:[#allocation14 + $0x300] sm:$0xff]
      %v3266 = vld [vmem:[#allocation14 + $0x308] sm:$0xff]
      %v3267 = vld [vmem:[#allocation14 + $0x310] sm:$0xff]
      %v3268 = vld [vmem:[#allocation14 + $0x318] sm:$0xff]
      %v3269 = vld [vmem:[#allocation14 + $0x320] sm:$0xff]
      %v3270 = vld [vmem:[#allocation14 + $0x328] sm:$0xff]
      %v3271 = vld [vmem:[#allocation14 + $0x330] sm:$0xff]
      %v3272 = vld [vmem:[#allocation14 + $0x338] sm:$0xff]
      %v3273 = vld [vmem:[#allocation14 + $0x340] sm:$0xff]
      %v3274 = vld [vmem:[#allocation14 + $0x348] sm:$0xff]
      %v3275 = vld [vmem:[#allocation14 + $0x350] sm:$0xff]
      %v3276 = vld [vmem:[#allocation14 + $0x358] sm:$0xff]
      %v3277 = vld [vmem:[#allocation14 + $0x360] sm:$0xff]
      %v3278 = vld [vmem:[#allocation14 + $0x368] sm:$0xff]
      %v3279 = vld [vmem:[#allocation14 + $0x370] sm:$0xff]
      %v3280 = vld [vmem:[#allocation14 + $0x378] sm:$0xff]
      %v3281 = vld [vmem:[#allocation14 + $0x380] sm:$0xff]
      %v3282 = vld [vmem:[#allocation14 + $0x388] sm:$0xff]
      %v3283 = vld [vmem:[#allocation14 + $0x390] sm:$0xff]
      %v3284 = vld [vmem:[#allocation14 + $0x398] sm:$0xff]
      %v3285 = vld [vmem:[#allocation14 + $0x3a0] sm:$0xff]
      %v3286 = vld [vmem:[#allocation14 + $0x3a8] sm:$0xff]
      %v3287 = vld [vmem:[#allocation14 + $0x3b0] sm:$0xff]
      %v3288 = vld [vmem:[#allocation14 + $0x3b8] sm:$0xff]
      %v3289 = vld [vmem:[#allocation14 + $0x3c0] sm:$0xff]
      %v3290 = vld [vmem:[#allocation14 + $0x3c8] sm:$0xff]
      %v3291 = vld [vmem:[#allocation14 + $0x3d0] sm:$0xff]
      %v3292 = vld [vmem:[#allocation14 + $0x3d8] sm:$0xff]
      %v3293 = vld [vmem:[#allocation14 + $0x3e0] sm:$0xff]
      %v3294 = vld [vmem:[#allocation14 + $0x3e8] sm:$0xff]
      %v3295 = vld [vmem:[#allocation14 + $0x3f0] sm:$0xff]
      %v3296 = vld [vmem:[#allocation14 + $0x3f8] sm:$0xff]
      %v3297 = vld [vmem:[#allocation14 + $0x400] sm:$0xff]
      %v3298 = vld [vmem:[#allocation14 + $0x408] sm:$0xff]
      %v3299 = vld [vmem:[#allocation14 + $0x410] sm:$0xff]
      %v3300 = vld [vmem:[#allocation14 + $0x418] sm:$0xff]
      %v3301 = vld [vmem:[#allocation14 + $0x420] sm:$0xff]
      %v3302 = vld [vmem:[#allocation14 + $0x428] sm:$0xff]
      %v3303 = vld [vmem:[#allocation14 + $0x430] sm:$0xff]
      %v3304 = vld [vmem:[#allocation14 + $0x438] sm:$0xff]
      %v3305 = vld [vmem:[#allocation14 + $0x440] sm:$0xff]
      %v3306 = vld [vmem:[#allocation14 + $0x448] sm:$0xff]
      %v3307 = vld [vmem:[#allocation14 + $0x450] sm:$0xff]
      %v3308 = vld [vmem:[#allocation14 + $0x458] sm:$0xff]
      %v3309 = vld [vmem:[#allocation14 + $0x460] sm:$0xff]
      %v3310 = vld [vmem:[#allocation14 + $0x468] sm:$0xff]
      %v3311 = vld [vmem:[#allocation14 + $0x470] sm:$0xff]
      %v3312 = vld [vmem:[#allocation14 + $0x478] sm:$0xff]
      %v3313 = vld [vmem:[#allocation14 + $0x480] sm:$0xff]
      %v3314 = vld [vmem:[#allocation14 + $0x488] sm:$0xff]
      %v3315 = vld [vmem:[#allocation14 + $0x490] sm:$0xff]
      %v3316 = vld [vmem:[#allocation14 + $0x498] sm:$0xff]
      %v3317 = vld [vmem:[#allocation14 + $0x4a0] sm:$0xff]
      %v3318 = vld [vmem:[#allocation14 + $0x4a8] sm:$0xff]
      %v3319 = vld [vmem:[#allocation14 + $0x4b0] sm:$0xff]
      %v3320 = vld [vmem:[#allocation14 + $0x4b8] sm:$0xff]
      %v3321 = vld [vmem:[#allocation14 + $0x4c0] sm:$0xff]
      %v3322 = vld [vmem:[#allocation14 + $0x4c8] sm:$0xff]
      %v3323 = vld [vmem:[#allocation14 + $0x4d0] sm:$0xff]
      %v3324 = vld [vmem:[#allocation14 + $0x4d8] sm:$0xff]
      %v3325 = vld [vmem:[#allocation14 + $0x4e0] sm:$0xff]
      %v3326 = vld [vmem:[#allocation14 + $0x4e8] sm:$0xff]
      %v3327 = vld [vmem:[#allocation14 + $0x4f0] sm:$0xff]
      %v3328 = vld [vmem:[#allocation14 + $0x4f8] sm:$0xff]
      %v3329 = vld [vmem:[#allocation14 + $0x500] sm:$0xff]
      %v3330 = vld [vmem:[#allocation14 + $0x508] sm:$0xff]
      %v3331 = vld [vmem:[#allocation14 + $0x510] sm:$0xff]
      %v3332 = vld [vmem:[#allocation14 + $0x518] sm:$0xff]
      %v3333 = vld [vmem:[#allocation14 + $0x520] sm:$0xff]
      %v3334 = vld [vmem:[#allocation14 + $0x528] sm:$0xff]
      %v3335 = vld [vmem:[#allocation14 + $0x530] sm:$0xff]
      %v3336 = vld [vmem:[#allocation14 + $0x538] sm:$0xff]
      %v3337 = vld [vmem:[#allocation14 + $0x540] sm:$0xff]
      %v3338 = vld [vmem:[#allocation14 + $0x548] sm:$0xff]
      %v3339 = vld [vmem:[#allocation14 + $0x550] sm:$0xff]
      %v3340 = vld [vmem:[#allocation14 + $0x558] sm:$0xff]
      %v3341 = vld [vmem:[#allocation14 + $0x560] sm:$0xff]
      %v3342 = vld [vmem:[#allocation14 + $0x568] sm:$0xff]
      %v3343 = vld [vmem:[#allocation14 + $0x570] sm:$0xff]
      %v3344 = vld [vmem:[#allocation14 + $0x578] sm:$0xff]
      %v3345 = vld [vmem:[#allocation14 + $0x580] sm:$0xff]
      %v3346 = vld [vmem:[#allocation14 + $0x588] sm:$0xff]
      %v3347 = vld [vmem:[#allocation14 + $0x590] sm:$0xff]
      %v3348 = vld [vmem:[#allocation14 + $0x598] sm:$0xff]
      %v3349 = vld [vmem:[#allocation14 + $0x5a0] sm:$0xff]
      %v3350 = vld [vmem:[#allocation14 + $0x5a8] sm:$0xff]
      %v3351 = vld [vmem:[#allocation14 + $0x5b0] sm:$0xff]
      %v3352 = vld [vmem:[#allocation14 + $0x5b8] sm:$0xff]
      %v3353 = vld [vmem:[#allocation14 + $0x5c0] sm:$0xff]
      %v3354 = vld [vmem:[#allocation14 + $0x5c8] sm:$0xff]
      %v3355 = vld [vmem:[#allocation14 + $0x5d0] sm:$0xff]
      %v3356 = vld [vmem:[#allocation14 + $0x5d8] sm:$0xff]
      %v3357 = vld [vmem:[#allocation14 + $0x5e0] sm:$0xff]
      %v3358 = vld [vmem:[#allocation14 + $0x5e8] sm:$0xff]
      %v3359 = vld [vmem:[#allocation14 + $0x5f0] sm:$0xff]
      %v3360 = vld [vmem:[#allocation14 + $0x5f8] sm:$0xff]
      %v3361 = vld [vmem:[#allocation14 + $0x600] sm:$0xff]
      %v3362 = vld [vmem:[#allocation14 + $0x608] sm:$0xff]
      %v3363 = vld [vmem:[#allocation14 + $0x610] sm:$0xff]
      %v3364 = vld [vmem:[#allocation14 + $0x618] sm:$0xff]
      %v3365 = vld [vmem:[#allocation14 + $0x620] sm:$0xff]
      %v3366 = vld [vmem:[#allocation14 + $0x628] sm:$0xff]
      %v3367 = vld [vmem:[#allocation14 + $0x630] sm:$0xff]
      %v3368 = vld [vmem:[#allocation14 + $0x638] sm:$0xff]
      %v3369 = vld [vmem:[#allocation14 + $0x640] sm:$0xff]
      %v3370 = vld [vmem:[#allocation14 + $0x648] sm:$0xff]
      %v3371 = vld [vmem:[#allocation14 + $0x650] sm:$0xff]
      %v3372 = vld [vmem:[#allocation14 + $0x658] sm:$0xff]
      %v3373 = vld [vmem:[#allocation14 + $0x660] sm:$0xff]
      %v3374 = vld [vmem:[#allocation14 + $0x668] sm:$0xff]
      %v3375 = vld [vmem:[#allocation14 + $0x670] sm:$0xff]
      %v3376 = vld [vmem:[#allocation14 + $0x678] sm:$0xff]
      %v3377 = vld [vmem:[#allocation14 + $0x680] sm:$0xff]
      %v3378 = vld [vmem:[#allocation14 + $0x688] sm:$0xff]
      %v3379 = vld [vmem:[#allocation14 + $0x690] sm:$0xff]
      %v3380 = vld [vmem:[#allocation14 + $0x698] sm:$0xff]
      %v3381 = vld [vmem:[#allocation14 + $0x6a0] sm:$0xff]
      %v3382 = vld [vmem:[#allocation14 + $0x6a8] sm:$0xff]
      %v3383 = vld [vmem:[#allocation14 + $0x6b0] sm:$0xff]
      %v3384 = vld [vmem:[#allocation14 + $0x6b8] sm:$0xff]
      %v3385 = vld [vmem:[#allocation14 + $0x6c0] sm:$0xff]
      %v3386 = vld [vmem:[#allocation14 + $0x6c8] sm:$0xff]
      %v3387 = vld [vmem:[#allocation14 + $0x6d0] sm:$0xff]
      %v3388 = vld [vmem:[#allocation14 + $0x6d8] sm:$0xff]
      %v3389 = vld [vmem:[#allocation14 + $0x6e0] sm:$0xff]
      %v3390 = vld [vmem:[#allocation14 + $0x6e8] sm:$0xff]
      %v3391 = vld [vmem:[#allocation14 + $0x6f0] sm:$0xff]
      %v3392 = vld [vmem:[#allocation14 + $0x6f8] sm:$0xff]
      %v3393 = vld [vmem:[#allocation14 + $0x700] sm:$0xff]
      %v3394 = vld [vmem:[#allocation14 + $0x708] sm:$0xff]
      %v3395 = vld [vmem:[#allocation14 + $0x710] sm:$0xff]
      %v3396 = vld [vmem:[#allocation14 + $0x718] sm:$0xff]
      %v3397 = vld [vmem:[#allocation14 + $0x720] sm:$0xff]
      %v3398 = vld [vmem:[#allocation14 + $0x728] sm:$0xff]
      %v3399 = vld [vmem:[#allocation14 + $0x730] sm:$0xff]
      %v3400 = vld [vmem:[#allocation14 + $0x738] sm:$0xff]
      %v3401 = vld [vmem:[#allocation14 + $0x740] sm:$0xff]
      %v3402 = vld [vmem:[#allocation14 + $0x748] sm:$0xff]
      %v3403 = vld [vmem:[#allocation14 + $0x750] sm:$0xff]
      %v3404 = vld [vmem:[#allocation14 + $0x758] sm:$0xff]
      %v3405 = vld [vmem:[#allocation14 + $0x760] sm:$0xff]
      %v3406 = vld [vmem:[#allocation14 + $0x768] sm:$0xff]
      %v3407 = vld [vmem:[#allocation14 + $0x770] sm:$0xff]
      %v3408 = vld [vmem:[#allocation14 + $0x778] sm:$0xff]
      %v3409 = vld [vmem:[#allocation14 + $0x780] sm:$0xff]
      %v3410 = vld [vmem:[#allocation14 + $0x788] sm:$0xff]
      %v3411 = vld [vmem:[#allocation14 + $0x790] sm:$0xff]
      %v3412 = vld [vmem:[#allocation14 + $0x798] sm:$0xff]
      %v3413 = vld [vmem:[#allocation14 + $0x7a0] sm:$0xff]
      %v3414 = vld [vmem:[#allocation14 + $0x7a8] sm:$0xff]
      %v3415 = vld [vmem:[#allocation14 + $0x7b0] sm:$0xff]
      %v3416 = vld [vmem:[#allocation14 + $0x7b8] sm:$0xff]
      %v3417 = vld [vmem:[#allocation14 + $0x7c0] sm:$0xff]
      %v3418 = vld [vmem:[#allocation14 + $0x7c8] sm:$0xff]
      %v3419 = vld [vmem:[#allocation14 + $0x7d0] sm:$0xff]
      %v3420 = vld [vmem:[#allocation14 + $0x7d8] sm:$0xff]
      %v3421 = vld [vmem:[#allocation14 + $0x7e0] sm:$0xff]
      %v3422 = vld [vmem:[#allocation14 + $0x7e8] sm:$0xff]
      %v3423 = vld [vmem:[#allocation14 + $0x7f0] sm:$0xff]
      %v3424 = vld [vmem:[#allocation14 + $0x7f8] sm:$0xff]
      %v3425 = vld [vmem:[#allocation14 + $0x800] sm:$0xff]
      %v3426 = vld [vmem:[#allocation14 + $0x808] sm:$0xff]
      %v3427 = vld [vmem:[#allocation14 + $0x810] sm:$0xff]
      %v3428 = vld [vmem:[#allocation14 + $0x818] sm:$0xff]
      %v3429 = vld [vmem:[#allocation14 + $0x820] sm:$0xff]
      %v3430 = vld [vmem:[#allocation14 + $0x828] sm:$0xff]
      %v3431 = vld [vmem:[#allocation14 + $0x830] sm:$0xff]
      %v3432 = vld [vmem:[#allocation14 + $0x838] sm:$0xff]
      %v3433 = vld [vmem:[#allocation14 + $0x840] sm:$0xff]
      %v3434 = vld [vmem:[#allocation14 + $0x848] sm:$0xff]
      %v3435 = vld [vmem:[#allocation14 + $0x850] sm:$0xff]
      %v3436 = vld [vmem:[#allocation14 + $0x858] sm:$0xff]
      %v3437 = vld [vmem:[#allocation14 + $0x860] sm:$0xff]
      %v3438 = vld [vmem:[#allocation14 + $0x868] sm:$0xff]
      %v3439 = vld [vmem:[#allocation14 + $0x870] sm:$0xff]
      %v3440 = vld [vmem:[#allocation14 + $0x878] sm:$0xff]
      %v3441 = vld [vmem:[#allocation14 + $0x880] sm:$0xff]
      %v3442 = vld [vmem:[#allocation14 + $0x888] sm:$0xff]
      %v3443 = vld [vmem:[#allocation14 + $0x890] sm:$0xff]
      %v3444 = vld [vmem:[#allocation14 + $0x898] sm:$0xff]
      %v3445 = vld [vmem:[#allocation14 + $0x8a0] sm:$0xff]
      %v3446 = vld [vmem:[#allocation14 + $0x8a8] sm:$0xff]
      %v3447 = vld [vmem:[#allocation14 + $0x8b0] sm:$0xff]
      %v3448 = vld [vmem:[#allocation14 + $0x8b8] sm:$0xff]
      %v3449 = vld [vmem:[#allocation14 + $0x8c0] sm:$0xff]
      %v3450 = vld [vmem:[#allocation14 + $0x8c8] sm:$0xff]
      %v3451 = vld [vmem:[#allocation14 + $0x8d0] sm:$0xff]
      %v3452 = vld [vmem:[#allocation14 + $0x8d8] sm:$0xff]
      %v3453 = vld [vmem:[#allocation14 + $0x8e0] sm:$0xff]
      %v3454 = vld [vmem:[#allocation14 + $0x8e8] sm:$0xff]
      %v3455 = vld [vmem:[#allocation14 + $0x8f0] sm:$0xff]
      %v3456 = vld [vmem:[#allocation14 + $0x8f8] sm:$0xff]
      %v3457 = vld [vmem:[#allocation14 + $0x900] sm:$0xff]
      %v3458 = vld [vmem:[#allocation14 + $0x908] sm:$0xff]
      %v3459 = vld [vmem:[#allocation14 + $0x910] sm:$0xff]
      %v3460 = vld [vmem:[#allocation14 + $0x918] sm:$0xff]
      %v3461 = vld [vmem:[#allocation14 + $0x920] sm:$0xff]
      %v3462 = vld [vmem:[#allocation14 + $0x928] sm:$0xff]
      %v3463 = vld [vmem:[#allocation14 + $0x930] sm:$0xff]
      %v3464 = vld [vmem:[#allocation14 + $0x938] sm:$0xff]
      %v3465 = vld [vmem:[#allocation14 + $0x940] sm:$0xff]
      %v3466 = vld [vmem:[#allocation14 + $0x948] sm:$0xff]
      %v3467 = vld [vmem:[#allocation14 + $0x950] sm:$0xff]
      %v3468 = vld [vmem:[#allocation14 + $0x958] sm:$0xff]
      %v3469 = vld [vmem:[#allocation14 + $0x960] sm:$0xff]
      %v3470 = vld [vmem:[#allocation14 + $0x968] sm:$0xff]
      %v3471 = vld [vmem:[#allocation14 + $0x970] sm:$0xff]
      %v3472 = vld [vmem:[#allocation14 + $0x978] sm:$0xff]
      %v3473 = vld [vmem:[#allocation14 + $0x980] sm:$0xff]
      %v3474 = vld [vmem:[#allocation14 + $0x988] sm:$0xff]
      %v3475 = vld [vmem:[#allocation14 + $0x990] sm:$0xff]
      %v3476 = vld [vmem:[#allocation14 + $0x998] sm:$0xff]
      %v3477 = vld [vmem:[#allocation14 + $0x9a0] sm:$0xff]
      %v3478 = vld [vmem:[#allocation14 + $0x9a8] sm:$0xff]
      %v3479 = vld [vmem:[#allocation14 + $0x9b0] sm:$0xff]
      %v3480 = vld [vmem:[#allocation14 + $0x9b8] sm:$0xff]
      %v3481 = vld [vmem:[#allocation14 + $0x9c0] sm:$0xff]
      %v3482 = vld [vmem:[#allocation14 + $0x9c8] sm:$0xff]
      %v3483 = vld [vmem:[#allocation14 + $0x9d0] sm:$0xff]
      %v3484 = vld [vmem:[#allocation14 + $0x9d8] sm:$0xff]
      %v3485 = vld [vmem:[#allocation14 + $0x9e0] sm:$0xff]
      %v3486 = vld [vmem:[#allocation14 + $0x9e8] sm:$0xff]
      %v3487 = vld [vmem:[#allocation14 + $0x9f0] sm:$0xff]
      %v3488 = vld [vmem:[#allocation14 + $0x9f8] sm:$0xff]
      %v3489 = vld [vmem:[#allocation14 + $0xa00] sm:$0xff]
      %v3490 = vld [vmem:[#allocation14 + $0xa08] sm:$0xff]
      %v3491 = vld [vmem:[#allocation14 + $0xa10] sm:$0xff]
      %v3492 = vld [vmem:[#allocation14 + $0xa18] sm:$0xff]
      %v3493 = vld [vmem:[#allocation14 + $0xa20] sm:$0xff]
      %v3494 = vld [vmem:[#allocation14 + $0xa28] sm:$0xff]
      %v3495 = vld [vmem:[#allocation14 + $0xa30] sm:$0xff]
      %v3496 = vld [vmem:[#allocation14 + $0xa38] sm:$0xff]
      %v3497 = vld [vmem:[#allocation14 + $0xa40] sm:$0xff]
      %v3498 = vld [vmem:[#allocation14 + $0xa48] sm:$0xff]
      %v3499 = vld [vmem:[#allocation14 + $0xa50] sm:$0xff]
      %v3500 = vld [vmem:[#allocation14 + $0xa58] sm:$0xff]
      %v3501 = vld [vmem:[#allocation14 + $0xa60] sm:$0xff]
      %v3502 = vld [vmem:[#allocation14 + $0xa68] sm:$0xff]
      %v3503 = vld [vmem:[#allocation14 + $0xa70] sm:$0xff]
      %v3504 = vld [vmem:[#allocation14 + $0xa78] sm:$0xff]
      %v3505 = vld [vmem:[#allocation14 + $0xa80] sm:$0xff]
      %v3506 = vld [vmem:[#allocation14 + $0xa88] sm:$0xff]
      %v3507 = vld [vmem:[#allocation14 + $0xa90] sm:$0xff]
      %v3508 = vld [vmem:[#allocation14 + $0xa98] sm:$0xff]
      %v3509 = vld [vmem:[#allocation14 + $0xaa0] sm:$0xff]
      %v3510 = vld [vmem:[#allocation14 + $0xaa8] sm:$0xff]
      %v3511 = vld [vmem:[#allocation14 + $0xab0] sm:$0xff]
      %v3512 = vld [vmem:[#allocation14 + $0xab8] sm:$0xff]
      %v3513 = vld [vmem:[#allocation14 + $0xac0] sm:$0xff]
      %v3514 = vld [vmem:[#allocation14 + $0xac8] sm:$0xff]
      %v3515 = vld [vmem:[#allocation14 + $0xad0] sm:$0xff]
      %v3516 = vld [vmem:[#allocation14 + $0xad8] sm:$0xff]
      %v3517 = vld [vmem:[#allocation14 + $0xae0] sm:$0xff]
      %v3518 = vld [vmem:[#allocation14 + $0xae8] sm:$0xff]
      %v3519 = vld [vmem:[#allocation14 + $0xaf0] sm:$0xff]
      %v3520 = vld [vmem:[#allocation14 + $0xaf8] sm:$0xff]
      %v3521 = vld [vmem:[#allocation14 + $0xb00] sm:$0xff]
      %v3522 = vld [vmem:[#allocation14 + $0xb08] sm:$0xff]
      %v3523 = vld [vmem:[#allocation14 + $0xb10] sm:$0xff]
      %v3524 = vld [vmem:[#allocation14 + $0xb18] sm:$0xff]
      %v3525 = vld [vmem:[#allocation14 + $0xb20] sm:$0xff]
      %v3526 = vld [vmem:[#allocation14 + $0xb28] sm:$0xff]
      %v3527 = vld [vmem:[#allocation14 + $0xb30] sm:$0xff]
      %v3528 = vld [vmem:[#allocation14 + $0xb38] sm:$0xff]
      %v3529 = vld [vmem:[#allocation14 + $0xb40] sm:$0xff]
      %v3530 = vld [vmem:[#allocation14 + $0xb48] sm:$0xff]
      %v3531 = vld [vmem:[#allocation14 + $0xb50] sm:$0xff]
      %v3532 = vld [vmem:[#allocation14 + $0xb58] sm:$0xff]
      %v3533 = vld [vmem:[#allocation14 + $0xb60] sm:$0xff]
      %v3534 = vld [vmem:[#allocation14 + $0xb68] sm:$0xff]
      %v3535 = vld [vmem:[#allocation14 + $0xb70] sm:$0xff]
      %v3536 = vld [vmem:[#allocation14 + $0xb78] sm:$0xff]
      %v3537 = vld [vmem:[#allocation14 + $0xb80] sm:$0xff]
      %v3538 = vld [vmem:[#allocation14 + $0xb88] sm:$0xff]
      %v3539 = vld [vmem:[#allocation14 + $0xb90] sm:$0xff]
      %v3540 = vld [vmem:[#allocation14 + $0xb98] sm:$0xff]
      %v3541 = vld [vmem:[#allocation14 + $0xba0] sm:$0xff]
      %v3542 = vld [vmem:[#allocation14 + $0xba8] sm:$0xff]
      %v3543 = vld [vmem:[#allocation14 + $0xbb0] sm:$0xff]
      %v3544 = vld [vmem:[#allocation14 + $0xbb8] sm:$0xff]
      %v3545 = vld [vmem:[#allocation14 + $0xbc0] sm:$0xff]
      %v3546 = vld [vmem:[#allocation14 + $0xbc8] sm:$0xff]
      %v3547 = vld [vmem:[#allocation14 + $0xbd0] sm:$0xff]
      %v3548 = vld [vmem:[#allocation14 + $0xbd8] sm:$0xff]
      %v3549 = vld [vmem:[#allocation14 + $0xbe0] sm:$0xff]
      %v3550 = vld [vmem:[#allocation14 + $0xbe8] sm:$0xff]
      %v3551 = vld [vmem:[#allocation14 + $0xbf0] sm:$0xff]
      %v3552 = vld [vmem:[#allocation14 + $0xbf8] sm:$0xff]
      %v3553 = vld [vmem:[#allocation14 + $0xc00] sm:$0xff]
      %v3554 = vld [vmem:[#allocation14 + $0xc08] sm:$0xff]
      %v3555 = vld [vmem:[#allocation14 + $0xc10] sm:$0xff]
      %v3556 = vld [vmem:[#allocation14 + $0xc18] sm:$0xff]
      %v3557 = vld [vmem:[#allocation14 + $0xc20] sm:$0xff]
      %v3558 = vld [vmem:[#allocation14 + $0xc28] sm:$0xff]
      %v3559 = vld [vmem:[#allocation14 + $0xc30] sm:$0xff]
      %v3560 = vld [vmem:[#allocation14 + $0xc38] sm:$0xff]
      %v3561 = vld [vmem:[#allocation14 + $0xc40] sm:$0xff]
      %v3562 = vld [vmem:[#allocation14 + $0xc48] sm:$0xff]
      %v3563 = vld [vmem:[#allocation14 + $0xc50] sm:$0xff]
      %v3564 = vld [vmem:[#allocation14 + $0xc58] sm:$0xff]
      %v3565 = vld [vmem:[#allocation14 + $0xc60] sm:$0xff]
      %v3566 = vld [vmem:[#allocation14 + $0xc68] sm:$0xff]
      %v3567 = vld [vmem:[#allocation14 + $0xc70] sm:$0xff]
      %v3568 = vld [vmem:[#allocation14 + $0xc78] sm:$0xff]
      %v3569 = vld [vmem:[#allocation14 + $0xc80] sm:$0xff]
      %v3570 = vld [vmem:[#allocation14 + $0xc88] sm:$0xff]
      %v3571 = vld [vmem:[#allocation14 + $0xc90] sm:$0xff]
      %v3572 = vld [vmem:[#allocation14 + $0xc98] sm:$0xff]
      %v3573 = vld [vmem:[#allocation14 + $0xca0] sm:$0xff]
      %v3574 = vld [vmem:[#allocation14 + $0xca8] sm:$0xff]
      %v3575 = vld [vmem:[#allocation14 + $0xcb0] sm:$0xff]
      %v3576 = vld [vmem:[#allocation14 + $0xcb8] sm:$0xff]
      %v3577 = vld [vmem:[#allocation14 + $0xcc0] sm:$0xff]
      %v3578 = vld [vmem:[#allocation14 + $0xcc8] sm:$0xff]
      %v3579 = vld [vmem:[#allocation14 + $0xcd0] sm:$0xff]
      %v3580 = vld [vmem:[#allocation14 + $0xcd8] sm:$0xff]
      %v3581 = vld [vmem:[#allocation14 + $0xce0] sm:$0xff]
      %v3582 = vld [vmem:[#allocation14 + $0xce8] sm:$0xff]
      %v3583 = vld [vmem:[#allocation14 + $0xcf0] sm:$0xff]
      %v3584 = vld [vmem:[#allocation14 + $0xcf8] sm:$0xff]
      %v3585 = vld [vmem:[#allocation14 + $0xd00] sm:$0xff]
      %v3586 = vld [vmem:[#allocation14 + $0xd08] sm:$0xff]
      %v3587 = vld [vmem:[#allocation14 + $0xd10] sm:$0xff]
      %v3588 = vld [vmem:[#allocation14 + $0xd18] sm:$0xff]
      %v3589 = vld [vmem:[#allocation14 + $0xd20] sm:$0xff]
      %v3590 = vld [vmem:[#allocation14 + $0xd28] sm:$0xff]
      %v3591 = vld [vmem:[#allocation14 + $0xd30] sm:$0xff]
      %v3592 = vld [vmem:[#allocation14 + $0xd38] sm:$0xff]
      %v3593 = vld [vmem:[#allocation14 + $0xd40] sm:$0xff]
      %v3594 = vld [vmem:[#allocation14 + $0xd48] sm:$0xff]
      %v3595 = vld [vmem:[#allocation14 + $0xd50] sm:$0xff]
      %v3596 = vld [vmem:[#allocation14 + $0xd58] sm:$0xff]
      %v3597 = vld [vmem:[#allocation14 + $0xd60] sm:$0xff]
      %v3598 = vld [vmem:[#allocation14 + $0xd68] sm:$0xff]
      %v3599 = vld [vmem:[#allocation14 + $0xd70] sm:$0xff]
      %v3600 = vld [vmem:[#allocation14 + $0xd78] sm:$0xff]
      %v3601 = vld [vmem:[#allocation14 + $0xd80] sm:$0xff]
      %v3602 = vld [vmem:[#allocation14 + $0xd88] sm:$0xff]
      %v3603 = vld [vmem:[#allocation14 + $0xd90] sm:$0xff]
      %v3604 = vld [vmem:[#allocation14 + $0xd98] sm:$0xff]
      %v3605 = vld [vmem:[#allocation14 + $0xda0] sm:$0xff]
      %v3606 = vld [vmem:[#allocation14 + $0xda8] sm:$0xff]
      %v3607 = vld [vmem:[#allocation14 + $0xdb0] sm:$0xff]
      %v3608 = vld [vmem:[#allocation14 + $0xdb8] sm:$0xff]
      %v3609 = vld [vmem:[#allocation14 + $0xdc0] sm:$0xff]
      %v3610 = vld [vmem:[#allocation14 + $0xdc8] sm:$0xff]
      %v3611 = vld [vmem:[#allocation14 + $0xdd0] sm:$0xff]
      %v3612 = vld [vmem:[#allocation14 + $0xdd8] sm:$0xff]
      %v3613 = vld [vmem:[#allocation14 + $0xde0] sm:$0xff]
      %v3614 = vld [vmem:[#allocation14 + $0xde8] sm:$0xff]
      %v3615 = vld [vmem:[#allocation14 + $0xdf0] sm:$0xff]
      %v3616 = vld [vmem:[#allocation14 + $0xdf8] sm:$0xff]
      %v3617 = vld [vmem:[#allocation14 + $0xe00] sm:$0xff]
      %v3618 = vld [vmem:[#allocation14 + $0xe08] sm:$0xff]
      %v3619 = vld [vmem:[#allocation14 + $0xe10] sm:$0xff]
      %v3620 = vld [vmem:[#allocation14 + $0xe18] sm:$0xff]
      %v3621 = vld [vmem:[#allocation14 + $0xe20] sm:$0xff]
      %v3622 = vld [vmem:[#allocation14 + $0xe28] sm:$0xff]
      %v3623 = vld [vmem:[#allocation14 + $0xe30] sm:$0xff]
      %v3624 = vld [vmem:[#allocation14 + $0xe38] sm:$0xff]
      %v3625 = vld [vmem:[#allocation14 + $0xe40] sm:$0xff]
      %v3626 = vld [vmem:[#allocation14 + $0xe48] sm:$0xff]
      %v3627 = vld [vmem:[#allocation14 + $0xe50] sm:$0xff]
      %v3628 = vld [vmem:[#allocation14 + $0xe58] sm:$0xff]
      %v3629 = vld [vmem:[#allocation14 + $0xe60] sm:$0xff]
      %v3630 = vld [vmem:[#allocation14 + $0xe68] sm:$0xff]
      %v3631 = vld [vmem:[#allocation14 + $0xe70] sm:$0xff]
      %v3632 = vld [vmem:[#allocation14 + $0xe78] sm:$0xff]
      %v3633 = vld [vmem:[#allocation14 + $0xe80] sm:$0xff]
      %v3634 = vld [vmem:[#allocation14 + $0xe88] sm:$0xff]
      %v3635 = vld [vmem:[#allocation14 + $0xe90] sm:$0xff]
      %v3636 = vld [vmem:[#allocation14 + $0xe98] sm:$0xff]
      %v3637 = vld [vmem:[#allocation14 + $0xea0] sm:$0xff]
      %v3638 = vld [vmem:[#allocation14 + $0xea8] sm:$0xff]
      %v3639 = vld [vmem:[#allocation14 + $0xeb0] sm:$0xff]
      %v3640 = vld [vmem:[#allocation14 + $0xeb8] sm:$0xff]
      %v3641 = vld [vmem:[#allocation14 + $0xec0] sm:$0xff]
      %v3642 = vld [vmem:[#allocation14 + $0xec8] sm:$0xff]
      %v3643 = vld [vmem:[#allocation14 + $0xed0] sm:$0xff]
      %v3644 = vld [vmem:[#allocation14 + $0xed8] sm:$0xff]
      %v3645 = vld [vmem:[#allocation14 + $0xee0] sm:$0xff]
      %v3646 = vld [vmem:[#allocation14 + $0xee8] sm:$0xff]
      %v3647 = vld [vmem:[#allocation14 + $0xef0] sm:$0xff]
      %v3648 = vld [vmem:[#allocation14 + $0xef8] sm:$0xff]
      %v3649 = vld [vmem:[#allocation14 + $0xf00] sm:$0xff]
      %v3650 = vld [vmem:[#allocation14 + $0xf08] sm:$0xff]
      %v3651 = vld [vmem:[#allocation14 + $0xf10] sm:$0xff]
      %v3652 = vld [vmem:[#allocation14 + $0xf18] sm:$0xff]
      %v3653 = vld [vmem:[#allocation14 + $0xf20] sm:$0xff]
      %v3654 = vld [vmem:[#allocation14 + $0xf28] sm:$0xff]
      %v3655 = vld [vmem:[#allocation14 + $0xf30] sm:$0xff]
      %v3656 = vld [vmem:[#allocation14 + $0xf38] sm:$0xff]
      %v3657 = vld [vmem:[#allocation14 + $0xf40] sm:$0xff]
      %v3658 = vld [vmem:[#allocation14 + $0xf48] sm:$0xff]
      %v3659 = vld [vmem:[#allocation14 + $0xf50] sm:$0xff]
      %v3660 = vld [vmem:[#allocation14 + $0xf58] sm:$0xff]
      %v3661 = vld [vmem:[#allocation14 + $0xf60] sm:$0xff]
      %v3662 = vld [vmem:[#allocation14 + $0xf68] sm:$0xff]
      %v3663 = vld [vmem:[#allocation14 + $0xf70] sm:$0xff]
      %v3664 = vld [vmem:[#allocation14 + $0xf78] sm:$0xff]
      %v3665 = vld [vmem:[#allocation14 + $0xf80] sm:$0xff]
      %v3666 = vld [vmem:[#allocation14 + $0xf88] sm:$0xff]
      %v3667 = vld [vmem:[#allocation14 + $0xf90] sm:$0xff]
      %v3668 = vld [vmem:[#allocation14 + $0xf98] sm:$0xff]
      %v3669 = vld [vmem:[#allocation14 + $0xfa0] sm:$0xff]
      %v3670 = vld [vmem:[#allocation14 + $0xfa8] sm:$0xff]
      %v3671 = vld [vmem:[#allocation14 + $0xfb0] sm:$0xff]
      %v3672 = vld [vmem:[#allocation14 + $0xfb8] sm:$0xff]
      %v3673 = vld [vmem:[#allocation14 + $0xfc0] sm:$0xff]
      %v3674 = vld [vmem:[#allocation14 + $0xfc8] sm:$0xff]
      %v3675 = vld [vmem:[#allocation14 + $0xfd0] sm:$0xff]
      %v3676 = vld [vmem:[#allocation14 + $0xfd8] sm:$0xff]
      %v3677 = vld [vmem:[#allocation14 + $0xfe0] sm:$0xff]
      %v3678 = vld [vmem:[#allocation14 + $0xfe8] sm:$0xff]
      %v3679 = vld [vmem:[#allocation14 + $0xff0] sm:$0xff]
      %v3680 = vld [vmem:[#allocation14 + $0xff8] sm:$0xff]
      %v3681 = vld [vmem:[#allocation15] sm:$0xf]
      %v3683 = vlaneseq
      %v3684 = vshrl.u32 %v3683, 7
      %v3685 = vsub.s32 0, %v3684
      %v3686 = vrot.slane %v3681, %v3685
      %v3687 = vlaneseq
      %v3688 = vshrl.u32 %v3687, 7
      %v3689 = vsub.s32 1, %v3688
      %v3690 = vrot.slane %v3681, %v3689
      %v3691 = vlaneseq
      %v3692 = vshrl.u32 %v3691, 7
      %v3693 = vsub.s32 2, %v3692
      %v3694 = vrot.slane %v3681, %v3693
      %v3695 = vlaneseq
      %v3696 = vshrl.u32 %v3695, 7
      %v3697 = vsub.s32 3, %v3696
      %v3698 = vrot.slane %v3681, %v3697
      %3703 = vmatprep.subr.mxu0 %v3170
      %3704 = vmatpush1.msra.mxu0 %v3169
      %3705 = vmatprep.subr.mxu0 %v3174
      %3706 = vmatpush1.msra.mxu0 %v3173
      %3707 = vmatprep.subr.mxu0 %v3178
      %3708 = vmatpush1.msra.mxu0 %v3177
      %3709 = vmatprep.subr.mxu0 %v3182
      %3710 = vmatpush1.msra.mxu0 %v3181
      %3711 = vmatprep.subr.mxu0 %v3186
      %3712 = vmatpush1.msra.mxu0 %v3185
      %3713 = vmatprep.subr.mxu0 %v3190
      %3714 = vmatpush1.msra.mxu0 %v3189
      %3715 = vmatprep.subr.mxu0 %v3194
      %3716 = vmatpush1.msra.mxu0 %v3193
      %3717 = vmatprep.subr.mxu0 %v3198
      %3718 = vmatpush1.msra.mxu0 %v3197
      %3719 = vmatprep.subr.mxu0 %v3202
      %3720 = vmatpush1.msra.mxu0 %v3201
      %3721 = vmatprep.subr.mxu0 %v3206
      %3722 = vmatpush1.msra.mxu0 %v3205
      %3723 = vmatprep.subr.mxu0 %v3210
      %3724 = vmatpush1.msra.mxu0 %v3209
      %3725 = vmatprep.subr.mxu0 %v3214
      %3726 = vmatpush1.msra.mxu0 %v3213
      %3727 = vmatprep.subr.mxu0 %v3218
      %3728 = vmatpush1.msra.mxu0 %v3217
      %3729 = vmatprep.subr.mxu0 %v3222
      %3730 = vmatpush1.msra.mxu0 %v3221
      %3731 = vmatprep.subr.mxu0 %v3226
      %3732 = vmatpush1.msra.mxu0 %v3225
      %3733 = vmatprep.subr.mxu0 %v3230
      %3734 = vmatpush1.msra.mxu0 %v3229
      %3735 = vmatprep.subr.mxu0 %v3234
      %3736 = vmatpush1.msra.mxu0 %v3233
      %3737 = vmatprep.subr.mxu0 %v3238
      %3738 = vmatpush1.msra.mxu0 %v3237
      %3739 = vmatprep.subr.mxu0 %v3242
      %3740 = vmatpush1.msra.mxu0 %v3241
      %3741 = vmatprep.subr.mxu0 %v3246
      %3742 = vmatpush1.msra.mxu0 %v3245
      %3743 = vmatprep.subr.mxu0 %v3250
      %3744 = vmatpush1.msra.mxu0 %v3249
      %3745 = vmatprep.subr.mxu0 %v3254
      %3746 = vmatpush1.msra.mxu0 %v3253
      %3747 = vmatprep.subr.mxu0 %v3258
      %3748 = vmatpush1.msra.mxu0 %v3257
      %3749 = vmatprep.subr.mxu0 %v3262
      %3750 = vmatpush1.msra.mxu0 %v3261
      %3751 = vmatprep.subr.mxu0 %v3266
      %3752 = vmatpush1.msra.mxu0 %v3265
      %3753 = vmatprep.subr.mxu0 %v3270
      %3754 = vmatpush1.msra.mxu0 %v3269
      %3755 = vmatprep.subr.mxu0 %v3274
      %3756 = vmatpush1.msra.mxu0 %v3273
      %3757 = vmatprep.subr.mxu0 %v3278
      %3758 = vmatpush1.msra.mxu0 %v3277
      %3759 = vmatprep.subr.mxu0 %v3282
      %3760 = vmatpush1.msra.mxu0 %v3281
      %3761 = vmatprep.subr.mxu0 %v3286
      %3762 = vmatpush1.msra.mxu0 %v3285
      %3763 = vmatprep.subr.mxu0 %v3290
      %3764 = vmatpush1.msra.mxu0 %v3289
      %3765 = vmatprep.subr.mxu0 %v3294
      %3766 = vmatpush1.msra.mxu0 %v3293
      %3767 = vmatprep.mubr.f32.mxu0 %v3162
      %3768 = vmatmul.mubr.f32.gmra.mrb[0].mxu0 %v3161
      %v3769 = vpop.f32.mrb[0].mxu0
      %v3770 = vadd.f32 %v3686, %v3769
      %v3771 = vpop.f32.mrb[0].mxu0
      %v3772 = vadd.f32 %v3690, %v3771
      %3773 = vdwg.mxu0
      %3774 = vmatprep.subr.mxu0 %v3298
      %3775 = vmatpush1.msra.mxu0 %v3297
      %3776 = vmatprep.subr.mxu0 %v3302
      %3777 = vmatpush1.msra.mxu0 %v3301
      %3778 = vmatprep.subr.mxu0 %v3306
      %3779 = vmatpush1.msra.mxu0 %v3305
      %3780 = vmatprep.subr.mxu0 %v3310
      %3781 = vmatpush1.msra.mxu0 %v3309
      %3782 = vmatprep.subr.mxu0 %v3314
      %3783 = vmatpush1.msra.mxu0 %v3313
      %3784 = vmatprep.subr.mxu0 %v3318
      %3785 = vmatpush1.msra.mxu0 %v3317
      %3786 = vmatprep.subr.mxu0 %v3322
      %3787 = vmatpush1.msra.mxu0 %v3321
      %3788 = vmatprep.subr.mxu0 %v3326
      %3789 = vmatpush1.msra.mxu0 %v3325
      %3790 = vmatprep.subr.mxu0 %v3330
      %3791 = vmatpush1.msra.mxu0 %v3329
      %3792 = vmatprep.subr.mxu0 %v3334
      %3793 = vmatpush1.msra.mxu0 %v3333
      %3794 = vmatprep.subr.mxu0 %v3338
      %3795 = vmatpush1.msra.mxu0 %v3337
      %3796 = vmatprep.subr.mxu0 %v3342
      %3797 = vmatpush1.msra.mxu0 %v3341
      %3798 = vmatprep.subr.mxu0 %v3346
      %3799 = vmatpush1.msra.mxu0 %v3345
      %3800 = vmatprep.subr.mxu0 %v3350
      %3801 = vmatpush1.msra.mxu0 %v3349
      %3802 = vmatprep.subr.mxu0 %v3354
      %3803 = vmatpush1.msra.mxu0 %v3353
      %3804 = vmatprep.subr.mxu0 %v3358
      %3805 = vmatpush1.msra.mxu0 %v3357
      %3806 = vmatprep.subr.mxu0 %v3362
      %3807 = vmatpush1.msra.mxu0 %v3361
      %3808 = vmatprep.subr.mxu0 %v3366
      %3809 = vmatpush1.msra.mxu0 %v3365
      %3810 = vmatprep.subr.mxu0 %v3370
      %3811 = vmatpush1.msra.mxu0 %v3369
      %3812 = vmatprep.subr.mxu0 %v3374
      %3813 = vmatpush1.msra.mxu0 %v3373
      %3814 = vmatprep.subr.mxu0 %v3378
      %3815 = vmatpush1.msra.mxu0 %v3377
      %3816 = vmatprep.subr.mxu0 %v3382
      %3817 = vmatpush1.msra.mxu0 %v3381
      %3818 = vmatprep.subr.mxu0 %v3386
      %3819 = vmatpush1.msra.mxu0 %v3385
      %3820 = vmatprep.subr.mxu0 %v3390
      %3821 = vmatpush1.msra.mxu0 %v3389
      %3822 = vmatprep.subr.mxu0 %v3394
      %3823 = vmatpush1.msra.mxu0 %v3393
      %3824 = vmatprep.subr.mxu0 %v3398
      %3825 = vmatpush1.msra.mxu0 %v3397
      %3826 = vmatprep.subr.mxu0 %v3402
      %3827 = vmatpush1.msra.mxu0 %v3401
      %3828 = vmatprep.subr.mxu0 %v3406
      %3829 = vmatpush1.msra.mxu0 %v3405
      %3830 = vmatprep.subr.mxu0 %v3410
      %3831 = vmatpush1.msra.mxu0 %v3409
      %3832 = vmatprep.subr.mxu0 %v3414
      %3833 = vmatpush1.msra.mxu0 %v3413
      %3834 = vmatprep.subr.mxu0 %v3418
      %3835 = vmatpush1.msra.mxu0 %v3417
      %3836 = vmatprep.subr.mxu0 %v3422
      %3837 = vmatpush1.msra.mxu0 %v3421
      %3838 = vmatprep.mubr.f32.mxu0 %v3164
      %3839 = vmatmul.mubr.f32.gmra.mrb[0].mxu0 %v3163
      %v3840 = vpop.f32.mrb[0].mxu0
      %v3841 = vadd.f32 %v3770, %v3840
      %v3842 = vpop.f32.mrb[0].mxu0
      %v3843 = vadd.f32 %v3772, %v3842
      %3844 = vdwg.mxu0
      %3845 = vmatprep.subr.mxu0 %v3426
      %3846 = vmatpush1.msra.mxu0 %v3425
      %3847 = vmatprep.subr.mxu0 %v3430
      %3848 = vmatpush1.msra.mxu0 %v3429
      %3849 = vmatprep.subr.mxu0 %v3434
      %3850 = vmatpush1.msra.mxu0 %v3433
      %3851 = vmatprep.subr.mxu0 %v3438
      %3852 = vmatpush1.msra.mxu0 %v3437
      %3853 = vmatprep.subr.mxu0 %v3442
      %3854 = vmatpush1.msra.mxu0 %v3441
      %3855 = vmatprep.subr.mxu0 %v3446
      %3856 = vmatpush1.msra.mxu0 %v3445
      %3857 = vmatprep.subr.mxu0 %v3450
      %3858 = vmatpush1.msra.mxu0 %v3449
      %3859 = vmatprep.subr.mxu0 %v3454
      %3860 = vmatpush1.msra.mxu0 %v3453
      %3861 = vmatprep.subr.mxu0 %v3458
      %3862 = vmatpush1.msra.mxu0 %v3457
      %3863 = vmatprep.subr.mxu0 %v3462
      %3864 = vmatpush1.msra.mxu0 %v3461
      %3865 = vmatprep.subr.mxu0 %v3466
      %3866 = vmatpush1.msra.mxu0 %v3465
      %3867 = vmatprep.subr.mxu0 %v3470
      %3868 = vmatpush1.msra.mxu0 %v3469
      %3869 = vmatprep.subr.mxu0 %v3474
      %3870 = vmatpush1.msra.mxu0 %v3473
      %3871 = vmatprep.subr.mxu0 %v3478
      %3872 = vmatpush1.msra.mxu0 %v3477
      %3873 = vmatprep.subr.mxu0 %v3482
      %3874 = vmatpush1.msra.mxu0 %v3481
      %3875 = vmatprep.subr.mxu0 %v3486
      %3876 = vmatpush1.msra.mxu0 %v3485
      %3877 = vmatprep.subr.mxu0 %v3490
      %3878 = vmatpush1.msra.mxu0 %v3489
      %3879 = vmatprep.subr.mxu0 %v3494
      %3880 = vmatpush1.msra.mxu0 %v3493
      %3881 = vmatprep.subr.mxu0 %v3498
      %3882 = vmatpush1.msra.mxu0 %v3497
      %3883 = vmatprep.subr.mxu0 %v3502
      %3884 = vmatpush1.msra.mxu0 %v3501
      %3885 = vmatprep.subr.mxu0 %v3506
      %3886 = vmatpush1.msra.mxu0 %v3505
      %3887 = vmatprep.subr.mxu0 %v3510
      %3888 = vmatpush1.msra.mxu0 %v3509
      %3889 = vmatprep.subr.mxu0 %v3514
      %3890 = vmatpush1.msra.mxu0 %v3513
      %3891 = vmatprep.subr.mxu0 %v3518
      %3892 = vmatpush1.msra.mxu0 %v3517
      %3893 = vmatprep.subr.mxu0 %v3522
      %3894 = vmatpush1.msra.mxu0 %v3521
      %3895 = vmatprep.subr.mxu0 %v3526
      %3896 = vmatpush1.msra.mxu0 %v3525
      %3897 = vmatprep.subr.mxu0 %v3530
      %3898 = vmatpush1.msra.mxu0 %v3529
      %3899 = vmatprep.subr.mxu0 %v3534
      %3900 = vmatpush1.msra.mxu0 %v3533
      %3901 = vmatprep.subr.mxu0 %v3538
      %3902 = vmatpush1.msra.mxu0 %v3537
      %3903 = vmatprep.subr.mxu0 %v3542
      %3904 = vmatpush1.msra.mxu0 %v3541
      %3905 = vmatprep.subr.mxu0 %v3546
      %3906 = vmatpush1.msra.mxu0 %v3545
      %3907 = vmatprep.subr.mxu0 %v3550
      %3908 = vmatpush1.msra.mxu0 %v3549
      %3909 = vmatprep.mubr.f32.mxu0 %v3166
      %3910 = vmatmul.mubr.f32.gmra.mrb[0].mxu0 %v3165
      %v3911 = vpop.f32.mrb[0].mxu0
      %v3912 = vadd.f32 %v3841, %v3911
      %v3913 = vpop.f32.mrb[0].mxu0
      %v3914 = vadd.f32 %v3843, %v3913
      %3915 = vdwg.mxu0
      %3916 = vmatprep.subr.mxu0 %v3554
      %3917 = vmatpush1.msra.mxu0 %v3553
      %3918 = vmatprep.subr.mxu0 %v3558
      %3919 = vmatpush1.msra.mxu0 %v3557
      %3920 = vmatprep.subr.mxu0 %v3562
      %3921 = vmatpush1.msra.mxu0 %v3561
      %3922 = vmatprep.subr.mxu0 %v3566
      %3923 = vmatpush1.msra.mxu0 %v3565
      %3924 = vmatprep.subr.mxu0 %v3570
      %3925 = vmatpush1.msra.mxu0 %v3569
      %3926 = vmatprep.subr.mxu0 %v3574
      %3927 = vmatpush1.msra.mxu0 %v3573
      %3928 = vmatprep.subr.mxu0 %v3578
      %3929 = vmatpush1.msra.mxu0 %v3577
      %3930 = vmatprep.subr.mxu0 %v3582
      %3931 = vmatpush1.msra.mxu0 %v3581
      %3932 = vmatprep.subr.mxu0 %v3586
      %3933 = vmatpush1.msra.mxu0 %v3585
      %3934 = vmatprep.subr.mxu0 %v3590
      %3935 = vmatpush1.msra.mxu0 %v3589
      %3936 = vmatprep.subr.mxu0 %v3594
      %3937 = vmatpush1.msra.mxu0 %v3593
      %3938 = vmatprep.subr.mxu0 %v3598
      %3939 = vmatpush1.msra.mxu0 %v3597
      %3940 = vmatprep.subr.mxu0 %v3602
      %3941 = vmatpush1.msra.mxu0 %v3601
      %3942 = vmatprep.subr.mxu0 %v3606
      %3943 = vmatpush1.msra.mxu0 %v3605
      %3944 = vmatprep.subr.mxu0 %v3610
      %3945 = vmatpush1.msra.mxu0 %v3609
      %3946 = vmatprep.subr.mxu0 %v3614
      %3947 = vmatpush1.msra.mxu0 %v3613
      %3948 = vmatprep.subr.mxu0 %v3618
      %3949 = vmatpush1.msra.mxu0 %v3617
      %3950 = vmatprep.subr.mxu0 %v3622
      %3951 = vmatpush1.msra.mxu0 %v3621
      %3952 = vmatprep.subr.mxu0 %v3626
      %3953 = vmatpush1.msra.mxu0 %v3625
      %3954 = vmatprep.subr.mxu0 %v3630
      %3955 = vmatpush1.msra.mxu0 %v3629
      %3956 = vmatprep.subr.mxu0 %v3634
      %3957 = vmatpush1.msra.mxu0 %v3633
      %3958 = vmatprep.subr.mxu0 %v3638
      %3959 = vmatpush1.msra.mxu0 %v3637
      %3960 = vmatprep.subr.mxu0 %v3642
      %3961 = vmatpush1.msra.mxu0 %v3641
      %3962 = vmatprep.subr.mxu0 %v3646
      %3963 = vmatpush1.msra.mxu0 %v3645
      %3964 = vmatprep.subr.mxu0 %v3650
      %3965 = vmatpush1.msra.mxu0 %v3649
      %3966 = vmatprep.subr.mxu0 %v3654
      %3967 = vmatpush1.msra.mxu0 %v3653
      %3968 = vmatprep.subr.mxu0 %v3658
      %3969 = vmatpush1.msra.mxu0 %v3657
      %3970 = vmatprep.subr.mxu0 %v3662
      %3971 = vmatpush1.msra.mxu0 %v3661
      %3972 = vmatprep.subr.mxu0 %v3666
      %3973 = vmatpush1.msra.mxu0 %v3665
      %3974 = vmatprep.subr.mxu0 %v3670
      %3975 = vmatpush1.msra.mxu0 %v3669
      %3976 = vmatprep.subr.mxu0 %v3674
      %3977 = vmatpush1.msra.mxu0 %v3673
      %3978 = vmatprep.subr.mxu0 %v3678
      %3979 = vmatpush1.msra.mxu0 %v3677
      %3980 = vmatprep.mubr.f32.mxu0 %v3168
      %3981 = vmatmul.mubr.f32.gmra.mrb[0].mxu0 %v3167
      %v3982 = vpop.f32.mrb[0].mxu0
      %v3983 = vadd.f32 %v3912, %v3982
      %v3984 = vpop.f32.mrb[0].mxu0
      %v3985 = vadd.f32 %v3914, %v3984
      %3986 = vdwg.mxu0
      %3987 = vmatprep.subr.mxu0 %v3172
      %3988 = vmatpush1.msra.mxu0 %v3171
      %3989 = vmatprep.subr.mxu0 %v3176
      %3990 = vmatpush1.msra.mxu0 %v3175
      %3991 = vmatprep.subr.mxu0 %v3180
      %3992 = vmatpush1.msra.mxu0 %v3179
      %3993 = vmatprep.subr.mxu0 %v3184
      %3994 = vmatpush1.msra.mxu0 %v3183
      %3995 = vmatprep.subr.mxu0 %v3188
      %3996 = vmatpush1.msra.mxu0 %v3187
      %3997 = vmatprep.subr.mxu0 %v3192
      %3998 = vmatpush1.msra.mxu0 %v3191
      %3999 = vmatprep.subr.mxu0 %v3196
      %4000 = vmatpush1.msra.mxu0 %v3195
      %4001 = vmatprep.subr.mxu0 %v3200
      %4002 = vmatpush1.msra.mxu0 %v3199
      %4003 = vmatprep.subr.mxu0 %v3204
      %4004 = vmatpush1.msra.mxu0 %v3203
      %4005 = vmatprep.subr.mxu0 %v3208
      %4006 = vmatpush1.msra.mxu0 %v3207
      %4007 = vmatprep.subr.mxu0 %v3212
      %4008 = vmatpush1.msra.mxu0 %v3211
      %4009 = vmatprep.subr.mxu0 %v3216
      %4010 = vmatpush1.msra.mxu0 %v3215
      %4011 = vmatprep.subr.mxu0 %v3220
      %4012 = vmatpush1.msra.mxu0 %v3219
      %4013 = vmatprep.subr.mxu0 %v3224
      %4014 = vmatpush1.msra.mxu0 %v3223
      %4015 = vmatprep.subr.mxu0 %v3228
      %4016 = vmatpush1.msra.mxu0 %v3227
      %4017 = vmatprep.subr.mxu0 %v3232
      %4018 = vmatpush1.msra.mxu0 %v3231
      %4019 = vmatprep.subr.mxu0 %v3236
      %4020 = vmatpush1.msra.mxu0 %v3235
      %4021 = vmatprep.subr.mxu0 %v3240
      %4022 = vmatpush1.msra.mxu0 %v3239
      %4023 = vmatprep.subr.mxu0 %v3244
      %4024 = vmatpush1.msra.mxu0 %v3243
      %4025 = vmatprep.subr.mxu0 %v3248
      %4026 = vmatpush1.msra.mxu0 %v3247
      %4027 = vmatprep.subr.mxu0 %v3252
      %4028 = vmatpush1.msra.mxu0 %v3251
      %4029 = vmatprep.subr.mxu0 %v3256
      %4030 = vmatpush1.msra.mxu0 %v3255
      %4031 = vmatprep.subr.mxu0 %v3260
      %4032 = vmatpush1.msra.mxu0 %v3259
      %4033 = vmatprep.subr.mxu0 %v3264
      %4034 = vmatpush1.msra.mxu0 %v3263
      %4035 = vmatprep.subr.mxu0 %v3268
      %4036 = vmatpush1.msra.mxu0 %v3267
      %4037 = vmatprep.subr.mxu0 %v3272
      %4038 = vmatpush1.msra.mxu0 %v3271
      %4039 = vmatprep.subr.mxu0 %v3276
      %4040 = vmatpush1.msra.mxu0 %v3275
      %4041 = vmatprep.subr.mxu0 %v3280
      %4042 = vmatpush1.msra.mxu0 %v3279
      %4043 = vmatprep.subr.mxu0 %v3284
      %4044 = vmatpush1.msra.mxu0 %v3283
      %4045 = vmatprep.subr.mxu0 %v3288
      %4046 = vmatpush1.msra.mxu0 %v3287
      %4047 = vmatprep.subr.mxu0 %v3292
      %4048 = vmatpush1.msra.mxu0 %v3291
      %4049 = vmatprep.subr.mxu0 %v3296
      %4050 = vmatpush1.msra.mxu0 %v3295
      %4051 = vmatprep.mubr.f32.mxu0 %v3162
      %4052 = vmatmul.mubr.f32.gmra.mrb[0].mxu0 %v3161
      %v4053 = vpop.f32.mrb[0].mxu0
      %v4054 = vadd.f32 %v3694, %v4053
      %v4055 = vpop.f32.mrb[0].mxu0
      %v4056 = vadd.f32 %v3698, %v4055
      %4057 = vdwg.mxu0
      %4058 = vmatprep.subr.mxu0 %v3300
      %4059 = vmatpush1.msra.mxu0 %v3299
      %4060 = vmatprep.subr.mxu0 %v3304
      %4061 = vmatpush1.msra.mxu0 %v3303
      %4062 = vmatprep.subr.mxu0 %v3308
      %4063 = vmatpush1.msra.mxu0 %v3307
      %4064 = vmatprep.subr.mxu0 %v3312
      %4065 = vmatpush1.msra.mxu0 %v3311
      %4066 = vmatprep.subr.mxu0 %v3316
      %4067 = vmatpush1.msra.mxu0 %v3315
      %4068 = vmatprep.subr.mxu0 %v3320
      %4069 = vmatpush1.msra.mxu0 %v3319
      %4070 = vmatprep.subr.mxu0 %v3324
      %4071 = vmatpush1.msra.mxu0 %v3323
      %4072 = vmatprep.subr.mxu0 %v3328
      %4073 = vmatpush1.msra.mxu0 %v3327
      %4074 = vmatprep.subr.mxu0 %v3332
      %4075 = vmatpush1.msra.mxu0 %v3331
      %4076 = vmatprep.subr.mxu0 %v3336
      %4077 = vmatpush1.msra.mxu0 %v3335
      %4078 = vmatprep.subr.mxu0 %v3340
      %4079 = vmatpush1.msra.mxu0 %v3339
      %4080 = vmatprep.subr.mxu0 %v3344
      %4081 = vmatpush1.msra.mxu0 %v3343
      %4082 = vmatprep.subr.mxu0 %v3348
      %4083 = vmatpush1.msra.mxu0 %v3347
      %4084 = vmatprep.subr.mxu0 %v3352
      %4085 = vmatpush1.msra.mxu0 %v3351
      %4086 = vmatprep.subr.mxu0 %v3356
      %4087 = vmatpush1.msra.mxu0 %v3355
      %4088 = vmatprep.subr.mxu0 %v3360
      %4089 = vmatpush1.msra.mxu0 %v3359
      %4090 = vmatprep.subr.mxu0 %v3364
      %4091 = vmatpush1.msra.mxu0 %v3363
      %4092 = vmatprep.subr.mxu0 %v3368
      %4093 = vmatpush1.msra.mxu0 %v3367
      %4094 = vmatprep.subr.mxu0 %v3372
      %4095 = vmatpush1.msra.mxu0 %v3371
      %4096 = vmatprep.subr.mxu0 %v3376
      %4097 = vmatpush1.msra.mxu0 %v3375
      %4098 = vmatprep.subr.mxu0 %v3380
      %4099 = vmatpush1.msra.mxu0 %v3379
      %4100 = vmatprep.subr.mxu0 %v3384
      %4101 = vmatpush1.msra.mxu0 %v3383
      %4102 = vmatprep.subr.mxu0 %v3388
      %4103 = vmatpush1.msra.mxu0 %v3387
      %4104 = vmatprep.subr.mxu0 %v3392
      %4105 = vmatpush1.msra.mxu0 %v3391
      %4106 = vmatprep.subr.mxu0 %v3396
      %4107 = vmatpush1.msra.mxu0 %v3395
      %4108 = vmatprep.subr.mxu0 %v3400
      %4109 = vmatpush1.msra.mxu0 %v3399
      %4110 = vmatprep.subr.mxu0 %v3404
      %4111 = vmatpush1.msra.mxu0 %v3403
      %4112 = vmatprep.subr.mxu0 %v3408
      %4113 = vmatpush1.msra.mxu0 %v3407
      %4114 = vmatprep.subr.mxu0 %v3412
      %4115 = vmatpush1.msra.mxu0 %v3411
      %4116 = vmatprep.subr.mxu0 %v3416
      %4117 = vmatpush1.msra.mxu0 %v3415
      %4118 = vmatprep.subr.mxu0 %v3420
      %4119 = vmatpush1.msra.mxu0 %v3419
      %4120 = vmatprep.subr.mxu0 %v3424
      %4121 = vmatpush1.msra.mxu0 %v3423
      %4122 = vmatprep.mubr.f32.mxu0 %v3164
      %4123 = vmatmul.mubr.f32.gmra.mrb[0].mxu0 %v3163
      %v4124 = vpop.f32.mrb[0].mxu0
      %v4125 = vadd.f32 %v4054, %v4124
      %v4126 = vpop.f32.mrb[0].mxu0
      %v4127 = vadd.f32 %v4056, %v4126
      %4128 = vdwg.mxu0
      %4129 = vmatprep.subr.mxu0 %v3428
      %4130 = vmatpush1.msra.mxu0 %v3427
      %4131 = vmatprep.subr.mxu0 %v3432
      %4132 = vmatpush1.msra.mxu0 %v3431
      %4133 = vmatprep.subr.mxu0 %v3436
      %4134 = vmatpush1.msra.mxu0 %v3435
      %4135 = vmatprep.subr.mxu0 %v3440
      %4136 = vmatpush1.msra.mxu0 %v3439
      %4137 = vmatprep.subr.mxu0 %v3444
      %4138 = vmatpush1.msra.mxu0 %v3443
      %4139 = vmatprep.subr.mxu0 %v3448
      %4140 = vmatpush1.msra.mxu0 %v3447
      %4141 = vmatprep.subr.mxu0 %v3452
      %4142 = vmatpush1.msra.mxu0 %v3451
      %4143 = vmatprep.subr.mxu0 %v3456
      %4144 = vmatpush1.msra.mxu0 %v3455
      %4145 = vmatprep.subr.mxu0 %v3460
      %4146 = vmatpush1.msra.mxu0 %v3459
      %4147 = vmatprep.subr.mxu0 %v3464
      %4148 = vmatpush1.msra.mxu0 %v3463
      %4149 = vmatprep.subr.mxu0 %v3468
      %4150 = vmatpush1.msra.mxu0 %v3467
      %4151 = vmatprep.subr.mxu0 %v3472
      %4152 = vmatpush1.msra.mxu0 %v3471
      %4153 = vmatprep.subr.mxu0 %v3476
      %4154 = vmatpush1.msra.mxu0 %v3475
      %4155 = vmatprep.subr.mxu0 %v3480
      %4156 = vmatpush1.msra.mxu0 %v3479
      %4157 = vmatprep.subr.mxu0 %v3484
      %4158 = vmatpush1.msra.mxu0 %v3483
      %4159 = vmatprep.subr.mxu0 %v3488
      %4160 = vmatpush1.msra.mxu0 %v3487
      %4161 = vmatprep.subr.mxu0 %v3492
      %4162 = vmatpush1.msra.mxu0 %v3491
      %4163 = vmatprep.subr.mxu0 %v3496
      %4164 = vmatpush1.msra.mxu0 %v3495
      %4165 = vmatprep.subr.mxu0 %v3500
      %4166 = vmatpush1.msra.mxu0 %v3499
      %4167 = vmatprep.subr.mxu0 %v3504
      %4168 = vmatpush1.msra.mxu0 %v3503
      %4169 = vmatprep.subr.mxu0 %v3508
      %4170 = vmatpush1.msra.mxu0 %v3507
      %4171 = vmatprep.subr.mxu0 %v3512
      %4172 = vmatpush1.msra.mxu0 %v3511
      %4173 = vmatprep.subr.mxu0 %v3516
      %4174 = vmatpush1.msra.mxu0 %v3515
      %4175 = vmatprep.subr.mxu0 %v3520
      %4176 = vmatpush1.msra.mxu0 %v3519
      %4177 = vmatprep.subr.mxu0 %v3524
      %4178 = vmatpush1.msra.mxu0 %v3523
      %4179 = vmatprep.subr.mxu0 %v3528
      %4180 = vmatpush1.msra.mxu0 %v3527
      %4181 = vmatprep.subr.mxu0 %v3532
      %4182 = vmatpush1.msra.mxu0 %v3531
      %4183 = vmatprep.subr.mxu0 %v3536
      %4184 = vmatpush1.msra.mxu0 %v3535
      %4185 = vmatprep.subr.mxu0 %v3540
      %4186 = vmatpush1.msra.mxu0 %v3539
      %4187 = vmatprep.subr.mxu0 %v3544
      %4188 = vmatpush1.msra.mxu0 %v3543
      %4189 = vmatprep.subr.mxu0 %v3548
      %4190 = vmatpush1.msra.mxu0 %v3547
      %4191 = vmatprep.subr.mxu0 %v3552
      %4192 = vmatpush1.msra.mxu0 %v3551
      %4193 = vmatprep.mubr.f32.mxu0 %v3166
      %4194 = vmatmul.mubr.f32.gmra.mrb[0].mxu0 %v3165
      %v4195 = vpop.f32.mrb[0].mxu0
      %v4196 = vadd.f32 %v4125, %v4195
      %v4197 = vpop.f32.mrb[0].mxu0
      %v4198 = vadd.f32 %v4127, %v4197
      %4199 = vdwg.mxu0
      %4200 = vmatprep.subr.mxu0 %v3556
      %4201 = vmatpush1.msra.mxu0 %v3555
      %4202 = vmatprep.subr.mxu0 %v3560
      %4203 = vmatpush1.msra.mxu0 %v3559
      %4204 = vmatprep.subr.mxu0 %v3564
      %4205 = vmatpush1.msra.mxu0 %v3563
      %4206 = vmatprep.subr.mxu0 %v3568
      %4207 = vmatpush1.msra.mxu0 %v3567
      %4208 = vmatprep.subr.mxu0 %v3572
      %4209 = vmatpush1.msra.mxu0 %v3571
      %4210 = vmatprep.subr.mxu0 %v3576
      %4211 = vmatpush1.msra.mxu0 %v3575
      %4212 = vmatprep.subr.mxu0 %v3580
      %4213 = vmatpush1.msra.mxu0 %v3579
      %4214 = vmatprep.subr.mxu0 %v3584
      %4215 = vmatpush1.msra.mxu0 %v3583
      %4216 = vmatprep.subr.mxu0 %v3588
      %4217 = vmatpush1.msra.mxu0 %v3587
      %4218 = vmatprep.subr.mxu0 %v3592
      %4219 = vmatpush1.msra.mxu0 %v3591
      %4220 = vmatprep.subr.mxu0 %v3596
      %4221 = vmatpush1.msra.mxu0 %v3595
      %4222 = vmatprep.subr.mxu0 %v3600
      %4223 = vmatpush1.msra.mxu0 %v3599
      %4224 = vmatprep.subr.mxu0 %v3604
      %4225 = vmatpush1.msra.mxu0 %v3603
      %4226 = vmatprep.subr.mxu0 %v3608
      %4227 = vmatpush1.msra.mxu0 %v3607
      %4228 = vmatprep.subr.mxu0 %v3612
      %4229 = vmatpush1.msra.mxu0 %v3611
      %4230 = vmatprep.subr.mxu0 %v3616
      %4231 = vmatpush1.msra.mxu0 %v3615
      %4232 = vmatprep.subr.mxu0 %v3620
      %4233 = vmatpush1.msra.mxu0 %v3619
      %4234 = vmatprep.subr.mxu0 %v3624
      %4235 = vmatpush1.msra.mxu0 %v3623
      %4236 = vmatprep.subr.mxu0 %v3628
      %4237 = vmatpush1.msra.mxu0 %v3627
      %4238 = vmatprep.subr.mxu0 %v3632
      %4239 = vmatpush1.msra.mxu0 %v3631
      %4240 = vmatprep.subr.mxu0 %v3636
      %4241 = vmatpush1.msra.mxu0 %v3635
      %4242 = vmatprep.subr.mxu0 %v3640
      %4243 = vmatpush1.msra.mxu0 %v3639
      %4244 = vmatprep.subr.mxu0 %v3644
      %4245 = vmatpush1.msra.mxu0 %v3643
      %4246 = vmatprep.subr.mxu0 %v3648
      %4247 = vmatpush1.msra.mxu0 %v3647
      %4248 = vmatprep.subr.mxu0 %v3652
      %4249 = vmatpush1.msra.mxu0 %v3651
      %4250 = vmatprep.subr.mxu0 %v3656
      %4251 = vmatpush1.msra.mxu0 %v3655
      %4252 = vmatprep.subr.mxu0 %v3660
      %4253 = vmatpush1.msra.mxu0 %v3659
      %4254 = vmatprep.subr.mxu0 %v3664
      %4255 = vmatpush1.msra.mxu0 %v3663
      %4256 = vmatprep.subr.mxu0 %v3668
      %4257 = vmatpush1.msra.mxu0 %v3667
      %4258 = vmatprep.subr.mxu0 %v3672
      %4259 = vmatpush1.msra.mxu0 %v3671
      %4260 = vmatprep.subr.mxu0 %v3676
      %4261 = vmatpush1.msra.mxu0 %v3675
      %4262 = vmatprep.subr.mxu0 %v3680
      %4263 = vmatpush1.msra.mxu0 %v3679
      %4264 = vmatprep.mubr.f32.mxu0 %v3168
      %4265 = vmatmul.mubr.f32.gmra.mrb[0].mxu0 %v3167
      %v4266 = vpop.f32.mrb[0].mxu0
      %v4267 = vadd.f32 %v4196, %v4266
      %v4268 = vpop.f32.mrb[0].mxu0
      %v4269 = vadd.f32 %v4198, %v4268
      %4270 = vdwg.mxu0
      %v4271 = vmax.f32 %v3983, 0.0
      %v4272 = vmax.f32 %v3985, 0.0
      %v4273 = vmax.f32 %v4267, 0.0
      %v4274 = vmax.f32 %v4269, 0.0
      %v4275 = vld [vmem:[#allocation17] sm:$0xff]
      %v4276 = vld [vmem:[#allocation17 + $0x8] sm:$0xff]
      %v4277 = vld [vmem:[#allocation17 + $0x10] sm:$0xff]
      %v4278 = vld [vmem:[#allocation17 + $0x18] sm:$0xff]
      %v4279 = vld [vmem:[#allocation17 + $0x20] sm:$0xff]
      %v4280 = vld [vmem:[#allocation17 + $0x28] sm:$0xff]
      %v4281 = vld [vmem:[#allocation17 + $0x30] sm:$0xff]
      %v4282 = vld [vmem:[#allocation17 + $0x38] sm:$0xff]
      %v4283 = vld [vmem:[#allocation17 + $0x40] sm:$0xff]
      %v4284 = vld [vmem:[#allocation17 + $0x48] sm:$0xff]
      %v4285 = vld [vmem:[#allocation17 + $0x50] sm:$0xff]
      %v4286 = vld [vmem:[#allocation17 + $0x58] sm:$0xff]
      %v4287 = vld [vmem:[#allocation17 + $0x60] sm:$0xff]
      %v4288 = vld [vmem:[#allocation17 + $0x68] sm:$0xff]
      %v4289 = vld [vmem:[#allocation17 + $0x70] sm:$0xff]
      %v4290 = vld [vmem:[#allocation17 + $0x78] sm:$0xff]
      %v4291 = vld [vmem:[#allocation17 + $0x80] sm:$0xff]
      %v4292 = vld [vmem:[#allocation17 + $0x88] sm:$0xff]
      %v4293 = vld [vmem:[#allocation17 + $0x90] sm:$0xff]
      %v4294 = vld [vmem:[#allocation17 + $0x98] sm:$0xff]
      %v4295 = vld [vmem:[#allocation17 + $0xa0] sm:$0xff]
      %v4296 = vld [vmem:[#allocation17 + $0xa8] sm:$0xff]
      %v4297 = vld [vmem:[#allocation17 + $0xb0] sm:$0xff]
      %v4298 = vld [vmem:[#allocation17 + $0xb8] sm:$0xff]
      %v4299 = vld [vmem:[#allocation17 + $0xc0] sm:$0xff]
      %v4300 = vld [vmem:[#allocation17 + $0xc8] sm:$0xff]
      %v4301 = vld [vmem:[#allocation17 + $0xd0] sm:$0xff]
      %v4302 = vld [vmem:[#allocation17 + $0xd8] sm:$0xff]
      %v4303 = vld [vmem:[#allocation17 + $0xe0] sm:$0xff]
      %v4304 = vld [vmem:[#allocation17 + $0xe8] sm:$0xff]
      %v4305 = vld [vmem:[#allocation17 + $0xf0] sm:$0xff]
      %v4306 = vld [vmem:[#allocation17 + $0xf8] sm:$0xff]
      %v4307 = vld [vmem:[#allocation17 + $0x100] sm:$0xff]
      %v4308 = vld [vmem:[#allocation17 + $0x108] sm:$0xff]
      %v4309 = vld [vmem:[#allocation17 + $0x110] sm:$0xff]
      %v4310 = vld [vmem:[#allocation17 + $0x118] sm:$0xff]
      %v4311 = vld [vmem:[#allocation17 + $0x120] sm:$0xff]
      %v4312 = vld [vmem:[#allocation17 + $0x128] sm:$0xff]
      %v4313 = vld [vmem:[#allocation17 + $0x130] sm:$0xff]
      %v4314 = vld [vmem:[#allocation17 + $0x138] sm:$0xff]
      %v4315 = vld [vmem:[#allocation17 + $0x140] sm:$0xff]
      %v4316 = vld [vmem:[#allocation17 + $0x148] sm:$0xff]
      %v4317 = vld [vmem:[#allocation17 + $0x150] sm:$0xff]
      %v4318 = vld [vmem:[#allocation17 + $0x158] sm:$0xff]
      %v4319 = vld [vmem:[#allocation17 + $0x160] sm:$0xff]
      %v4320 = vld [vmem:[#allocation17 + $0x168] sm:$0xff]
      %v4321 = vld [vmem:[#allocation17 + $0x170] sm:$0xff]
      %v4322 = vld [vmem:[#allocation17 + $0x178] sm:$0xff]
      %v4323 = vld [vmem:[#allocation17 + $0x180] sm:$0xff]
      %v4324 = vld [vmem:[#allocation17 + $0x188] sm:$0xff]
      %v4325 = vld [vmem:[#allocation17 + $0x190] sm:$0xff]
      %v4326 = vld [vmem:[#allocation17 + $0x198] sm:$0xff]
      %v4327 = vld [vmem:[#allocation17 + $0x1a0] sm:$0xff]
      %v4328 = vld [vmem:[#allocation17 + $0x1a8] sm:$0xff]
      %v4329 = vld [vmem:[#allocation17 + $0x1b0] sm:$0xff]
      %v4330 = vld [vmem:[#allocation17 + $0x1b8] sm:$0xff]
      %v4331 = vld [vmem:[#allocation17 + $0x1c0] sm:$0xff]
      %v4332 = vld [vmem:[#allocation17 + $0x1c8] sm:$0xff]
      %v4333 = vld [vmem:[#allocation17 + $0x1d0] sm:$0xff]
      %v4334 = vld [vmem:[#allocation17 + $0x1d8] sm:$0xff]
      %v4335 = vld [vmem:[#allocation17 + $0x1e0] sm:$0xff]
      %v4336 = vld [vmem:[#allocation17 + $0x1e8] sm:$0xff]
      %v4337 = vld [vmem:[#allocation17 + $0x1f0] sm:$0xff]
      %v4338 = vld [vmem:[#allocation17 + $0x1f8] sm:$0xff]
      %v4339 = vld [vmem:[#allocation17 + $0x200] sm:$0xff]
      %v4340 = vld [vmem:[#allocation17 + $0x208] sm:$0xff]
      %v4341 = vld [vmem:[#allocation17 + $0x210] sm:$0xff]
      %v4342 = vld [vmem:[#allocation17 + $0x218] sm:$0xff]
      %v4343 = vld [vmem:[#allocation17 + $0x220] sm:$0xff]
      %v4344 = vld [vmem:[#allocation17 + $0x228] sm:$0xff]
      %v4345 = vld [vmem:[#allocation17 + $0x230] sm:$0xff]
      %v4346 = vld [vmem:[#allocation17 + $0x238] sm:$0xff]
      %v4347 = vld [vmem:[#allocation17 + $0x240] sm:$0xff]
      %v4348 = vld [vmem:[#allocation17 + $0x248] sm:$0xff]
      %v4349 = vld [vmem:[#allocation17 + $0x250] sm:$0xff]
      %v4350 = vld [vmem:[#allocation17 + $0x258] sm:$0xff]
      %v4351 = vld [vmem:[#allocation17 + $0x260] sm:$0xff]
      %v4352 = vld [vmem:[#allocation17 + $0x268] sm:$0xff]
      %v4353 = vld [vmem:[#allocation17 + $0x270] sm:$0xff]
      %v4354 = vld [vmem:[#allocation17 + $0x278] sm:$0xff]
      %v4355 = vld [vmem:[#allocation17 + $0x280] sm:$0xff]
      %v4356 = vld [vmem:[#allocation17 + $0x288] sm:$0xff]
      %v4357 = vld [vmem:[#allocation17 + $0x290] sm:$0xff]
      %v4358 = vld [vmem:[#allocation17 + $0x298] sm:$0xff]
      %v4359 = vld [vmem:[#allocation17 + $0x2a0] sm:$0xff]
      %v4360 = vld [vmem:[#allocation17 + $0x2a8] sm:$0xff]
      %v4361 = vld [vmem:[#allocation17 + $0x2b0] sm:$0xff]
      %v4362 = vld [vmem:[#allocation17 + $0x2b8] sm:$0xff]
      %v4363 = vld [vmem:[#allocation17 + $0x2c0] sm:$0xff]
      %v4364 = vld [vmem:[#allocation17 + $0x2c8] sm:$0xff]
      %v4365 = vld [vmem:[#allocation17 + $0x2d0] sm:$0xff]
      %v4366 = vld [vmem:[#allocation17 + $0x2d8] sm:$0xff]
      %v4367 = vld [vmem:[#allocation17 + $0x2e0] sm:$0xff]
      %v4368 = vld [vmem:[#allocation17 + $0x2e8] sm:$0xff]
      %v4369 = vld [vmem:[#allocation17 + $0x2f0] sm:$0xff]
      %v4370 = vld [vmem:[#allocation17 + $0x2f8] sm:$0xff]
      %v4371 = vld [vmem:[#allocation17 + $0x300] sm:$0xff]
      %v4372 = vld [vmem:[#allocation17 + $0x308] sm:$0xff]
      %v4373 = vld [vmem:[#allocation17 + $0x310] sm:$0xff]
      %v4374 = vld [vmem:[#allocation17 + $0x318] sm:$0xff]
      %v4375 = vld [vmem:[#allocation17 + $0x320] sm:$0xff]
      %v4376 = vld [vmem:[#allocation17 + $0x328] sm:$0xff]
      %v4377 = vld [vmem:[#allocation17 + $0x330] sm:$0xff]
      %v4378 = vld [vmem:[#allocation17 + $0x338] sm:$0xff]
      %v4379 = vld [vmem:[#allocation17 + $0x340] sm:$0xff]
      %v4380 = vld [vmem:[#allocation17 + $0x348] sm:$0xff]
      %v4381 = vld [vmem:[#allocation17 + $0x350] sm:$0xff]
      %v4382 = vld [vmem:[#allocation17 + $0x358] sm:$0xff]
      %v4383 = vld [vmem:[#allocation17 + $0x360] sm:$0xff]
      %v4384 = vld [vmem:[#allocation17 + $0x368] sm:$0xff]
      %v4385 = vld [vmem:[#allocation17 + $0x370] sm:$0xff]
      %v4386 = vld [vmem:[#allocation17 + $0x378] sm:$0xff]
      %v4387 = vld [vmem:[#allocation17 + $0x380] sm:$0xff]
      %v4388 = vld [vmem:[#allocation17 + $0x388] sm:$0xff]
      %v4389 = vld [vmem:[#allocation17 + $0x390] sm:$0xff]
      %v4390 = vld [vmem:[#allocation17 + $0x398] sm:$0xff]
      %v4391 = vld [vmem:[#allocation17 + $0x3a0] sm:$0xff]
      %v4392 = vld [vmem:[#allocation17 + $0x3a8] sm:$0xff]
      %v4393 = vld [vmem:[#allocation17 + $0x3b0] sm:$0xff]
      %v4394 = vld [vmem:[#allocation17 + $0x3b8] sm:$0xff]
      %v4395 = vld [vmem:[#allocation17 + $0x3c0] sm:$0xff]
      %v4396 = vld [vmem:[#allocation17 + $0x3c8] sm:$0xff]
      %v4397 = vld [vmem:[#allocation17 + $0x3d0] sm:$0xff]
      %v4398 = vld [vmem:[#allocation17 + $0x3d8] sm:$0xff]
      %v4399 = vld [vmem:[#allocation17 + $0x3e0] sm:$0xff]
      %v4400 = vld [vmem:[#allocation17 + $0x3e8] sm:$0xff]
      %v4401 = vld [vmem:[#allocation17 + $0x3f0] sm:$0xff]
      %v4402 = vld [vmem:[#allocation17 + $0x3f8] sm:$0xff]
      %v4403 = vld [vmem:[#allocation18] sm:$0x3]
      %v4405 = vlaneseq
      %v4406 = vshrl.u32 %v4405, 7
      %v4407 = vsub.s32 0, %v4406
      %v4408 = vrot.slane %v4403, %v4407
      %v4409 = vlaneseq
      %v4410 = vshrl.u32 %v4409, 7
      %v4411 = vsub.s32 1, %v4410
      %v4412 = vrot.slane %v4403, %v4411
      %4415 = vmatprep.subr.mxu0 %v4276
      %4416 = vmatpush1.msra.mxu0 %v4275
      %4417 = vmatprep.subr.mxu0 %v4278
      %4418 = vmatpush1.msra.mxu0 %v4277
      %4419 = vmatprep.subr.mxu0 %v4280
      %4420 = vmatpush1.msra.mxu0 %v4279
      %4421 = vmatprep.subr.mxu0 %v4282
      %4422 = vmatpush1.msra.mxu0 %v4281
      %4423 = vmatprep.subr.mxu0 %v4284
      %4424 = vmatpush1.msra.mxu0 %v4283
      %4425 = vmatprep.subr.mxu0 %v4286
      %4426 = vmatpush1.msra.mxu0 %v4285
      %4427 = vmatprep.subr.mxu0 %v4288
      %4428 = vmatpush1.msra.mxu0 %v4287
      %4429 = vmatprep.subr.mxu0 %v4290
      %4430 = vmatpush1.msra.mxu0 %v4289
      %4431 = vmatprep.subr.mxu0 %v4292
      %4432 = vmatpush1.msra.mxu0 %v4291
      %4433 = vmatprep.subr.mxu0 %v4294
      %4434 = vmatpush1.msra.mxu0 %v4293
      %4435 = vmatprep.subr.mxu0 %v4296
      %4436 = vmatpush1.msra.mxu0 %v4295
      %4437 = vmatprep.subr.mxu0 %v4298
      %4438 = vmatpush1.msra.mxu0 %v4297
      %4439 = vmatprep.subr.mxu0 %v4300
      %4440 = vmatpush1.msra.mxu0 %v4299
      %4441 = vmatprep.subr.mxu0 %v4302
      %4442 = vmatpush1.msra.mxu0 %v4301
      %4443 = vmatprep.subr.mxu0 %v4304
      %4444 = vmatpush1.msra.mxu0 %v4303
      %4445 = vmatprep.subr.mxu0 %v4306
      %4446 = vmatpush1.msra.mxu0 %v4305
      %4447 = vmatprep.subr.mxu0 %v4308
      %4448 = vmatpush1.msra.mxu0 %v4307
      %4449 = vmatprep.subr.mxu0 %v4310
      %4450 = vmatpush1.msra.mxu0 %v4309
      %4451 = vmatprep.subr.mxu0 %v4312
      %4452 = vmatpush1.msra.mxu0 %v4311
      %4453 = vmatprep.subr.mxu0 %v4314
      %4454 = vmatpush1.msra.mxu0 %v4313
      %4455 = vmatprep.subr.mxu0 %v4316
      %4456 = vmatpush1.msra.mxu0 %v4315
      %4457 = vmatprep.subr.mxu0 %v4318
      %4458 = vmatpush1.msra.mxu0 %v4317
      %4459 = vmatprep.subr.mxu0 %v4320
      %4460 = vmatpush1.msra.mxu0 %v4319
      %4461 = vmatprep.subr.mxu0 %v4322
      %4462 = vmatpush1.msra.mxu0 %v4321
      %4463 = vmatprep.subr.mxu0 %v4324
      %4464 = vmatpush1.msra.mxu0 %v4323
      %4465 = vmatprep.subr.mxu0 %v4326
      %4466 = vmatpush1.msra.mxu0 %v4325
      %4467 = vmatprep.subr.mxu0 %v4328
      %4468 = vmatpush1.msra.mxu0 %v4327
      %4469 = vmatprep.subr.mxu0 %v4330
      %4470 = vmatpush1.msra.mxu0 %v4329
      %4471 = vmatprep.subr.mxu0 %v4332
      %4472 = vmatpush1.msra.mxu0 %v4331
      %4473 = vmatprep.subr.mxu0 %v4334
      %4474 = vmatpush1.msra.mxu0 %v4333
      %4475 = vmatprep.subr.mxu0 %v4336
      %4476 = vmatpush1.msra.mxu0 %v4335
      %4477 = vmatprep.subr.mxu0 %v4338
      %4478 = vmatpush1.msra.mxu0 %v4337
      %4479 = vmatprep.mubr.f32.mxu0 %v4272
      %4480 = vmatmul.mubr.f32.gmra.mrb[0].mxu0 %v4271
      %v4481 = vpop.f32.mrb[0].mxu0
      %v4482 = vadd.f32 %v4408, %v4481
      %v4483 = vpop.f32.mrb[0].mxu0
      %v4484 = vadd.f32 %v4412, %v4483
      %4485 = vdwg.mxu0
      %4486 = vmatprep.subr.mxu0 %v4340
      %4487 = vmatpush1.msra.mxu0 %v4339
      %4488 = vmatprep.subr.mxu0 %v4342
      %4489 = vmatpush1.msra.mxu0 %v4341
      %4490 = vmatprep.subr.mxu0 %v4344
      %4491 = vmatpush1.msra.mxu0 %v4343
      %4492 = vmatprep.subr.mxu0 %v4346
      %4493 = vmatpush1.msra.mxu0 %v4345
      %4494 = vmatprep.subr.mxu0 %v4348
      %4495 = vmatpush1.msra.mxu0 %v4347
      %4496 = vmatprep.subr.mxu0 %v4350
      %4497 = vmatpush1.msra.mxu0 %v4349
      %4498 = vmatprep.subr.mxu0 %v4352
      %4499 = vmatpush1.msra.mxu0 %v4351
      %4500 = vmatprep.subr.mxu0 %v4354
      %4501 = vmatpush1.msra.mxu0 %v4353
      %4502 = vmatprep.subr.mxu0 %v4356
      %4503 = vmatpush1.msra.mxu0 %v4355
      %4504 = vmatprep.subr.mxu0 %v4358
      %4505 = vmatpush1.msra.mxu0 %v4357
      %4506 = vmatprep.subr.mxu0 %v4360
      %4507 = vmatpush1.msra.mxu0 %v4359
      %4508 = vmatprep.subr.mxu0 %v4362
      %4509 = vmatpush1.msra.mxu0 %v4361
      %4510 = vmatprep.subr.mxu0 %v4364
      %4511 = vmatpush1.msra.mxu0 %v4363
      %4512 = vmatprep.subr.mxu0 %v4366
      %4513 = vmatpush1.msra.mxu0 %v4365
      %4514 = vmatprep.subr.mxu0 %v4368
      %4515 = vmatpush1.msra.mxu0 %v4367
      %4516 = vmatprep.subr.mxu0 %v4370
      %4517 = vmatpush1.msra.mxu0 %v4369
      %4518 = vmatprep.subr.mxu0 %v4372
      %4519 = vmatpush1.msra.mxu0 %v4371
      %4520 = vmatprep.subr.mxu0 %v4374
      %4521 = vmatpush1.msra.mxu0 %v4373
      %4522 = vmatprep.subr.mxu0 %v4376
      %4523 = vmatpush1.msra.mxu0 %v4375
      %4524 = vmatprep.subr.mxu0 %v4378
      %4525 = vmatpush1.msra.mxu0 %v4377
      %4526 = vmatprep.subr.mxu0 %v4380
      %4527 = vmatpush1.msra.mxu0 %v4379
      %4528 = vmatprep.subr.mxu0 %v4382
      %4529 = vmatpush1.msra.mxu0 %v4381
      %4530 = vmatprep.subr.mxu0 %v4384
      %4531 = vmatpush1.msra.mxu0 %v4383
      %4532 = vmatprep.subr.mxu0 %v4386
      %4533 = vmatpush1.msra.mxu0 %v4385
      %4534 = vmatprep.subr.mxu0 %v4388
      %4535 = vmatpush1.msra.mxu0 %v4387
      %4536 = vmatprep.subr.mxu0 %v4390
      %4537 = vmatpush1.msra.mxu0 %v4389
      %4538 = vmatprep.subr.mxu0 %v4392
      %4539 = vmatpush1.msra.mxu0 %v4391
      %4540 = vmatprep.subr.mxu0 %v4394
      %4541 = vmatpush1.msra.mxu0 %v4393
      %4542 = vmatprep.subr.mxu0 %v4396
      %4543 = vmatpush1.msra.mxu0 %v4395
      %4544 = vmatprep.subr.mxu0 %v4398
      %4545 = vmatpush1.msra.mxu0 %v4397
      %4546 = vmatprep.subr.mxu0 %v4400
      %4547 = vmatpush1.msra.mxu0 %v4399
      %4548 = vmatprep.subr.mxu0 %v4402
      %4549 = vmatpush1.msra.mxu0 %v4401
      %4550 = vmatprep.mubr.f32.mxu0 %v4274
      %4551 = vmatmul.mubr.f32.gmra.mrb[0].mxu0 %v4273
      %v4552 = vpop.f32.mrb[0].mxu0
      %v4553 = vadd.f32 %v4482, %v4552
      %v4554 = vpop.f32.mrb[0].mxu0
      %v4555 = vadd.f32 %v4484, %v4554
      %4556 = vdwg.mxu0
      %v4557 = vmax.f32 %v4553, 0.0
      %v4558 = vmax.f32 %v4555, 0.0
      %v4559 = vld [vmem:[#allocation20] sm:$0xff]
      %v4560 = vld [vmem:[#allocation20 + $0x8] sm:$0xff]
      %v4561 = vld [vmem:[#allocation20 + $0x10] sm:$0xff]
      %v4562 = vld [vmem:[#allocation20 + $0x18] sm:$0xff]
      %v4563 = vld [vmem:[#allocation20 + $0x20] sm:$0xff]
      %v4564 = vld [vmem:[#allocation20 + $0x28] sm:$0xff]
      %v4565 = vld [vmem:[#allocation20 + $0x30] sm:$0xff]
      %v4566 = vld [vmem:[#allocation20 + $0x38] sm:$0xff]
      %v4567 = vld [vmem:[#allocation20 + $0x40] sm:$0xff]
      %v4568 = vld [vmem:[#allocation20 + $0x48] sm:$0xff]
      %v4569 = vld [vmem:[#allocation20 + $0x50] sm:$0xff]
      %v4570 = vld [vmem:[#allocation20 + $0x58] sm:$0xff]
      %v4571 = vld [vmem:[#allocation20 + $0x60] sm:$0xff]
      %v4572 = vld [vmem:[#allocation20 + $0x68] sm:$0xff]
      %v4573 = vld [vmem:[#allocation20 + $0x70] sm:$0xff]
      %v4574 = vld [vmem:[#allocation20 + $0x78] sm:$0xff]
      %v4575 = vld [vmem:[#allocation20 + $0x80] sm:$0xff]
      %v4576 = vld [vmem:[#allocation20 + $0x88] sm:$0xff]
      %v4577 = vld [vmem:[#allocation20 + $0x90] sm:$0xff]
      %v4578 = vld [vmem:[#allocation20 + $0x98] sm:$0xff]
      %v4579 = vld [vmem:[#allocation20 + $0xa0] sm:$0xff]
      %v4580 = vld [vmem:[#allocation20 + $0xa8] sm:$0xff]
      %v4581 = vld [vmem:[#allocation20 + $0xb0] sm:$0xff]
      %v4582 = vld [vmem:[#allocation20 + $0xb8] sm:$0xff]
      %v4583 = vld [vmem:[#allocation20 + $0xc0] sm:$0xff]
      %v4584 = vld [vmem:[#allocation20 + $0xc8] sm:$0xff]
      %v4585 = vld [vmem:[#allocation20 + $0xd0] sm:$0xff]
      %v4586 = vld [vmem:[#allocation20 + $0xd8] sm:$0xff]
      %v4587 = vld [vmem:[#allocation20 + $0xe0] sm:$0xff]
      %v4588 = vld [vmem:[#allocation20 + $0xe8] sm:$0xff]
      %v4589 = vld [vmem:[#allocation20 + $0xf0] sm:$0xff]
      %v4590 = vld [vmem:[#allocation20 + $0xf8] sm:$0xff]
      %v4591 = vld [vmem:[#allocation21] sm:$0x1]
      %v4593 = vlaneseq
      %v4594 = vshrl.u32 %v4593, 7
      %v4595 = vsub.s32 0, %v4594
      %v4596 = vrot.slane %v4591, %v4595
      %4598 = vmatprep.subr.mxu0 0.0
      %4599 = vmatpush1.msra.mxu0 %v4559
      %4600 = vmatprep.subr.mxu0 0.0
      %4601 = vmatpush1.msra.mxu0 %v4560
      %4602 = vmatprep.subr.mxu0 0.0
      %4603 = vmatpush1.msra.mxu0 %v4561
      %4604 = vmatprep.subr.mxu0 0.0
      %4605 = vmatpush1.msra.mxu0 %v4562
      %4606 = vmatprep.subr.mxu0 0.0
      %4607 = vmatpush1.msra.mxu0 %v4563
      %4608 = vmatprep.subr.mxu0 0.0
      %4609 = vmatpush1.msra.mxu0 %v4564
      %4610 = vmatprep.subr.mxu0 0.0
      %4611 = vmatpush1.msra.mxu0 %v4565
      %4612 = vmatprep.subr.mxu0 0.0
      %4613 = vmatpush1.msra.mxu0 %v4566
      %4614 = vmatprep.subr.mxu0 0.0
      %4615 = vmatpush1.msra.mxu0 %v4567
      %4616 = vmatprep.subr.mxu0 0.0
      %4617 = vmatpush1.msra.mxu0 %v4568
      %4618 = vmatprep.subr.mxu0 0.0
      %4619 = vmatpush1.msra.mxu0 %v4569
      %4620 = vmatprep.subr.mxu0 0.0
      %4621 = vmatpush1.msra.mxu0 %v4570
      %4622 = vmatprep.subr.mxu0 0.0
      %4623 = vmatpush1.msra.mxu0 %v4571
      %4624 = vmatprep.subr.mxu0 0.0
      %4625 = vmatpush1.msra.mxu0 %v4572
      %4626 = vmatprep.subr.mxu0 0.0
      %4627 = vmatpush1.msra.mxu0 %v4573
      %4628 = vmatprep.subr.mxu0 0.0
      %4629 = vmatpush1.msra.mxu0 %v4574
      %4630 = vmatprep.subr.mxu0 0.0
      %4631 = vmatpush1.msra.mxu0 %v4575
      %4632 = vmatprep.subr.mxu0 0.0
      %4633 = vmatpush1.msra.mxu0 %v4576
      %4634 = vmatprep.subr.mxu0 0.0
      %4635 = vmatpush1.msra.mxu0 %v4577
      %4636 = vmatprep.subr.mxu0 0.0
      %4637 = vmatpush1.msra.mxu0 %v4578
      %4638 = vmatprep.subr.mxu0 0.0
      %4639 = vmatpush1.msra.mxu0 %v4579
      %4640 = vmatprep.subr.mxu0 0.0
      %4641 = vmatpush1.msra.mxu0 %v4580
      %4642 = vmatprep.subr.mxu0 0.0
      %4643 = vmatpush1.msra.mxu0 %v4581
      %4644 = vmatprep.subr.mxu0 0.0
      %4645 = vmatpush1.msra.mxu0 %v4582
      %4646 = vmatprep.subr.mxu0 0.0
      %4647 = vmatpush1.msra.mxu0 %v4583
      %4648 = vmatprep.subr.mxu0 0.0
      %4649 = vmatpush1.msra.mxu0 %v4584
      %4650 = vmatprep.subr.mxu0 0.0
      %4651 = vmatpush1.msra.mxu0 %v4585
      %4652 = vmatprep.subr.mxu0 0.0
      %4653 = vmatpush1.msra.mxu0 %v4586
      %4654 = vmatprep.subr.mxu0 0.0
      %4655 = vmatpush1.msra.mxu0 %v4587
      %4656 = vmatprep.subr.mxu0 0.0
      %4657 = vmatpush1.msra.mxu0 %v4588
      %4658 = vmatprep.subr.mxu0 0.0
      %4659 = vmatpush1.msra.mxu0 %v4589
      %4660 = vmatprep.subr.mxu0 0.0
      %4661 = vmatpush1.msra.mxu0 %v4590
      %4662 = vmatprep.mubr.f32.mxu0 %v4558
      %4663 = vmatmul.mubr.f32.gmra.mrb[0].mxu0 %v4557
      %v4664 = vpop.f32.mrb[0].mxu0
      %v4665 = vadd.f32 %v4596, %v4664
      %v4666 = vpop.f32.mrb[0].mxu0
      %4667 = vdwg.mxu0
      %4668 = vst [vmem:[#allocation23] sm:$0xff] %v4665
    $region109: #{tpu_custom_call.1} parent=1 // pred_fallthru
      _
    // Predicated region
    $region110: #{tpu_custom_call.1} parent=1 // pred_check
      _
    $region111: #{tpu_custom_call.1} parent=1 // pred_check_branch
      %4670 = sbr.rel (0) target = $region113
    $region112: #{tpu_custom_call.1} parent=1 // pred_region
      %s4672 = ssub.s32 128, 128
      %4673 = vsyncadd [#allocation5], %s4672
      %s4675 = sshll.u32 [#allocation23], 4
      %s4676 = int_to_ptr.vmem [resolvable:$true] %s4675
      %4678 = dma.vmem_to_hbm [thread:$0]  %s4676, 128, %s13, [#allocation5]
    $region113: #{tpu_custom_call.1} parent=1 // pred_fallthru
      _
    // Predicated region
    $region114: #{tpu_custom_call.1} parent=1 // pred_check
      _
    $region115: #{tpu_custom_call.1} parent=1 // pred_check_branch
      %4680 = sbr.rel (0) target = $region117
    $region116: #{tpu_custom_call.1} parent=1 // pred_region
      %4681 = dma.done [#allocation5], 128
    $region117: #{tpu_custom_call.1} parent=1 // pred_fallthru
      _
    %4682 = vsyncpa [#allocation4], 1
    %4683 = vsyncpa [#allocation7], 1
    %4684 = vsyncpa [#allocation10], 1
    %4685 = vsyncpa [#allocation13], 1
    %4686 = vsyncpa [#allocation16], 1
    %4687 = vsyncpa [#allocation19], 1
    %4688 = vsyncpa [#allocation22], 1
    %4689 = vsyncpa [#allocation5], 1

</llo_original>
